<compile_context>
chip_gen: v6e
topology: v6e:2x2x1
jax: 0.10.0
libtpu: 0.0.40
codegen_flags: <defaults>
</compile_context>

<pallas_src>
import jax
import jax.numpy as jnp
from jax.experimental import pallas as pl
from jax.experimental.pallas import tpu as pltpu


# --------------------------------------------------------------------------- #
# Pallas kernel: fused [concat + zero-pad + conv3x3 + folded-BN + ReLU]
# --------------------------------------------------------------------------- #
def _conv3x3_bn_relu_kernel(s1m_ref, s1t_ref, s1b_ref,
                            s2m_ref, s2t_ref, s2b_ref,
                            w1_ref, w2_ref, shift_ref,
                            o_ref,
                            xp1_ref, xp2_ref):
    # Per grid step (n, t):
    #   s1m_ref: (1, TH, Wo, C1) bf16  row tile of up(s1)
    #   s1t_ref: (1, 1,  Wo, C1) bf16  row above the tile (clamped, masked)
    #   s1b_ref: (1, 1,  Wo, C1) bf16  row below the tile (clamped, masked)
    #   s2*_ref: same with C2 channels (skip connection s2)
    #   w1_ref : (3, 3*C1, Cout) bf16  BN-scale-folded weights, [kh, kw*C1+ci, co]
    #   w2_ref : (3, 3*C2, Cout) bf16
    #   shift  : (1, Cout)       f32   folded conv-bias / BN shift
    #   o_ref  : (1, TH, Wo, Cout) f32
    #   xp*_ref: (TH+2, Wo+2, Cg) bf16 VMEM scratch holding the zero-padded tile
    TH, Wo, Cout = o_ref.shape[1], o_ref.shape[2], o_ref.shape[3]
    C1 = s1m_ref.shape[3]
    C2 = s2m_ref.shape[3]

    t = pl.program_id(1)
    has_top = t > 0                        # a real row exists above this tile
    has_bot = t < pl.num_programs(1) - 1   # a real row exists below this tile

    def fill_padded(xp_ref, main_ref, top_ref, bot_ref, c):
        zcol = jnp.zeros((TH + 2, 1, c), jnp.bfloat16)
        xp_ref[:, 0:1, :] = zcol                   # left conv zero-pad column
        xp_ref[:, Wo + 1:Wo + 2, :] = zcol         # right conv zero-pad column
        top = top_ref[0]
        bot = bot_ref[0]
        top = jnp.where(has_top, top, jnp.zeros_like(top))
        bot = jnp.where(has_bot, bot, jnp.zeros_like(bot))
        xp_ref[0:1, 1:Wo + 1, :] = top             # halo / zero-pad row above
        xp_ref[1:TH + 1, 1:Wo + 1, :] = main_ref[0]
        xp_ref[TH + 1:TH + 2, 1:Wo + 1, :] = bot   # halo / zero-pad row below

    fill_padded(xp1_ref, s1m_ref, s1t_ref, s1b_ref, C1)
    fill_padded(xp2_ref, s2m_ref, s2t_ref, s2b_ref, C2)

    def dw_im2col(xp_ref, c):
        # dw-im2col: channel blocks are the kw = 0,1,2 taps (cols wo-1, wo, wo+1)
        left = xp_ref[:, 0:Wo, :]
        mid = xp_ref[:, 1:Wo + 1, :]
        right = xp_ref[:, 2:Wo + 2, :]
        im = jnp.concatenate([left, mid, right], axis=-1)   # (TH+2, Wo, 3c)
        return im.reshape((TH + 2) * Wo, 3 * c)

    im1 = dw_im2col(xp1_ref, C1)
    im2 = dw_im2col(xp2_ref, C2)

    acc = jnp.zeros((TH * Wo, Cout), jnp.float32)
    for kh in range(3):
        rows = slice(kh * Wo, kh * Wo + TH * Wo)
        acc = acc + jnp.dot(im1[rows], w1_ref[kh],
                            preferred_element_type=jnp.float32)
        acc = acc + jnp.dot(im2[rows], w2_ref[kh],
                            preferred_element_type=jnp.float32)

    y = jnp.maximum(acc + shift_ref[...], 0.0)
    o_ref[...] = y.reshape(1, TH, Wo, Cout).astype(o_ref.dtype)


def _pick_row_tile(ho, wo, c_in_total, c_out, budget_bytes=8 * 1024 * 1024):
    """Largest row tile dividing `ho` whose working set fits a VMEM budget."""
    # per output row: double-buffered bf16 inputs + im2col temps (3x width)
    # + double-buffered f32 output rows.
    per_row = wo * (c_in_total * 2 * (2 + 3) + c_out * 4 * 2)
    th_max = int(max(1, min(ho, budget_bytes // max(per_row, 1))))
    divs = [d for d in range(1, ho + 1) if ho % d == 0 and d <= th_max]
    mult8 = [d for d in divs if d % 8 == 0]
    return max(mult8) if mult8 else max(divs)


def conv3x3_bn_relu_fused(s1_up, s2, w1, w2, shift, *, row_tile=None,
                          vmem_limit_bytes=32 * 1024 * 1024):
    """Fused concat([s1_up, s2]) -> Conv3x3(pad=1) -> BN(folded) -> ReLU.

    s1_up, s2: NHWC (N, Ho, Wo, C1/C2). Output: NHWC f32 (N, Ho, Wo, Cout).
    Wo is ideally a multiple of 8 (16 for bf16) and row_tile must divide Ho.
    """
    s1_up = s1_up.astype(jnp.bfloat16)
    s2 = s2.astype(jnp.bfloat16)
    n, ho, wo, c1 = s1_up.shape
    n2, ho2, wo2, c2 = s2.shape
    assert (n, ho, wo) == (n2, ho2, wo2), "s1_up / s2 batch or spatial mismatch"
    cout = w1.shape[-1]
    assert w1.shape == (3, 3 * c1, cout) and w2.shape == (3, 3 * c2, cout)

    th = row_tile if row_tile is not None else _pick_row_tile(ho, wo, c1 + c2, cout)
    assert ho % th == 0, f"row_tile {th} must divide output height {ho}"
    nt = ho // th

    def main_idx(nn, tt):
        return (nn, tt, 0, 0)

    def top_idx(nn, tt):                     # element row above the tile
        return (nn, jnp.maximum(tt * th - 1, 0), 0, 0)

    def bot_idx(nn, tt):                     # element row below the tile
        return (nn, jnp.minimum((tt + 1) * th, ho - 1), 0, 0)

    grid_spec = pltpu.PrefetchScalarGridSpec(
        num_scalar_prefetch=0,
        grid=(n, nt),
        in_specs=[
            pl.BlockSpec((1, th, wo, c1), main_idx),
            pl.BlockSpec((1, 1, wo, c1), top_idx),
            pl.BlockSpec((1, 1, wo, c1), bot_idx),
            pl.BlockSpec((1, th, wo, c2), main_idx),
            pl.BlockSpec((1, 1, wo, c2), top_idx),
            pl.BlockSpec((1, 1, wo, c2), bot_idx),
            pl.BlockSpec((3, 3 * c1, cout), lambda nn, tt: (0, 0, 0)),
            pl.BlockSpec((3, 3 * c2, cout), lambda nn, tt: (0, 0, 0)),
            pl.BlockSpec((1, cout), lambda nn, tt: (0, 0)),
        ],
        out_specs=pl.BlockSpec((1, th, wo, cout), main_idx),
        scratch_shapes=[
            pltpu.VMEM((th + 2, wo + 2, c1), jnp.bfloat16),
            pltpu.VMEM((th + 2, wo + 2, c2), jnp.bfloat16),
        ],
    )

    return pl.pallas_call(
        _conv3x3_bn_relu_kernel,
        out_shape=jax.ShapeDtypeStruct((n, ho, wo, cout), jnp.float32),
        grid_spec=grid_spec,
        compiler_params=pltpu.CompilerParams(
            dimension_semantics=("parallel", "parallel"),
            vmem_limit_bytes=vmem_limit_bytes),
    )(s1_up, s1_up, s1_up, s2, s2, s2, w1, w2, shift)


# --------------------------------------------------------------------------- #
# JAX glue
# --------------------------------------------------------------------------- #
def upsample_bilinear_2x_align_corners(x_nhwc):
    """Bilinear upsample by 2 with align_corners=True (matches nn.Upsample)."""
    n, h, w, c = x_nhwc.shape
    ho, wo = 2 * h, 2 * w

    def src(out_size, in_size):
        if out_size == 1 or in_size == 1:
            return (jnp.zeros((out_size,), jnp.int32),
                    jnp.zeros((out_size,), jnp.int32),
                    jnp.zeros((out_size,), jnp.float32))
        pos = jnp.arange(out_size, dtype=jnp.float32) * (in_size - 1) / (out_size - 1)
        lo = jnp.floor(pos).astype(jnp.int32)
        hi = jnp.minimum(lo + 1, in_size - 1)
        return lo, hi, pos - lo.astype(jnp.float32)

    y0, y1, wy = src(ho, h)
    x0, x1, wx = src(wo, w)
    wy = wy.reshape(1, ho, 1, 1)
    wx = wx.reshape(1, 1, wo, 1)

    rows0 = jnp.take(x_nhwc, y0, axis=1)
    rows1 = jnp.take(x_nhwc, y1, axis=1)
    v00 = jnp.take(rows0, x0, axis=2)
    v01 = jnp.take(rows0, x1, axis=2)
    v10 = jnp.take(rows1, x0, axis=2)
    v11 = jnp.take(rows1, x1, axis=2)
    return (v00 * (1 - wy) * (1 - wx) + v01 * (1 - wy) * wx +
            v10 * wy * (1 - wx) + v11 * wy * wx)


def up_forward(s1_nchw, s2_nchw, params, *, row_tile=None):
    """Forward pass of `up` (eval mode). Inputs/outputs NCHW like PyTorch."""
    s1 = jnp.transpose(s1_nchw, (0, 2, 3, 1)).astype(jnp.float32)
    s2 = jnp.transpose(s2_nchw, (0, 2, 3, 1))
    # TODO(synk): the bilinear 2x upsample is computed by XLA (one extra HBM
    # round trip); concat/pad/conv/BN/ReLU are all fused in the Pallas kernel.
    s1_up = upsample_bilinear_2x_align_corners(s1)
    y = conv3x3_bn_relu_fused(s1_up, s2, params["w1"], params["w2"],
                              params["shift"], row_tile=row_tile)
    return jnp.transpose(y, (0, 3, 1, 2))


def make_params(key, c1, c2, out_ch):
    """Deterministic synthetic parameters (conv + eval-mode BN, folded)."""
    in_ch = c1 + c2
    kw_, kb, kg, kbe, km, kv = jax.random.split(key, 6)
    w_oihw = jax.random.normal(kw_, (out_ch, in_ch, 3, 3), jnp.float32) * 0.1
    conv_b = jax.random.normal(kb, (out_ch,), jnp.float32) * 0.1
    gamma = 1.0 + 0.1 * jax.random.normal(kg, (out_ch,), jnp.float32)
    beta = 0.1 * jax.random.normal(kbe, (out_ch,), jnp.float32)
    run_mean = 0.1 * jax.random.normal(km, (out_ch,), jnp.float32)
    run_var = 1.0 + 0.1 * jax.random.uniform(kv, (out_ch,), jnp.float32)
    eps = 1e-5

    # y = scale * conv(x) + shift, with scale folded into the weights.
    scale = gamma / jnp.sqrt(run_var + eps)
    shift = (conv_b - run_mean) * scale + beta

    w_folded = w_oihw * scale[:, None, None, None]        # (O, I, 3, 3)
    w_khwio = jnp.transpose(w_folded, (2, 3, 1, 0))       # (kh, kw, I, O)
    w1 = w_khwio[:, :, :c1, :].reshape(3, 3 * c1, out_ch).astype(jnp.bfloat16)
    w2 = w_khwio[:, :, c1:, :].reshape(3, 3 * c2, out_ch).astype(jnp.bfloat16)

    return {
        "w1": w1, "w2": w2,
        "shift": shift.reshape(1, out_ch).astype(jnp.float32),
        # pieces for the pure-JAX references
        "w_hwio": jnp.transpose(w_oihw, (2, 3, 1, 0)),
        "conv_b": conv_b, "run_mean": run_mean, "scale": scale, "beta": beta,
        "c1": c1, "c2": c2, "out_ch": out_ch,
    }


# --------------------------------------------------------------------------- #
# References
# --------------------------------------------------------------------------- #
def _preprocess_bf16(s1_nchw, s2_nchw):
    s1 = jnp.transpose(s1_nchw, (0, 2, 3, 1)).astype(jnp.float32)
    s2 = jnp.transpose(s2_nchw, (0, 2, 3, 1))
    s1_up = upsample_bilinear_2x_align_corners(s1)
    return (s1_up.astype(jnp.bfloat16).astype(jnp.float32),
            s2.astype(jnp.bfloat16).astype(jnp.float32))


def reference_same_precision(s1_nchw, s2_nchw, params):
    """lax.conv reference using the SAME bf16-rounded operands as the kernel."""
    s1u, s2b = _preprocess_bf16(s1_nchw, s2_nchw)
    s = jnp.concatenate([s1u, s2b], axis=-1)
    c1, c2, cout = params["c1"], params["c2"], params["out_ch"]
    w1 = params["w1"].astype(jnp.float32).reshape(3, 3, c1, cout)
    w2 = params["w2"].astype(jnp.float32).reshape(3, 3, c2, cout)
    w = jnp.concatenate([w1, w2], axis=2)                 # (3, 3, Cin, Cout)
    conv = jax.lax.conv_general_dilated(
        s, w, (1, 1), "SAME", dimension_numbers=("NHWC", "HWIO", "NHWC"),
        precision=jax.lax.Precision.HIGHEST)
    y = jnp.maximum(conv + params["shift"][0], 0.0)
    return jnp.transpose(y, (0, 3, 1, 2))


def reference_module_f32(s1_nchw, s2_nchw, params):
    """Full-f32 reference of the PyTorch module (eval-mode BatchNorm)."""
    s1 = jnp.transpose(s1_nchw, (0, 2, 3, 1)).astype(jnp.float32)
    s2 = jnp.transpose(s2_nchw, (0, 2, 3, 1)).astype(jnp.float32)
    s = jnp.concatenate([upsample_bilinear_2x_align_corners(s1), s2], axis=-1)
    conv = jax.lax.conv_general_dilated(
        s, params["w_hwio"], (1, 1), "SAME",
        dimension_numbers=("NHWC", "HWIO", "NHWC"),
        precision=jax.lax.Precision.HIGHEST)
    z = conv + params["conv_b"]
    y = (z - params["run_mean"]) * params["scale"] + params["beta"]
    return jnp.transpose(jnp.maximum(y, 0.0), (0, 3, 1, 2))


if __name__ == "__main__":
    key = jax.random.PRNGKey(0)
    k1, k2, kp = jax.random.split(key, 3)

    # Decoder-stage shapes: s1 is the low-res feature map being upsampled,
    # s2 the same-resolution skip connection; in_ch = C1 + C2 = 256.
    n, c1, c2, h, w = 2, 128, 128, 8, 8
    out_ch = 128

    s1 = jax.random.normal(k1, (n, c1, h, w), jnp.float32)
    s2 = jax.random.normal(k2, (n, c2, 2 * h, 2 * w), jnp.float32)
    params = make_params(kp, c1, c2, out_ch)

    # row_tile=8 -> grid (batch=2, row_tiles=2): exercises the halo handling
    # and provides two parallel grid axes (v7x megacore).
    out = jax.block_until_ready(up_forward(s1, s2, params, row_tile=8))
    assert out.shape == (n, out_ch, 2 * h, 2 * w), out.shape

    # Tight check vs. a reference built from the same bf16-rounded operands.
    ref_bf16 = jax.block_until_ready(reference_same_precision(s1, s2, params))
    err = float(jnp.max(jnp.abs(out - ref_bf16)))
    assert jnp.allclose(out, ref_bf16, atol=1e-2, rtol=1e-2), err

    # Module-fidelity check vs. a pure-f32 reference (looser tolerance because
    # the kernel feeds the MXU bf16 operands with f32 accumulation).
    ref_f32 = jax.block_until_ready(reference_module_f32(s1, s2, params))
    err32 = float(jnp.max(jnp.abs(out - ref_f32)))
    assert jnp.allclose(out, ref_f32, atol=0.2, rtol=0.05), err32

    print("KERNEL_OK")
</pallas_src>

<mosaic_0001>
module attributes {stable_mosaic.version = 11 : i64} {
  func.func @_conv3x3_bn_relu_kernel(%arg0: i32, %arg1: i32, %arg2: memref<1x8x16x128xbf16, #tpu.memory_space<vmem>>, %arg3: memref<1x1x16x128xbf16, #tpu.memory_space<vmem>>, %arg4: memref<1x1x16x128xbf16, #tpu.memory_space<vmem>>, %arg5: memref<1x8x16x128xbf16, #tpu.memory_space<vmem>>, %arg6: memref<1x1x16x128xbf16, #tpu.memory_space<vmem>>, %arg7: memref<1x1x16x128xbf16, #tpu.memory_space<vmem>>, %arg8: memref<3x384x128xbf16, #tpu.memory_space<vmem>>, %arg9: memref<3x384x128xbf16, #tpu.memory_space<vmem>>, %arg10: memref<1x128xf32, #tpu.memory_space<vmem>>, %arg11: memref<1x8x16x128xf32, #tpu.memory_space<vmem>>, %arg12: memref<10x18x128xbf16, #tpu.memory_space<vmem>>, %arg13: memref<10x18x128xbf16, #tpu.memory_space<vmem>>) attributes {dimension_semantics = [#tpu.dimension_semantics<parallel>, #tpu.dimension_semantics<parallel>], iteration_bounds = array<i64: 2, 2>, scalar_prefetch = 0 : i64, scratch_operands = 2 : i64, tpu.core_type = #tpu.core_type<tc>, window_params = [{transform_indices = @transform_0, window_bounds = array<i64: 1, 8, 16, 128>}, {transform_indices = @transform_1, window_bounds = array<i64: 1, 1, 16, 128>}, {transform_indices = @transform_2, window_bounds = array<i64: 1, 1, 16, 128>}, {transform_indices = @transform_3, window_bounds = array<i64: 1, 8, 16, 128>}, {transform_indices = @transform_4, window_bounds = array<i64: 1, 1, 16, 128>}, {transform_indices = @transform_5, window_bounds = array<i64: 1, 1, 16, 128>}, {pipeline_mode = #tpu.pipeline_mode<synchronous>, transform_indices = @transform_6, window_bounds = array<i64: 3, 384, 128>}, {pipeline_mode = #tpu.pipeline_mode<synchronous>, transform_indices = @transform_7, window_bounds = array<i64: 3, 384, 128>}, {pipeline_mode = #tpu.pipeline_mode<synchronous>, transform_indices = @transform_8, window_bounds = array<i64: 1, 128>}, {transform_indices = @transform_9, window_bounds = array<i64: 1, 8, 16, 128>}]} {
    %c0_i32 = arith.constant 0 : i32
    %0 = arith.cmpi sgt, %arg1, %c0_i32 : i32
    %c1_i32 = arith.constant 1 : i32
    %1 = arith.cmpi slt, %arg1, %c1_i32 : i32
    %cst = arith.constant 0.000000e+00 : bf16
    %2 = vector.broadcast %cst : bf16 to vector<10x1x128xbf16>
    %c0 = arith.constant 0 : index
    %c0_0 = arith.constant 0 : index
    %c0_1 = arith.constant 0 : index
    %3 = vector.load %arg12[%c0, %c0_0, %c0_1] : memref<10x18x128xbf16, #tpu.memory_space<vmem>>, vector<10x1x128xbf16>
    tpu.vector_store %arg12[%c0, %c0_0, %c0_1], %2 {strides = array<i32>} : memref<10x18x128xbf16, #tpu.memory_space<vmem>>, vector<10x1x128xbf16>,
    %c0_2 = arith.constant 0 : index
    %c17 = arith.constant 17 : index
    %c0_3 = arith.constant 0 : index
    %4 = vector.load %arg12[%c0_2, %c17, %c0_3] : memref<10x18x128xbf16, #tpu.memory_space<vmem>>, vector<10x1x128xbf16>
    tpu.vector_store %arg12[%c0_2, %c17, %c0_3], %2 {strides = array<i32>} : memref<10x18x128xbf16, #tpu.memory_space<vmem>>, vector<10x1x128xbf16>,
    %c0_4 = arith.constant 0 : index
    %c0_5 = arith.constant 0 : index
    %c0_6 = arith.constant 0 : index
    %c0_7 = arith.constant 0 : index
    %5 = vector.load %arg3[%c0_4, %c0_5, %c0_6, %c0_7] : memref<1x1x16x128xbf16, #tpu.memory_space<vmem>>, vector<1x1x16x128xbf16>
    %6 = vector.shape_cast %5 : vector<1x1x16x128xbf16> to vector<1x16x128xbf16>
    %c0_8 = arith.constant 0 : index
    %c0_9 = arith.constant 0 : index
    %c0_10 = arith.constant 0 : index
    %c0_11 = arith.constant 0 : index
    %7 = vector.load %arg4[%c0_8, %c0_9, %c0_10, %c0_11] : memref<1x1x16x128xbf16, #tpu.memory_space<vmem>>, vector<1x1x16x128xbf16>
    %8 = vector.shape_cast %7 : vector<1x1x16x128xbf16> to vector<1x16x128xbf16>
    %cst_12 = arith.constant 0.000000e+00 : bf16
    %9 = vector.broadcast %cst_12 : bf16 to vector<1x16x128xbf16>
    %10 = arith.select %0, %6, %9 : vector<1x16x128xbf16>
    %cst_13 = arith.constant 0.000000e+00 : bf16
    %11 = vector.broadcast %cst_13 : bf16 to vector<1x16x128xbf16>
    %12 = arith.select %1, %8, %11 : vector<1x16x128xbf16>
    %c0_14 = arith.constant 0 : index
    %c1 = arith.constant 1 : index
    %c0_15 = arith.constant 0 : index
    %13 = vector.load %arg12[%c0_14, %c1, %c0_15] : memref<10x18x128xbf16, #tpu.memory_space<vmem>>, vector<1x16x128xbf16>
    tpu.vector_store %arg12[%c0_14, %c1, %c0_15], %10 {strides = array<i32>} : memref<10x18x128xbf16, #tpu.memory_space<vmem>>, vector<1x16x128xbf16>,
    %c0_16 = arith.constant 0 : index
    %c0_17 = arith.constant 0 : index
    %c0_18 = arith.constant 0 : index
    %c0_19 = arith.constant 0 : index
    %14 = vector.load %arg2[%c0_16, %c0_17, %c0_18, %c0_19] : memref<1x8x16x128xbf16, #tpu.memory_space<vmem>>, vector<1x8x16x128xbf16>
    %15 = vector.shape_cast %14 : vector<1x8x16x128xbf16> to vector<8x16x128xbf16>
    %c1_20 = arith.constant 1 : index
    %c1_21 = arith.constant 1 : index
    %c0_22 = arith.constant 0 : index
    %16 = vector.load %arg12[%c1_20, %c1_21, %c0_22] : memref<10x18x128xbf16, #tpu.memory_space<vmem>>, vector<8x16x128xbf16>
    tpu.vector_store %arg12[%c1_20, %c1_21, %c0_22], %15 {strides = array<i32>} : memref<10x18x128xbf16, #tpu.memory_space<vmem>>, vector<8x16x128xbf16>,
    %c9 = arith.constant 9 : index
    %c1_23 = arith.constant 1 : index
    %c0_24 = arith.constant 0 : index
    %17 = vector.load %arg12[%c9, %c1_23, %c0_24] : memref<10x18x128xbf16, #tpu.memory_space<vmem>>, vector<1x16x128xbf16>
    tpu.vector_store %arg12[%c9, %c1_23, %c0_24], %12 {strides = array<i32>} : memref<10x18x128xbf16, #tpu.memory_space<vmem>>, vector<1x16x128xbf16>,
    %cst_25 = arith.constant 0.000000e+00 : bf16
    %18 = vector.broadcast %cst_25 : bf16 to vector<10x1x128xbf16>
    %c0_26 = arith.constant 0 : index
    %c0_27 = arith.constant 0 : index
    %c0_28 = arith.constant 0 : index
    %19 = vector.load %arg13[%c0_26, %c0_27, %c0_28] : memref<10x18x128xbf16, #tpu.memory_space<vmem>>, vector<10x1x128xbf16>
    tpu.vector_store %arg13[%c0_26, %c0_27, %c0_28], %18 {strides = array<i32>} : memref<10x18x128xbf16, #tpu.memory_space<vmem>>, vector<10x1x128xbf16>,
    %c0_29 = arith.constant 0 : index
    %c17_30 = arith.constant 17 : index
    %c0_31 = arith.constant 0 : index
    %20 = vector.load %arg13[%c0_29, %c17_30, %c0_31] : memref<10x18x128xbf16, #tpu.memory_space<vmem>>, vector<10x1x128xbf16>
    tpu.vector_store %arg13[%c0_29, %c17_30, %c0_31], %18 {strides = array<i32>} : memref<10x18x128xbf16, #tpu.memory_space<vmem>>, vector<10x1x128xbf16>,
    %c0_32 = arith.constant 0 : index
    %c0_33 = arith.constant 0 : index
    %c0_34 = arith.constant 0 : index
    %c0_35 = arith.constant 0 : index
    %21 = vector.load %arg6[%c0_32, %c0_33, %c0_34, %c0_35] : memref<1x1x16x128xbf16, #tpu.memory_space<vmem>>, vector<1x1x16x128xbf16>
    %22 = vector.shape_cast %21 : vector<1x1x16x128xbf16> to vector<1x16x128xbf16>
    %c0_36 = arith.constant 0 : index
    %c0_37 = arith.constant 0 : index
    %c0_38 = arith.constant 0 : index
    %c0_39 = arith.constant 0 : index
    %23 = vector.load %arg7[%c0_36, %c0_37, %c0_38, %c0_39] : memref<1x1x16x128xbf16, #tpu.memory_space<vmem>>, vector<1x1x16x128xbf16>
    %24 = vector.shape_cast %23 : vector<1x1x16x128xbf16> to vector<1x16x128xbf16>
    %cst_40 = arith.constant 0.000000e+00 : bf16
    %25 = vector.broadcast %cst_40 : bf16 to vector<1x16x128xbf16>
    %26 = arith.select %0, %22, %25 : vector<1x16x128xbf16>
    %cst_41 = arith.constant 0.000000e+00 : bf16
    %27 = vector.broadcast %cst_41 : bf16 to vector<1x16x128xbf16>
    %28 = arith.select %1, %24, %27 : vector<1x16x128xbf16>
    %c0_42 = arith.constant 0 : index
    %c1_43 = arith.constant 1 : index
    %c0_44 = arith.constant 0 : index
    %29 = vector.load %arg13[%c0_42, %c1_43, %c0_44] : memref<10x18x128xbf16, #tpu.memory_space<vmem>>, vector<1x16x128xbf16>
    tpu.vector_store %arg13[%c0_42, %c1_43, %c0_44], %26 {strides = array<i32>} : memref<10x18x128xbf16, #tpu.memory_space<vmem>>, vector<1x16x128xbf16>,
    %c0_45 = arith.constant 0 : index
    %c0_46 = arith.constant 0 : index
    %c0_47 = arith.constant 0 : index
    %c0_48 = arith.constant 0 : index
    %30 = vector.load %arg5[%c0_45, %c0_46, %c0_47, %c0_48] : memref<1x8x16x128xbf16, #tpu.memory_space<vmem>>, vector<1x8x16x128xbf16>
    %31 = vector.shape_cast %30 : vector<1x8x16x128xbf16> to vector<8x16x128xbf16>
    %c1_49 = arith.constant 1 : index
    %c1_50 = arith.constant 1 : index
    %c0_51 = arith.constant 0 : index
    %32 = vector.load %arg13[%c1_49, %c1_50, %c0_51] : memref<10x18x128xbf16, #tpu.memory_space<vmem>>, vector<8x16x128xbf16>
    tpu.vector_store %arg13[%c1_49, %c1_50, %c0_51], %31 {strides = array<i32>} : memref<10x18x128xbf16, #tpu.memory_space<vmem>>, vector<8x16x128xbf16>,
    %c9_52 = arith.constant 9 : index
    %c1_53 = arith.constant 1 : index
    %c0_54 = arith.constant 0 : index
    %33 = vector.load %arg13[%c9_52, %c1_53, %c0_54] : memref<10x18x128xbf16, #tpu.memory_space<vmem>>, vector<1x16x128xbf16>
    tpu.vector_store %arg13[%c9_52, %c1_53, %c0_54], %28 {strides = array<i32>} : memref<10x18x128xbf16, #tpu.memory_space<vmem>>, vector<1x16x128xbf16>,
    %c0_55 = arith.constant 0 : index
    %c0_56 = arith.constant 0 : index
    %c0_57 = arith.constant 0 : index
    %34 = vector.load %arg12[%c0_55, %c0_56, %c0_57] : memref<10x18x128xbf16, #tpu.memory_space<vmem>>, vector<10x16x128xbf16>
    %c0_58 = arith.constant 0 : index
    %c1_59 = arith.constant 1 : index
    %c0_60 = arith.constant 0 : index
    %35 = vector.load %arg12[%c0_58, %c1_59, %c0_60] : memref<10x18x128xbf16, #tpu.memory_space<vmem>>, vector<10x16x128xbf16>
    %c0_61 = arith.constant 0 : index
    %c2 = arith.constant 2 : index
    %c0_62 = arith.constant 0 : index
    %36 = vector.load %arg12[%c0_61, %c2, %c0_62] : memref<10x18x128xbf16, #tpu.memory_space<vmem>>, vector<10x16x128xbf16>
    %37 = tpu.concatenate %34, %35, %36 in 2 : vector<10x16x128xbf16>, vector<10x16x128xbf16>, vector<10x16x128xbf16> -> vector<10x16x384xbf16>
    %38 = vector.shape_cast %37 : vector<10x16x384xbf16> to vector<160x384xbf16>
    %c0_63 = arith.constant 0 : index
    %c0_64 = arith.constant 0 : index
    %c0_65 = arith.constant 0 : index
    %39 = vector.load %arg13[%c0_63, %c0_64, %c0_65] : memref<10x18x128xbf16, #tpu.memory_space<vmem>>, vector<10x16x128xbf16>
    %c0_66 = arith.constant 0 : index
    %c1_67 = arith.constant 1 : index
    %c0_68 = arith.constant 0 : index
    %40 = vector.load %arg13[%c0_66, %c1_67, %c0_68] : memref<10x18x128xbf16, #tpu.memory_space<vmem>>, vector<10x16x128xbf16>
    %c0_69 = arith.constant 0 : index
    %c2_70 = arith.constant 2 : index
    %c0_71 = arith.constant 0 : index
    %41 = vector.load %arg13[%c0_69, %c2_70, %c0_71] : memref<10x18x128xbf16, #tpu.memory_space<vmem>>, vector<10x16x128xbf16>
    %42 = tpu.concatenate %39, %40, %41 in 2 : vector<10x16x128xbf16>, vector<10x16x128xbf16>, vector<10x16x128xbf16> -> vector<10x16x384xbf16>
    %43 = vector.shape_cast %42 : vector<10x16x384xbf16> to vector<160x384xbf16>
    %cst_72 = arith.constant 0.000000e+00 : f32
    %44 = vector.broadcast %cst_72 : f32 to vector<128x128xf32>
    %45 = vector.extract_strided_slice %38 {offsets = [0, 0], sizes = [128, 384], strides = [1, 1]} : vector<160x384xbf16> to vector<128x384xbf16>
    %c0_73 = arith.constant 0 : index
    %c0_74 = arith.constant 0 : index
    %c0_75 = arith.constant 0 : index
    %46 = vector.load %arg8[%c0_73, %c0_74, %c0_75] : memref<3x384x128xbf16, #tpu.memory_space<vmem>>, vector<1x384x128xbf16>
    %47 = vector.shape_cast %46 : vector<1x384x128xbf16> to vector<384x128xbf16>
    %cst_76 = arith.constant dense<0.000000e+00> : vector<128x128xf32>
    %48 = tpu.matmul %45, %47, %cst_76 {dimension_numbers = #tpu.dot_dimension_numbers<[1], [0], [0], [1], [0, 0, 1, 1], [], []>} : vector<128x384xbf16>, vector<384x128xbf16>, vector<128x128xf32> -> vector<128x128xf32>
    %49 = arith.addf %44, %48 : vector<128x128xf32>
    %50 = vector.extract_strided_slice %43 {offsets = [0, 0], sizes = [128, 384], strides = [1, 1]} : vector<160x384xbf16> to vector<128x384xbf16>
    %c0_77 = arith.constant 0 : index
    %c0_78 = arith.constant 0 : index
    %c0_79 = arith.constant 0 : index
    %51 = vector.load %arg9[%c0_77, %c0_78, %c0_79] : memref<3x384x128xbf16, #tpu.memory_space<vmem>>, vector<1x384x128xbf16>
    %52 = vector.shape_cast %51 : vector<1x384x128xbf16> to vector<384x128xbf16>
    %cst_80 = arith.constant dense<0.000000e+00> : vector<128x128xf32>
    %53 = tpu.matmul %50, %52, %cst_80 {dimension_numbers = #tpu.dot_dimension_numbers<[1], [0], [0], [1], [0, 0, 1, 1], [], []>} : vector<128x384xbf16>, vector<384x128xbf16>, vector<128x128xf32> -> vector<128x128xf32>
    %54 = arith.addf %49, %53 : vector<128x128xf32>
    %55 = vector.extract_strided_slice %38 {offsets = [16, 0], sizes = [128, 384], strides = [1, 1]} : vector<160x384xbf16> to vector<128x384xbf16>
    %c1_81 = arith.constant 1 : index
    %c0_82 = arith.constant 0 : index
    %c0_83 = arith.constant 0 : index
    %56 = vector.load %arg8[%c1_81, %c0_82, %c0_83] : memref<3x384x128xbf16, #tpu.memory_space<vmem>>, vector<1x384x128xbf16>
    %57 = vector.shape_cast %56 : vector<1x384x128xbf16> to vector<384x128xbf16>
    %cst_84 = arith.constant dense<0.000000e+00> : vector<128x128xf32>
    %58 = tpu.matmul %55, %57, %cst_84 {dimension_numbers = #tpu.dot_dimension_numbers<[1], [0], [0], [1], [0, 0, 1, 1], [], []>} : vector<128x384xbf16>, vector<384x128xbf16>, vector<128x128xf32> -> vector<128x128xf32>
    %59 = arith.addf %54, %58 : vector<128x128xf32>
    %60 = vector.extract_strided_slice %43 {offsets = [16, 0], sizes = [128, 384], strides = [1, 1]} : vector<160x384xbf16> to vector<128x384xbf16>
    %c1_85 = arith.constant 1 : index
    %c0_86 = arith.constant 0 : index
    %c0_87 = arith.constant 0 : index
    %61 = vector.load %arg9[%c1_85, %c0_86, %c0_87] : memref<3x384x128xbf16, #tpu.memory_space<vmem>>, vector<1x384x128xbf16>
    %62 = vector.shape_cast %61 : vector<1x384x128xbf16> to vector<384x128xbf16>
    %cst_88 = arith.constant dense<0.000000e+00> : vector<128x128xf32>
    %63 = tpu.matmul %60, %62, %cst_88 {dimension_numbers = #tpu.dot_dimension_numbers<[1], [0], [0], [1], [0, 0, 1, 1], [], []>} : vector<128x384xbf16>, vector<384x128xbf16>, vector<128x128xf32> -> vector<128x128xf32>
    %64 = arith.addf %59, %63 : vector<128x128xf32>
    %65 = vector.extract_strided_slice %38 {offsets = [32, 0], sizes = [128, 384], strides = [1, 1]} : vector<160x384xbf16> to vector<128x384xbf16>
    %c2_89 = arith.constant 2 : index
    %c0_90 = arith.constant 0 : index
    %c0_91 = arith.constant 0 : index
    %66 = vector.load %arg8[%c2_89, %c0_90, %c0_91] : memref<3x384x128xbf16, #tpu.memory_space<vmem>>, vector<1x384x128xbf16>
    %67 = vector.shape_cast %66 : vector<1x384x128xbf16> to vector<384x128xbf16>
    %cst_92 = arith.constant dense<0.000000e+00> : vector<128x128xf32>
    %68 = tpu.matmul %65, %67, %cst_92 {dimension_numbers = #tpu.dot_dimension_numbers<[1], [0], [0], [1], [0, 0, 1, 1], [], []>} : vector<128x384xbf16>, vector<384x128xbf16>, vector<128x128xf32> -> vector<128x128xf32>
    %69 = arith.addf %64, %68 : vector<128x128xf32>
    %70 = vector.extract_strided_slice %43 {offsets = [32, 0], sizes = [128, 384], strides = [1, 1]} : vector<160x384xbf16> to vector<128x384xbf16>
    %c2_93 = arith.constant 2 : index
    %c0_94 = arith.constant 0 : index
    %c0_95 = arith.constant 0 : index
    %71 = vector.load %arg9[%c2_93, %c0_94, %c0_95] : memref<3x384x128xbf16, #tpu.memory_space<vmem>>, vector<1x384x128xbf16>
    %72 = vector.shape_cast %71 : vector<1x384x128xbf16> to vector<384x128xbf16>
    %cst_96 = arith.constant dense<0.000000e+00> : vector<128x128xf32>
    %73 = tpu.matmul %70, %72, %cst_96 {dimension_numbers = #tpu.dot_dimension_numbers<[1], [0], [0], [1], [0, 0, 1, 1], [], []>} : vector<128x384xbf16>, vector<384x128xbf16>, vector<128x128xf32> -> vector<128x128xf32>
    %74 = arith.addf %69, %73 : vector<128x128xf32>
    %c0_97 = arith.constant 0 : index
    %c0_98 = arith.constant 0 : index
    %75 = vector.load %arg10[%c0_97, %c0_98] : memref<1x128xf32, #tpu.memory_space<vmem>>, vector<1x128xf32>
    %76 = vector.broadcast %75 : vector<1x128xf32> to vector<128x128xf32>
    %77 = arith.addf %74, %76 : vector<128x128xf32>
    %cst_99 = arith.constant 0.000000e+00 : f32
    %78 = vector.broadcast %cst_99 : f32 to vector<128x128xf32>
    %79 = arith.maximumf %77, %78 : vector<128x128xf32>
    %80 = vector.shape_cast %79 : vector<128x128xf32> to vector<1x8x16x128xf32>
    %c0_100 = arith.constant 0 : index
    %c0_101 = arith.constant 0 : index
    %c0_102 = arith.constant 0 : index
    %c0_103 = arith.constant 0 : index
    %81 = vector.load %arg11[%c0_100, %c0_101, %c0_102, %c0_103] : memref<1x8x16x128xf32, #tpu.memory_space<vmem>>, vector<1x8x16x128xf32>
    tpu.vector_store %arg11[%c0_100, %c0_101, %c0_102, %c0_103], %80 {strides = array<i32>} : memref<1x8x16x128xf32, #tpu.memory_space<vmem>>, vector<1x8x16x128xf32>,
    return
  }
  func.func @transform_0(%arg0: i32, %arg1: i32) -> (i32, i32, i32, i32) {
    %c0_i32 = arith.constant 0 : i32
    %c0_i32_0 = arith.constant 0 : i32
    %c0_i32_1 = arith.constant 0 : i32
    return %arg0, %arg1, %c0_i32, %c0_i32_0 : i32, i32, i32, i32
  }
  func.func @transform_1(%arg0: i32, %arg1: i32) -> (i32, i32, i32, i32) {
    %c8_i32 = arith.constant 8 : i32
    %0 = arith.muli %arg1, %c8_i32 : i32
    %c1_i32 = arith.constant 1 : i32
    %1 = arith.subi %0, %c1_i32 : i32
    %c0_i32 = arith.constant 0 : i32
    %2 = arith.maxsi %1, %c0_i32 : i32
    %c0_i32_0 = arith.constant 0 : i32
    %c0_i32_1 = arith.constant 0 : i32
    %c0_i32_2 = arith.constant 0 : i32
    return %arg0, %2, %c0_i32_0, %c0_i32_1 : i32, i32, i32, i32
  }
  func.func @transform_2(%arg0: i32, %arg1: i32) -> (i32, i32, i32, i32) {
    %c1_i32 = arith.constant 1 : i32
    %0 = arith.addi %arg1, %c1_i32 : i32
    %c8_i32 = arith.constant 8 : i32
    %1 = arith.muli %0, %c8_i32 : i32
    %c15_i32 = arith.constant 15 : i32
    %2 = arith.minsi %1, %c15_i32 : i32
    %c0_i32 = arith.constant 0 : i32
    %c0_i32_0 = arith.constant 0 : i32
    %c0_i32_1 = arith.constant 0 : i32
    return %arg0, %2, %c0_i32, %c0_i32_0 : i32, i32, i32, i32
  }
  func.func @transform_3(%arg0: i32, %arg1: i32) -> (i32, i32, i32, i32) {
    %c0_i32 = arith.constant 0 : i32
    %c0_i32_0 = arith.constant 0 : i32
    %c0_i32_1 = arith.constant 0 : i32
    return %arg0, %arg1, %c0_i32, %c0_i32_0 : i32, i32, i32, i32
  }
  func.func @transform_4(%arg0: i32, %arg1: i32) -> (i32, i32, i32, i32) {
    %c8_i32 = arith.constant 8 : i32
    %0 = arith.muli %arg1, %c8_i32 : i32
    %c1_i32 = arith.constant 1 : i32
    %1 = arith.subi %0, %c1_i32 : i32
    %c0_i32 = arith.constant 0 : i32
    %2 = arith.maxsi %1, %c0_i32 : i32
    %c0_i32_0 = arith.constant 0 : i32
    %c0_i32_1 = arith.constant 0 : i32
    %c0_i32_2 = arith.constant 0 : i32
    return %arg0, %2, %c0_i32_0, %c0_i32_1 : i32, i32, i32, i32
  }
  func.func @transform_5(%arg0: i32, %arg1: i32) -> (i32, i32, i32, i32) {
    %c1_i32 = arith.constant 1 : i32
    %0 = arith.addi %arg1, %c1_i32 : i32
    %c8_i32 = arith.constant 8 : i32
    %1 = arith.muli %0, %c8_i32 : i32
    %c15_i32 = arith.constant 15 : i32
    %2 = arith.minsi %1, %c15_i32 : i32
    %c0_i32 = arith.constant 0 : i32
    %c0_i32_0 = arith.constant 0 : i32
    %c0_i32_1 = arith.constant 0 : i32
    return %arg0, %2, %c0_i32, %c0_i32_0 : i32, i32, i32, i32
  }
  func.func @transform_6(%arg0: i32, %arg1: i32) -> (i32, i32, i32) {
    %c0_i32 = arith.constant 0 : i32
    %c0_i32_0 = arith.constant 0 : i32
    %c0_i32_1 = arith.constant 0 : i32
    %c0_i32_2 = arith.constant 0 : i32
    return %c0_i32, %c0_i32_0, %c0_i32_1 : i32, i32, i32
  }
  func.func @transform_7(%arg0: i32, %arg1: i32) -> (i32, i32, i32) {
    %c0_i32 = arith.constant 0 : i32
    %c0_i32_0 = arith.constant 0 : i32
    %c0_i32_1 = arith.constant 0 : i32
    %c0_i32_2 = arith.constant 0 : i32
    return %c0_i32, %c0_i32_0, %c0_i32_1 : i32, i32, i32
  }
  func.func @transform_8(%arg0: i32, %arg1: i32) -> (i32, i32) {
    %c0_i32 = arith.constant 0 : i32
    %c0_i32_0 = arith.constant 0 : i32
    %c0_i32_1 = arith.constant 0 : i32
    return %c0_i32, %c0_i32_0 : i32, i32
  }
  func.func @transform_9(%arg0: i32, %arg1: i32) -> (i32, i32, i32, i32) {
    %c0_i32 = arith.constant 0 : i32
    %c0_i32_0 = arith.constant 0 : i32
    %c0_i32_1 = arith.constant 0 : i32
    return %arg0, %arg1, %c0_i32, %c0_i32_0 : i32, i32, i32, i32
  }
}

</mosaic_0001>

<llo_original>
// kernel: tpu_custom_call.1
$region0: #{tpu_custom_call.1}
  #allocation0 [shape = 'u32[]', space=smem, size = 0x4, offset = 0x4, fixed_abs, tag = 'smem constant byte address 0x4 - core index']
  #allocation1 [shape = 'u32[144,128]{1,0:T(1,128)}', space=vmem, size = 0x12000, scoped, tag = 'internal scratch']
  #allocation2 [shape = 'bf16[10,18,128]{2,1,0:T(8,128)(2,1)}', space=vmem, size = 0xf000, scoped, tag = 'scratch operand']
  #allocation3 [shape = 'bf16[10,18,128]{2,1,0:T(8,128)(2,1)}', space=vmem, size = 0xf000, scoped, tag = 'scratch operand']
  %s0 = inlined_call_operand.hbm [shape: bf16[2,16,16,128], index: 0, kind: input, shape index: {}]
  %s1 = inlined_call_operand.hbm [shape: bf16[2,16,16,128], index: 1, kind: input, shape index: {}]
  %s2 = inlined_call_operand.hbm [shape: bf16[2,16,16,128], index: 2, kind: input, shape index: {}]
  %s3 = inlined_call_operand.hbm [shape: bf16[2,16,16,128], index: 3, kind: input, shape index: {}]
  %s4 = inlined_call_operand.hbm [shape: bf16[2,16,16,128], index: 4, kind: input, shape index: {}]
  %s5 = inlined_call_operand.hbm [shape: bf16[2,16,16,128], index: 5, kind: input, shape index: {}]
  %s6 = inlined_call_operand.hbm [shape: bf16[3,384,128], index: 6, kind: input, shape index: {}]
  %s7 = inlined_call_operand.hbm [shape: bf16[3,384,128], index: 7, kind: input, shape index: {}]
  %s8 = inlined_call_operand.vmem [shape: f32[1,128], index: 8, kind: input, shape index: {}]
  %s9 = inlined_call_operand.hbm [shape: f32[2,16,16,128], index: 9, kind: output, shape index: {}]
  %s10 = sld [smem:[#allocation0]]
  $region101: #{tpu_custom_call.1} parent=0
    _
  %s12 = ssub.s32 1, %s10
  %s13 = scalar_select 0, %s12, %s10
  $region1: #{tpu_custom_call.1} parent=0
    #allocation4 [shape = 'u8[65536]{0}', space=vmem, size = 0x10000, scoped, tag = 'input window, operand 0']
    #allocation5 [shape = 's32[2]{0}', space=sflag, size = 0x8, scoped, tag = 'scoped memory for tpu_custom_call.1']
    #allocation6 [shape = 's32[2]{0}', space=sflag, size = 0x8, scoped, tag = 'scoped memory for tpu_custom_call.1']
    #allocation7 [shape = 'u8[8192]{0}', space=vmem, size = 0x2000, scoped, tag = 'input window, operand 1']
    #allocation8 [shape = 's32[2]{0}', space=sflag, size = 0x8, scoped, tag = 'scoped memory for tpu_custom_call.1']
    #allocation9 [shape = 'u8[8192]{0}', space=vmem, size = 0x2000, scoped, tag = 'input window, operand 2']
    #allocation10 [shape = 'u8[65536]{0}', space=vmem, size = 0x10000, scoped, tag = 'input window, operand 3']
    #allocation11 [shape = 's32[2]{0}', space=sflag, size = 0x8, scoped, tag = 'scoped memory for tpu_custom_call.1']
    #allocation12 [shape = 'u8[8192]{0}', space=vmem, size = 0x2000, scoped, tag = 'input window, operand 4']
    #allocation13 [shape = 'u8[8192]{0}', space=vmem, size = 0x2000, scoped, tag = 'input window, operand 5']
    #allocation14 [shape = 's32[2]{0}', space=sflag, size = 0x8, scoped, tag = 'scoped memory for tpu_custom_call.1']
    #allocation15 [shape = 'u8[294912]{0}', space=vmem, size = 0x48000, scoped, tag = 'input window, operand 6, single buffered']
    #allocation16 [shape = 'u8[294912]{0}', space=vmem, size = 0x48000, scoped, tag = 'input window, operand 7, single buffered']
    #allocation17 [shape = 's32[1]{0}', space=sflag, size = 0x4, scoped, tag = 'scoped memory for tpu_custom_call.1']
    #allocation18 [shape = 'u8[131072]{0}', space=vmem, size = 0x20000, scoped, tag = 'output window, operand 0']
    %14 = vsyncpa [#allocation5], 0
    %s15 = scalar_lea.sflag [#allocation5], 1
    %16 = vsyncpa %s15, 0
    %17 = vsyncpa [#allocation8], 0
    %s18 = scalar_lea.sflag [#allocation8], 1
    %19 = vsyncpa %s18, 0
    %20 = vsyncpa [#allocation11], 0
    %s21 = scalar_lea.sflag [#allocation11], 1
    %22 = vsyncpa %s21, 0
    %23 = vsyncpa [#allocation14], 0
    %s24 = scalar_lea.sflag [#allocation14], 1
    %25 = vsyncpa %s24, 0
    %26 = vsyncpa [#allocation17], 0
    %27 = vsyncpa [#allocation6], 0
    %s28 = scalar_lea.sflag [#allocation6], 1
    %29 = vsyncpa %s28, 0
    loop: start=0, step=1, limit=6
    $region2: #{tpu_custom_call.1} parent=1 // loop_pre_header
      _
    $region3: #{tpu_custom_call.1} parent=1 // loop_header
      %s31 = sphi 0, %s35
      %p32 = scmp.ge.s32.totalorder %s31, 6
      %s38 = sphi 0, %s50
      %s39 = sphi 0, %s46
      %s40 = sphi 0, %s38
      %s41 = sphi 0, %s39
      %s42 = sphi 0, %s40
      %s43 = sphi 0, %s41
      %s55 = sphi 0, %s57
      %s58 = sphi 0, %s55
      %s59 = sphi 0, %s58
      %s75 = sphi 0, %s59
      %s91 = sphi 0, %s93
      %s94 = sphi 0, %s91
      %s95 = sphi 0, %s94
      %s111 = sphi 0, %s95
      %s127 = sphi 0, %s129
      %s130 = sphi 0, %s127
      %s131 = sphi 0, %s130
      %s147 = sphi 0, %s131
      %s155 = sphi 0, %s157
      %s158 = sphi 0, %s155
      %s159 = sphi 0, %s158
      %s175 = sphi 0, %s159
      %s191 = sphi 0, %s193
      %s194 = sphi 0, %s191
      %s195 = sphi 0, %s194
      %s211 = sphi 0, %s195
      %s227 = sphi 0, %s229
      %s230 = sphi 0, %s227
      %s231 = sphi 0, %s230
      %s247 = sphi 0, %s231
      %s251 = sphi 0, %s251
      %s253 = sphi 0, %s251
      %s254 = sphi 0, %s253
      %s268 = sphi 0, %s254
      %s272 = sphi 0, %s272
      %s274 = sphi 0, %s272
      %s275 = sphi 0, %s274
      %s289 = sphi 0, %s275
      %s293 = sphi 0, %s293
      %s295 = sphi 0, %s293
      %s296 = sphi 0, %s295
      %s310 = sphi 0, %s296
      %s318 = sphi 0, %s320
      %s321 = sphi 0, %s318
      %s322 = sphi 0, %s321
      %s338 = sphi 0, %s322
    $region4: #{tpu_custom_call.1} parent=1 // loop_header_branch
      %34 = sbr.rel (%p32) target = $region8
    $region5: #{tpu_custom_call.1} parent=1 // loop_body
      %s36 = ssub.s32 %s31, 1
      %s37 = ssub.s32 %s31, 2
      %s44 = sadd.s32 1, %s39
      %p45 = scmp.ge.s32.totalorder %s44, 2
      %s46 = scalar_select %p45, 0, %s44
      %s47 = sadd.s32 1, %s38
      %s48 = scalar_select %p45, %s47, %s38
      %p49 = scmp.ge.s32.totalorder %s48, 2
      %s50 = scalar_select %p49, 0, %s48
      %s51 = ssub.s32 %s38, %s50
      %s52 = ssub.s32 %s39, %s46
      %s53 = sor.u32 %s51, %s52
      %p54 = scmp.eq.s32.totalorder %s53, 0
      %s56 = sadd.s32 %s55, 1
      %s57 = scalar_select %p54, %s55, %s56
      %p60 = pneg %p54
      %p61 = scmp.eq.s32.totalorder %s31, 3
      %p62 = por %p60, %p61
      %p63 = scmp.ne.s32.totalorder %s55, %s58
      %p64 = scmp.eq.s32.totalorder %s31, 0
      %p65 = por %p63, %p64
      %p66 = scmp.ne.s32.totalorder %s55, %s58
      %p67 = scmp.eq.s32.totalorder %s36, 3
      %p68 = por %p66, %p67
      %p69 = scmp.ne.s32.totalorder %s58, %s59
      %p70 = scmp.eq.s32.totalorder %s36, 0
      %p71 = por %p69, %p70
      %p72 = scmp.ne.s32.totalorder %s58, %s59
      %p73 = scmp.eq.s32.totalorder %s37, 3
      %p74 = por %p72, %p73
      %p76 = scmp.ne.s32.totalorder %s59, %s75
      %p77 = scmp.eq.s32.totalorder %s37, 0
      %p78 = por %p76, %p77
      %s79 = smul.u32 %s39, 8
      %s80 = ssub.s32 %s79, 1
      %p81 = scmp.gt.s32.totalorder %s80, 0
      %s82 = scalar_select %p81, %s80, 0
      %s83 = smul.u32 %s46, 8
      %s84 = ssub.s32 %s83, 1
      %p85 = scmp.gt.s32.totalorder %s84, 0
      %s86 = scalar_select %p85, %s84, 0
      %s87 = ssub.s32 %s38, %s50
      %s88 = ssub.s32 %s82, %s86
      %s89 = sor.u32 %s87, %s88
      %p90 = scmp.eq.s32.totalorder %s89, 0
      %s92 = sadd.s32 %s91, 1
      %s93 = scalar_select %p90, %s91, %s92
      %p96 = pneg %p90
      %p97 = scmp.eq.s32.totalorder %s31, 3
      %p98 = por %p96, %p97
      %p99 = scmp.ne.s32.totalorder %s91, %s94
      %p100 = scmp.eq.s32.totalorder %s31, 0
      %p101 = por %p99, %p100
      %p102 = scmp.ne.s32.totalorder %s91, %s94
      %p103 = scmp.eq.s32.totalorder %s36, 3
      %p104 = por %p102, %p103
      %p105 = scmp.ne.s32.totalorder %s94, %s95
      %p106 = scmp.eq.s32.totalorder %s36, 0
      %p107 = por %p105, %p106
      %p108 = scmp.ne.s32.totalorder %s94, %s95
      %p109 = scmp.eq.s32.totalorder %s37, 3
      %p110 = por %p108, %p109
      %p112 = scmp.ne.s32.totalorder %s95, %s111
      %p113 = scmp.eq.s32.totalorder %s37, 0
      %p114 = por %p112, %p113
      %s115 = sadd.s32 %s39, 1
      %s116 = smul.u32 %s115, 8
      %p117 = scmp.lt.s32.totalorder %s116, 15
      %s118 = scalar_select %p117, %s116, 15
      %s119 = sadd.s32 %s46, 1
      %s120 = smul.u32 %s119, 8
      %p121 = scmp.lt.s32.totalorder %s120, 15
      %s122 = scalar_select %p121, %s120, 15
      %s123 = ssub.s32 %s38, %s50
      %s124 = ssub.s32 %s118, %s122
      %s125 = sor.u32 %s123, %s124
      %p126 = scmp.eq.s32.totalorder %s125, 0
      %s128 = sadd.s32 %s127, 1
      %s129 = scalar_select %p126, %s127, %s128
      %p132 = pneg %p126
      %p133 = scmp.eq.s32.totalorder %s31, 3
      %p134 = por %p132, %p133
      %p135 = scmp.ne.s32.totalorder %s127, %s130
      %p136 = scmp.eq.s32.totalorder %s31, 0
      %p137 = por %p135, %p136
      %p138 = scmp.ne.s32.totalorder %s127, %s130
      %p139 = scmp.eq.s32.totalorder %s36, 3
      %p140 = por %p138, %p139
      %p141 = scmp.ne.s32.totalorder %s130, %s131
      %p142 = scmp.eq.s32.totalorder %s36, 0
      %p143 = por %p141, %p142
      %p144 = scmp.ne.s32.totalorder %s130, %s131
      %p145 = scmp.eq.s32.totalorder %s37, 3
      %p146 = por %p144, %p145
      %p148 = scmp.ne.s32.totalorder %s131, %s147
      %p149 = scmp.eq.s32.totalorder %s37, 0
      %p150 = por %p148, %p149
      %s151 = ssub.s32 %s38, %s50
      %s152 = ssub.s32 %s39, %s46
      %s153 = sor.u32 %s151, %s152
      %p154 = scmp.eq.s32.totalorder %s153, 0
      %s156 = sadd.s32 %s155, 1
      %s157 = scalar_select %p154, %s155, %s156
      %p160 = pneg %p154
      %p161 = scmp.eq.s32.totalorder %s31, 3
      %p162 = por %p160, %p161
      %p163 = scmp.ne.s32.totalorder %s155, %s158
      %p164 = scmp.eq.s32.totalorder %s31, 0
      %p165 = por %p163, %p164
      %p166 = scmp.ne.s32.totalorder %s155, %s158
      %p167 = scmp.eq.s32.totalorder %s36, 3
      %p168 = por %p166, %p167
      %p169 = scmp.ne.s32.totalorder %s158, %s159
      %p170 = scmp.eq.s32.totalorder %s36, 0
      %p171 = por %p169, %p170
      %p172 = scmp.ne.s32.totalorder %s158, %s159
      %p173 = scmp.eq.s32.totalorder %s37, 3
      %p174 = por %p172, %p173
      %p176 = scmp.ne.s32.totalorder %s159, %s175
      %p177 = scmp.eq.s32.totalorder %s37, 0
      %p178 = por %p176, %p177
      %s179 = smul.u32 %s39, 8
      %s180 = ssub.s32 %s179, 1
      %p181 = scmp.gt.s32.totalorder %s180, 0
      %s182 = scalar_select %p181, %s180, 0
      %s183 = smul.u32 %s46, 8
      %s184 = ssub.s32 %s183, 1
      %p185 = scmp.gt.s32.totalorder %s184, 0
      %s186 = scalar_select %p185, %s184, 0
      %s187 = ssub.s32 %s38, %s50
      %s188 = ssub.s32 %s182, %s186
      %s189 = sor.u32 %s187, %s188
      %p190 = scmp.eq.s32.totalorder %s189, 0
      %s192 = sadd.s32 %s191, 1
      %s193 = scalar_select %p190, %s191, %s192
      %p196 = pneg %p190
      %p197 = scmp.eq.s32.totalorder %s31, 3
      %p198 = por %p196, %p197
      %p199 = scmp.ne.s32.totalorder %s191, %s194
      %p200 = scmp.eq.s32.totalorder %s31, 0
      %p201 = por %p199, %p200
      %p202 = scmp.ne.s32.totalorder %s191, %s194
      %p203 = scmp.eq.s32.totalorder %s36, 3
      %p204 = por %p202, %p203
      %p205 = scmp.ne.s32.totalorder %s194, %s195
      %p206 = scmp.eq.s32.totalorder %s36, 0
      %p207 = por %p205, %p206
      %p208 = scmp.ne.s32.totalorder %s194, %s195
      %p209 = scmp.eq.s32.totalorder %s37, 3
      %p210 = por %p208, %p209
      %p212 = scmp.ne.s32.totalorder %s195, %s211
      %p213 = scmp.eq.s32.totalorder %s37, 0
      %p214 = por %p212, %p213
      %s215 = sadd.s32 %s39, 1
      %s216 = smul.u32 %s215, 8
      %p217 = scmp.lt.s32.totalorder %s216, 15
      %s218 = scalar_select %p217, %s216, 15
      %s219 = sadd.s32 %s46, 1
      %s220 = smul.u32 %s219, 8
      %p221 = scmp.lt.s32.totalorder %s220, 15
      %s222 = scalar_select %p221, %s220, 15
      %s223 = ssub.s32 %s38, %s50
      %s224 = ssub.s32 %s218, %s222
      %s225 = sor.u32 %s223, %s224
      %p226 = scmp.eq.s32.totalorder %s225, 0
      %s228 = sadd.s32 %s227, 1
      %s229 = scalar_select %p226, %s227, %s228
      %p232 = pneg %p226
      %p233 = scmp.eq.s32.totalorder %s31, 3
      %p234 = por %p232, %p233
      %p235 = scmp.ne.s32.totalorder %s227, %s230
      %p236 = scmp.eq.s32.totalorder %s31, 0
      %p237 = por %p235, %p236
      %p238 = scmp.ne.s32.totalorder %s227, %s230
      %p239 = scmp.eq.s32.totalorder %s36, 3
      %p240 = por %p238, %p239
      %p241 = scmp.ne.s32.totalorder %s230, %s231
      %p242 = scmp.eq.s32.totalorder %s36, 0
      %p243 = por %p241, %p242
      %p244 = scmp.ne.s32.totalorder %s230, %s231
      %p245 = scmp.eq.s32.totalorder %s37, 3
      %p246 = por %p244, %p245
      %p248 = scmp.ne.s32.totalorder %s231, %s247
      %p249 = scmp.eq.s32.totalorder %s37, 0
      %p250 = por %p248, %p249
      %s252 = sadd.s32 %s251, 1
      %p255 = scmp.eq.s32.totalorder %s31, 3
      %p256 = scmp.ne.s32.totalorder %s251, %s253
      %p257 = scmp.eq.s32.totalorder %s31, 0
      %p258 = por %p256, %p257
      %p259 = scmp.ne.s32.totalorder %s251, %s253
      %p260 = scmp.eq.s32.totalorder %s36, 3
      %p261 = por %p259, %p260
      %p262 = scmp.ne.s32.totalorder %s253, %s254
      %p263 = scmp.eq.s32.totalorder %s36, 0
      %p264 = por %p262, %p263
      %p265 = scmp.ne.s32.totalorder %s253, %s254
      %p266 = scmp.eq.s32.totalorder %s37, 3
      %p267 = por %p265, %p266
      %p269 = scmp.ne.s32.totalorder %s254, %s268
      %p270 = scmp.eq.s32.totalorder %s37, 0
      %p271 = por %p269, %p270
      %s273 = sadd.s32 %s272, 1
      %p276 = scmp.eq.s32.totalorder %s31, 3
      %p277 = scmp.ne.s32.totalorder %s272, %s274
      %p278 = scmp.eq.s32.totalorder %s31, 0
      %p279 = por %p277, %p278
      %p280 = scmp.ne.s32.totalorder %s272, %s274
      %p281 = scmp.eq.s32.totalorder %s36, 3
      %p282 = por %p280, %p281
      %p283 = scmp.ne.s32.totalorder %s274, %s275
      %p284 = scmp.eq.s32.totalorder %s36, 0
      %p285 = por %p283, %p284
      %p286 = scmp.ne.s32.totalorder %s274, %s275
      %p287 = scmp.eq.s32.totalorder %s37, 3
      %p288 = por %p286, %p287
      %p290 = scmp.ne.s32.totalorder %s275, %s289
      %p291 = scmp.eq.s32.totalorder %s37, 0
      %p292 = por %p290, %p291
      %s294 = sadd.s32 %s293, 1
      %p297 = scmp.eq.s32.totalorder %s31, 3
      %p298 = scmp.ne.s32.totalorder %s293, %s295
      %p299 = scmp.eq.s32.totalorder %s31, 0
      %p300 = por %p298, %p299
      %p301 = scmp.ne.s32.totalorder %s293, %s295
      %p302 = scmp.eq.s32.totalorder %s36, 3
      %p303 = por %p301, %p302
      %p304 = scmp.ne.s32.totalorder %s295, %s296
      %p305 = scmp.eq.s32.totalorder %s36, 0
      %p306 = por %p304, %p305
      %p307 = scmp.ne.s32.totalorder %s295, %s296
      %p308 = scmp.eq.s32.totalorder %s37, 3
      %p309 = por %p307, %p308
      %p311 = scmp.ne.s32.totalorder %s296, %s310
      %p312 = scmp.eq.s32.totalorder %s37, 0
      %p313 = por %p311, %p312
      %s314 = ssub.s32 %s38, %s50
      %s315 = ssub.s32 %s39, %s46
      %s316 = sor.u32 %s314, %s315
      %p317 = scmp.eq.s32.totalorder %s316, 0
      %s319 = sadd.s32 %s318, 1
      %s320 = scalar_select %p317, %s318, %s319
      %p323 = pneg %p317
      %p324 = scmp.eq.s32.totalorder %s31, 3
      %p325 = por %p323, %p324
      %p326 = scmp.ne.s32.totalorder %s318, %s321
      %p327 = scmp.eq.s32.totalorder %s31, 0
      %p328 = por %p326, %p327
      %p329 = scmp.ne.s32.totalorder %s318, %s321
      %p330 = scmp.eq.s32.totalorder %s36, 3
      %p331 = por %p329, %p330
      %p332 = scmp.ne.s32.totalorder %s321, %s322
      %p333 = scmp.eq.s32.totalorder %s36, 0
      %p334 = por %p332, %p333
      %p335 = scmp.ne.s32.totalorder %s321, %s322
      %p336 = scmp.eq.s32.totalorder %s37, 3
      %p337 = por %p335, %p336
      %p339 = scmp.ne.s32.totalorder %s322, %s338
      %p340 = scmp.eq.s32.totalorder %s37, 0
      %p341 = por %p339, %p340
      %p342 = scmp.le.s32.totalorder 1, %s31
      %p343 = scmp.lt.s32.totalorder %s31, 5
      %p344 = pnand %p342, %p343
      %p345 = pneg %p344
      // Predicated region
      $region9: #{tpu_custom_call.1} parent=5 // pred_check
        _
      $region10: #{tpu_custom_call.1} parent=5 // pred_check_branch
        %347 = sbr.rel (%p344) target = $region12
      $region11: #{tpu_custom_call.1} parent=5 // pred_region
        %s348 = ssub.s32 %s31, 1
        // Predicated region
        $region13: #{tpu_custom_call.1} parent=11 // pred_check
          %p349 = pneg %p264
        $region14: #{tpu_custom_call.1} parent=11 // pred_check_branch
          %351 = sbr.rel (%p349) target = $region16
        $region15: #{tpu_custom_call.1} parent=11 // pred_region
          %s353 = ssub.s32 9216, 9216
          %354 = vsyncadd [#allocation14], %s353
          %s355 = sshll.u32 [#allocation15], 4
          %s356 = int_to_ptr.vmem [resolvable:$true] %s355
          %361 = dma.hbm_to_vmem [thread:$0]  %s6, 9216, %s356, [#allocation14], 64, 64, 4
        $region16: #{tpu_custom_call.1} parent=11 // pred_fallthru
          _
        // Predicated region
        $region17: #{tpu_custom_call.1} parent=11 // pred_check
          %p362 = pneg %p285
        $region18: #{tpu_custom_call.1} parent=11 // pred_check_branch
          %364 = sbr.rel (%p362) target = $region20
        $region19: #{tpu_custom_call.1} parent=11 // pred_region
          %s366 = ssub.s32 9216, 9216
          %367 = vsyncadd [#allocation17], %s366
          %s368 = sshll.u32 [#allocation16], 4
          %s369 = int_to_ptr.vmem [resolvable:$true] %s368
          %374 = dma.hbm_to_vmem [thread:$0]  %s7, 9216, %s369, [#allocation17], 64, 64, 4
        $region20: #{tpu_custom_call.1} parent=11 // pred_fallthru
          _
        // Predicated region
        $region21: #{tpu_custom_call.1} parent=11 // pred_check
          %p375 = pneg %p306
        $region22: #{tpu_custom_call.1} parent=11 // pred_check_branch
          %377 = sbr.rel (%p375) target = $region24
        $region23: #{tpu_custom_call.1} parent=11 // pred_region
          _
        $region24: #{tpu_custom_call.1} parent=11 // pred_fallthru
          _
      $region12: #{tpu_custom_call.1} parent=5 // pred_fallthru
        _
      %p378 = scmp.lt.s32.totalorder %s31, 4
      // Predicated region
      $region25: #{tpu_custom_call.1} parent=5 // pred_check
        %p379 = pneg %p378
      $region26: #{tpu_custom_call.1} parent=5 // pred_check_branch
        %381 = sbr.rel (%p379) target = $region28
      $region27: #{tpu_custom_call.1} parent=5 // pred_region
        // Predicated region
        $region29: #{tpu_custom_call.1} parent=27 // pred_check
          %p382 = pneg %p65
        $region30: #{tpu_custom_call.1} parent=27 // pred_check_branch
          %384 = sbr.rel (%p382) target = $region32
        $region31: #{tpu_custom_call.1} parent=27 // pred_region
          %s385 = sand.u32 %s55, 1
          %s386 = scalar_lea.sflag [#allocation5], %s385
          %s387 = sand.u32 %s55, 1
          %s388 = smul.addr %s387, 64
          %s389 = scalar_lea.vmem [#allocation4], %s388
          %s390 = smul.u32 8, %s39
          %s392 = ssub.s32 1024, 1024
          %393 = vsyncadd %s386, %s392
          %s394 = smul.addr %s390, 2
          %s395 = smul.addr %s38, 32
          %s396 = sadd.s32 %s394, %s395
          %s397 = smul.addr %s396, 64
          %s398 = scalar_lea.hbm %s0, %s397
          %s399 = sshll.u32 %s389, 4
          %s400 = int_to_ptr.vmem [resolvable:$true] %s399
          %405 = dma.hbm_to_vmem [thread:$0]  %s398, 1024, %s400, %s386, 64, 64, 4
        $region32: #{tpu_custom_call.1} parent=27 // pred_fallthru
          _
        // Predicated region
        $region33: #{tpu_custom_call.1} parent=27 // pred_check
          %p406 = pneg %p101
        $region34: #{tpu_custom_call.1} parent=27 // pred_check_branch
          %408 = sbr.rel (%p406) target = $region36
        $region35: #{tpu_custom_call.1} parent=27 // pred_region
          %s409 = sand.u32 %s31, 1
          %s410 = scalar_lea.sflag [#allocation8], %s409
          %s411 = sand.u32 %s91, 1
          %s412 = smul.addr %s411, 8
          %s413 = scalar_lea.vmem [#allocation7], %s412
          %s414 = smul.u32 %s39, 8
          %s415 = ssub.s32 %s414, 1
          %p416 = scmp.gt.s32.totalorder %s415, 0
          %s417 = scalar_select %p416, %s415, 0
          %s419 = ssub.s32 128, 128
          %420 = vsyncadd %s410, %s419
          %s421 = smul.addr %s417, 2
          %s422 = smul.addr %s38, 32
          %s423 = sadd.s32 %s421, %s422
          %s424 = smul.addr %s423, 64
          %s425 = scalar_lea.hbm %s1, %s424
          %s426 = sshll.u32 %s413, 4
          %s427 = int_to_ptr.vmem [resolvable:$true] %s426
          %432 = dma.hbm_to_vmem [thread:$0]  %s425, 128, %s427, %s410, 64, 64, 4
        $region36: #{tpu_custom_call.1} parent=27 // pred_fallthru
          _
        // Predicated region
        $region37: #{tpu_custom_call.1} parent=27 // pred_check
          %p433 = pneg %p137
        $region38: #{tpu_custom_call.1} parent=27 // pred_check_branch
          %435 = sbr.rel (%p433) target = $region40
        $region39: #{tpu_custom_call.1} parent=27 // pred_region
          %s436 = sand.u32 %s31, 1
          %s437 = scalar_lea.sflag [#allocation8], %s436
          %s438 = sand.u32 %s127, 1
          %s439 = smul.addr %s438, 8
          %s440 = scalar_lea.vmem [#allocation9], %s439
          %s441 = sadd.s32 %s39, 1
          %s442 = smul.u32 %s441, 8
          %p443 = scmp.lt.s32.totalorder %s442, 15
          %s444 = scalar_select %p443, %s442, 15
          %s446 = ssub.s32 128, 128
          %447 = vsyncadd %s437, %s446
          %s448 = smul.addr %s444, 2
          %s449 = smul.addr %s38, 32
          %s450 = sadd.s32 %s448, %s449
          %s451 = smul.addr %s450, 64
          %s452 = scalar_lea.hbm %s2, %s451
          %s453 = sshll.u32 %s440, 4
          %s454 = int_to_ptr.vmem [resolvable:$true] %s453
          %459 = dma.hbm_to_vmem [thread:$0]  %s452, 128, %s454, %s437, 64, 64, 4
        $region40: #{tpu_custom_call.1} parent=27 // pred_fallthru
          _
        // Predicated region
        $region41: #{tpu_custom_call.1} parent=27 // pred_check
          %p460 = pneg %p165
        $region42: #{tpu_custom_call.1} parent=27 // pred_check_branch
          %462 = sbr.rel (%p460) target = $region44
        $region43: #{tpu_custom_call.1} parent=27 // pred_region
          %s463 = sand.u32 %s31, 1
          %s464 = scalar_lea.sflag [#allocation11], %s463
          %s465 = sand.u32 %s155, 1
          %s466 = smul.addr %s465, 64
          %s467 = scalar_lea.vmem [#allocation10], %s466
          %s468 = smul.u32 8, %s39
          %s470 = ssub.s32 1024, 1024
          %471 = vsyncadd %s464, %s470
          %s472 = smul.addr %s468, 2
          %s473 = smul.addr %s38, 32
          %s474 = sadd.s32 %s472, %s473
          %s475 = smul.addr %s474, 64
          %s476 = scalar_lea.hbm %s3, %s475
          %s477 = sshll.u32 %s467, 4
          %s478 = int_to_ptr.vmem [resolvable:$true] %s477
          %483 = dma.hbm_to_vmem [thread:$0]  %s476, 1024, %s478, %s464, 64, 64, 4
        $region44: #{tpu_custom_call.1} parent=27 // pred_fallthru
          _
        // Predicated region
        $region45: #{tpu_custom_call.1} parent=27 // pred_check
          %p484 = pneg %p201
        $region46: #{tpu_custom_call.1} parent=27 // pred_check_branch
          %486 = sbr.rel (%p484) target = $region48
        $region47: #{tpu_custom_call.1} parent=27 // pred_region
          %s487 = sand.u32 %s31, 1
          %s488 = scalar_lea.sflag [#allocation11], %s487
          %s489 = sand.u32 %s191, 1
          %s490 = smul.addr %s489, 8
          %s491 = scalar_lea.vmem [#allocation12], %s490
          %s492 = smul.u32 %s39, 8
          %s493 = ssub.s32 %s492, 1
          %p494 = scmp.gt.s32.totalorder %s493, 0
          %s495 = scalar_select %p494, %s493, 0
          %s497 = ssub.s32 128, 128
          %498 = vsyncadd %s488, %s497
          %s499 = smul.addr %s495, 2
          %s500 = smul.addr %s38, 32
          %s501 = sadd.s32 %s499, %s500
          %s502 = smul.addr %s501, 64
          %s503 = scalar_lea.hbm %s4, %s502
          %s504 = sshll.u32 %s491, 4
          %s505 = int_to_ptr.vmem [resolvable:$true] %s504
          %510 = dma.hbm_to_vmem [thread:$0]  %s503, 128, %s505, %s488, 64, 64, 4
        $region48: #{tpu_custom_call.1} parent=27 // pred_fallthru
          _
        // Predicated region
        $region49: #{tpu_custom_call.1} parent=27 // pred_check
          %p511 = pneg %p237
        $region50: #{tpu_custom_call.1} parent=27 // pred_check_branch
          %513 = sbr.rel (%p511) target = $region52
        $region51: #{tpu_custom_call.1} parent=27 // pred_region
          %s514 = sand.u32 %s31, 1
          %s515 = scalar_lea.sflag [#allocation14], %s514
          %s516 = sand.u32 %s227, 1
          %s517 = smul.addr %s516, 8
          %s518 = scalar_lea.vmem [#allocation13], %s517
          %s519 = sadd.s32 %s39, 1
          %s520 = smul.u32 %s519, 8
          %p521 = scmp.lt.s32.totalorder %s520, 15
          %s522 = scalar_select %p521, %s520, 15
          %s524 = ssub.s32 128, 128
          %525 = vsyncadd %s515, %s524
          %s526 = smul.addr %s522, 2
          %s527 = smul.addr %s38, 32
          %s528 = sadd.s32 %s526, %s527
          %s529 = smul.addr %s528, 64
          %s530 = scalar_lea.hbm %s5, %s529
          %s531 = sshll.u32 %s518, 4
          %s532 = int_to_ptr.vmem [resolvable:$true] %s531
          %537 = dma.hbm_to_vmem [thread:$0]  %s530, 128, %s532, %s515, 64, 64, 4
        $region52: #{tpu_custom_call.1} parent=27 // pred_fallthru
          _
      $region28: #{tpu_custom_call.1} parent=5 // pred_fallthru
        _
      %p538 = scmp.le.s32.totalorder 1, %s31
      %p539 = scmp.lt.s32.totalorder %s31, 5
      %p540 = pnand %p538, %p539
      %p541 = pneg %p540
      // Predicated region
      $region53: #{tpu_custom_call.1} parent=5 // pred_check
        _
      $region54: #{tpu_custom_call.1} parent=5 // pred_check_branch
        %543 = sbr.rel (%p540) target = $region56
      $region55: #{tpu_custom_call.1} parent=5 // pred_region
        %s544 = ssub.s32 %s31, 1
        %s545 = sand.u32 %s58, 1
        %s546 = scalar_lea.sflag [#allocation5], %s545
        %s547 = sand.u32 %s58, 1
        %s548 = smul.addr %s547, 64
        %s549 = scalar_lea.vmem [#allocation4], %s548
        // Predicated region
        $region57: #{tpu_custom_call.1} parent=55 // pred_check
          %p550 = pneg %p71
        $region58: #{tpu_custom_call.1} parent=55 // pred_check_branch
          %552 = sbr.rel (%p550) target = $region60
        $region59: #{tpu_custom_call.1} parent=55 // pred_region
          %553 = dma.done %s546, 1024
        $region60: #{tpu_custom_call.1} parent=55 // pred_fallthru
          _
        %s554 = sand.u32 %s36, 1
        %s555 = scalar_lea.sflag [#allocation8], %s554
        %s556 = sand.u32 %s94, 1
        %s557 = smul.addr %s556, 8
        %s558 = scalar_lea.vmem [#allocation7], %s557
        // Predicated region
        $region61: #{tpu_custom_call.1} parent=55 // pred_check
          %p559 = pneg %p107
        $region62: #{tpu_custom_call.1} parent=55 // pred_check_branch
          %561 = sbr.rel (%p559) target = $region64
        $region63: #{tpu_custom_call.1} parent=55 // pred_region
          %562 = dma.done %s555, 128
        $region64: #{tpu_custom_call.1} parent=55 // pred_fallthru
          _
        %s563 = sand.u32 %s36, 1
        %s564 = scalar_lea.sflag [#allocation8], %s563
        %s565 = sand.u32 %s130, 1
        %s566 = smul.addr %s565, 8
        %s567 = scalar_lea.vmem [#allocation9], %s566
        // Predicated region
        $region65: #{tpu_custom_call.1} parent=55 // pred_check
          %p568 = pneg %p143
        $region66: #{tpu_custom_call.1} parent=55 // pred_check_branch
          %570 = sbr.rel (%p568) target = $region68
        $region67: #{tpu_custom_call.1} parent=55 // pred_region
          %571 = dma.done %s564, 128
        $region68: #{tpu_custom_call.1} parent=55 // pred_fallthru
          _
        %s572 = sand.u32 %s36, 1
        %s573 = scalar_lea.sflag [#allocation11], %s572
        %s574 = sand.u32 %s158, 1
        %s575 = smul.addr %s574, 64
        %s576 = scalar_lea.vmem [#allocation10], %s575
        // Predicated region
        $region69: #{tpu_custom_call.1} parent=55 // pred_check
          %p577 = pneg %p171
        $region70: #{tpu_custom_call.1} parent=55 // pred_check_branch
          %579 = sbr.rel (%p577) target = $region72
        $region71: #{tpu_custom_call.1} parent=55 // pred_region
          %580 = dma.done %s573, 1024
        $region72: #{tpu_custom_call.1} parent=55 // pred_fallthru
          _
        %s581 = sand.u32 %s36, 1
        %s582 = scalar_lea.sflag [#allocation11], %s581
        %s583 = sand.u32 %s194, 1
        %s584 = smul.addr %s583, 8
        %s585 = scalar_lea.vmem [#allocation12], %s584
        // Predicated region
        $region73: #{tpu_custom_call.1} parent=55 // pred_check
          %p586 = pneg %p207
        $region74: #{tpu_custom_call.1} parent=55 // pred_check_branch
          %588 = sbr.rel (%p586) target = $region76
        $region75: #{tpu_custom_call.1} parent=55 // pred_region
          %589 = dma.done %s582, 128
        $region76: #{tpu_custom_call.1} parent=55 // pred_fallthru
          _
        %s590 = sand.u32 %s36, 1
        %s591 = scalar_lea.sflag [#allocation14], %s590
        %s592 = sand.u32 %s230, 1
        %s593 = smul.addr %s592, 8
        %s594 = scalar_lea.vmem [#allocation13], %s593
        // Predicated region
        $region77: #{tpu_custom_call.1} parent=55 // pred_check
          %p595 = pneg %p243
        $region78: #{tpu_custom_call.1} parent=55 // pred_check_branch
          %597 = sbr.rel (%p595) target = $region80
        $region79: #{tpu_custom_call.1} parent=55 // pred_region
          %598 = dma.done %s591, 128
        $region80: #{tpu_custom_call.1} parent=55 // pred_fallthru
          _
        // Predicated region
        $region81: #{tpu_custom_call.1} parent=55 // pred_check
          %p599 = pneg %p264
        $region82: #{tpu_custom_call.1} parent=55 // pred_check_branch
          %601 = sbr.rel (%p599) target = $region84
        $region83: #{tpu_custom_call.1} parent=55 // pred_region
          %602 = dma.done [#allocation14], 9216
        $region84: #{tpu_custom_call.1} parent=55 // pred_fallthru
          _
        // Predicated region
        $region85: #{tpu_custom_call.1} parent=55 // pred_check
          %p603 = pneg %p285
        $region86: #{tpu_custom_call.1} parent=55 // pred_check_branch
          %605 = sbr.rel (%p603) target = $region88
        $region87: #{tpu_custom_call.1} parent=55 // pred_region
          %606 = dma.done [#allocation17], 9216
        $region88: #{tpu_custom_call.1} parent=55 // pred_fallthru
          _
        %s607 = sand.u32 %s58, 1
        %s608 = scalar_lea.sflag [#allocation5], %s607
        %s609 = sand.u32 %s58, 1
        %s610 = smul.addr %s609, 64
        %s611 = scalar_lea.vmem [#allocation4], %s610
        %p612 = pneg %p71
        %p613 = pneg %p68
        %s614 = sand.u32 %s36, 1
        %s615 = scalar_lea.sflag [#allocation8], %s614
        %s616 = sand.u32 %s94, 1
        %s617 = smul.addr %s616, 8
        %s618 = scalar_lea.vmem [#allocation7], %s617
        %p619 = pneg %p107
        %p620 = pneg %p104
        %s621 = sand.u32 %s36, 1
        %s622 = scalar_lea.sflag [#allocation8], %s621
        %s623 = sand.u32 %s130, 1
        %s624 = smul.addr %s623, 8
        %s625 = scalar_lea.vmem [#allocation9], %s624
        %p626 = pneg %p143
        %p627 = pneg %p140
        %s628 = sand.u32 %s36, 1
        %s629 = scalar_lea.sflag [#allocation11], %s628
        %s630 = sand.u32 %s158, 1
        %s631 = smul.addr %s630, 64
        %s632 = scalar_lea.vmem [#allocation10], %s631
        %p633 = pneg %p171
        %p634 = pneg %p168
        %s635 = sand.u32 %s36, 1
        %s636 = scalar_lea.sflag [#allocation11], %s635
        %s637 = sand.u32 %s194, 1
        %s638 = smul.addr %s637, 8
        %s639 = scalar_lea.vmem [#allocation12], %s638
        %p640 = pneg %p207
        %p641 = pneg %p204
        %s642 = sand.u32 %s36, 1
        %s643 = scalar_lea.sflag [#allocation14], %s642
        %s644 = sand.u32 %s230, 1
        %s645 = smul.addr %s644, 8
        %s646 = scalar_lea.vmem [#allocation13], %s645
        %p647 = pneg %p243
        %p648 = pneg %p240
        %p649 = pneg %p264
        %p650 = pneg %p261
        %p651 = pneg %p285
        %p652 = pneg %p282
        %p653 = pneg %p306
        %p654 = pneg %p303
        %p655 = pneg %p334
        %p656 = pneg %p331
        %s657 = sand.u32 %s321, 1
        %s658 = scalar_lea.sflag [#allocation6], %s657
        %s659 = sand.u32 %s321, 1
        %s660 = smul.addr %s659, 128
        %s661 = scalar_lea.vmem [#allocation18], %s660
        %s662 = smul.u32 8, %s41
        %s663 = smul.u32 %s41, 8
        %s664 = ssub.s32 %s663, 1
        %p665 = scmp.gt.s32.totalorder %s664, 0
        %s666 = scalar_select %p665, %s664, 0
        %s667 = sadd.s32 %s41, 1
        %s668 = smul.u32 %s667, 8
        %p669 = scmp.lt.s32.totalorder %s668, 15
        %s670 = scalar_select %p669, %s668, 15
        %s671 = smul.u32 8, %s41
        %s672 = smul.u32 %s41, 8
        %s673 = ssub.s32 %s672, 1
        %p674 = scmp.gt.s32.totalorder %s673, 0
        %s675 = scalar_select %p674, %s673, 0
        %s676 = sadd.s32 %s41, 1
        %s677 = smul.u32 %s676, 8
        %p678 = scmp.lt.s32.totalorder %s677, 15
        %s679 = scalar_select %p678, %s677, 15
        %s680 = smul.u32 8, %s41
        %p682 = scmp.gt.s32.totalorder %s41, 0
        %p683 = scmp.lt.s32.totalorder %s41, 1
        %vm684 = vcmask 1040384
        %vm685 = vsmask.f32 256
        %vm686 = vmand %vm684, %vm685
        %v687 = vld [vmem:[#allocation2] sm:$0x1]
        %v688 = vsel %vm686, 0, %v687
        %689 = vst [vmem:[#allocation2] sm:$0x1] %v688
        %v690 = vld [vmem:[#allocation2 + $0xc] sm:$0x1]
        %v691 = vsel %vm686, 0, %v690
        %692 = vst [vmem:[#allocation2 + $0xc] sm:$0x1] %v691
        %v693 = vld [vmem:[#allocation2 + $0x18] sm:$0x1]
        %v694 = vsel %vm686, 0, %v693
        %695 = vst [vmem:[#allocation2 + $0x18] sm:$0x1] %v694
        %v696 = vld [vmem:[#allocation2 + $0x24] sm:$0x1]
        %v697 = vsel %vm686, 0, %v696
        %698 = vst [vmem:[#allocation2 + $0x24] sm:$0x1] %v697
        %v699 = vld [vmem:[#allocation2 + $0x30] sm:$0x1]
        %v700 = vsel %vm686, 0, %v699
        %701 = vst [vmem:[#allocation2 + $0x30] sm:$0x1] %v700
        %v702 = vld [vmem:[#allocation2 + $0x3c] sm:$0x1]
        %v703 = vsel %vm686, 0, %v702
        %704 = vst [vmem:[#allocation2 + $0x3c] sm:$0x1] %v703
        %v705 = vld [vmem:[#allocation2 + $0x48] sm:$0x1]
        %v706 = vsel %vm686, 0, %v705
        %707 = vst [vmem:[#allocation2 + $0x48] sm:$0x1] %v706
        %v708 = vld [vmem:[#allocation2 + $0x54] sm:$0x1]
        %v709 = vsel %vm686, 0, %v708
        %710 = vst [vmem:[#allocation2 + $0x54] sm:$0x1] %v709
        %v711 = vld [vmem:[#allocation2 + $0x60] sm:$0x1]
        %v712 = vsel %vm686, 0, %v711
        %713 = vst [vmem:[#allocation2 + $0x60] sm:$0x1] %v712
        %v714 = vld [vmem:[#allocation2 + $0x6c] sm:$0x1]
        %v715 = vsel %vm686, 0, %v714
        %716 = vst [vmem:[#allocation2 + $0x6c] sm:$0x1] %v715
        %vm717 = vsmask.f32 7938
        %vm718 = vmand %vm684, %vm717
        %v719 = vld [vmem:[#allocation2 + $0x8] sm:$0x1]
        %v720 = vsel %vm718, 0, %v719
        %721 = vst [vmem:[#allocation2 + $0x8] sm:$0x1] %v720
        %v722 = vld [vmem:[#allocation2 + $0x14] sm:$0x1]
        %v723 = vsel %vm718, 0, %v722
        %724 = vst [vmem:[#allocation2 + $0x14] sm:$0x1] %v723
        %v725 = vld [vmem:[#allocation2 + $0x20] sm:$0x1]
        %v726 = vsel %vm718, 0, %v725
        %727 = vst [vmem:[#allocation2 + $0x20] sm:$0x1] %v726
        %v728 = vld [vmem:[#allocation2 + $0x2c] sm:$0x1]
        %v729 = vsel %vm718, 0, %v728
        %730 = vst [vmem:[#allocation2 + $0x2c] sm:$0x1] %v729
        %v731 = vld [vmem:[#allocation2 + $0x38] sm:$0x1]
        %v732 = vsel %vm718, 0, %v731
        %733 = vst [vmem:[#allocation2 + $0x38] sm:$0x1] %v732
        %v734 = vld [vmem:[#allocation2 + $0x44] sm:$0x1]
        %v735 = vsel %vm718, 0, %v734
        %736 = vst [vmem:[#allocation2 + $0x44] sm:$0x1] %v735
        %v737 = vld [vmem:[#allocation2 + $0x50] sm:$0x1]
        %v738 = vsel %vm718, 0, %v737
        %739 = vst [vmem:[#allocation2 + $0x50] sm:$0x1] %v738
        %v740 = vld [vmem:[#allocation2 + $0x5c] sm:$0x1]
        %v741 = vsel %vm718, 0, %v740
        %742 = vst [vmem:[#allocation2 + $0x5c] sm:$0x1] %v741
        %v743 = vld [vmem:[#allocation2 + $0x68] sm:$0x1]
        %v744 = vsel %vm718, 0, %v743
        %745 = vst [vmem:[#allocation2 + $0x68] sm:$0x1] %v744
        %v746 = vld [vmem:[#allocation2 + $0x74] sm:$0x1]
        %v747 = vsel %vm718, 0, %v746
        %748 = vst [vmem:[#allocation2 + $0x74] sm:$0x1] %v747
        %v749 = vld [vmem:[%s558] sm:$0xf]
        %v750 = vld [vmem:[%s558 + $0x4] sm:$0xf]
        %v751 = vld [vmem:[%s567] sm:$0xf]
        %v752 = vld [vmem:[%s567 + $0x4] sm:$0xf]
        %s753 = scalar_select %p682, 1, 0
        %v754 = vstv %s753
        %vm755 = vcmp.eq.s32.totalorder %v754, 1
        %v756 = vsel %vm755, %v749, 0
        %v757 = vsel %vm755, %v750, 0
        %s758 = scalar_select %p683, 1, 0
        %v759 = vstv %s758
        %vm760 = vcmp.eq.s32.totalorder %v759, 1
        %v761 = vsel %vm760, %v751, 0
        %v762 = vsel %vm760, %v752, 0
        %vm763 = vsmask.f32 4368
        %vm764 = vmor %vm685, %vm763
        %v766 = vshrl.u32 %v756, 16
        %v768 = vrot.slane %v766, 7
        %v769 = vshll.u32 %v756, 16
        %v771 = vor.u32 %v768, %v769
        %v772 = vrot.slane %v768, 4
        %v774 = vshrl.u32 %v757, 16
        %v776 = vrot.slane %v774, 7
        %v777 = vshll.u32 %v757, 16
        %v779 = vor.u32 %v776, %v777
        %v780 = vsel %vm764, %v772, %v779
        %v781 = vrot.slane %v776, 4
        %vm785 = vcmask 1043456
        %vm786 = vmand %vm785, %vm717
        %v787 = vld [vmem:[#allocation2] sm:$0xf]
        %v788 = vsel %vm786, %v771, %v787
        %789 = vst [vmem:[#allocation2] sm:$0xf] %v788
        %790 = vst [vmem:[#allocation2 + $0x4] sm:$0xf] %v780
        %v791 = vld [vmem:[#allocation2 + $0x8] sm:$0x1]
        %v792 = vsel %vm686, %v781, %v791
        %793 = vst [vmem:[#allocation2 + $0x8] sm:$0x1] %v792
        %v794 = vld [vmem:[%s549] sm:$0xf]
        %v795 = vld [vmem:[%s549 + $0x4] sm:$0xf]
        %v796 = vld [vmem:[%s549 + $0x8] sm:$0xf]
        %v797 = vld [vmem:[%s549 + $0xc] sm:$0xf]
        %v798 = vld [vmem:[%s549 + $0x10] sm:$0xf]
        %v799 = vld [vmem:[%s549 + $0x14] sm:$0xf]
        %v800 = vld [vmem:[%s549 + $0x18] sm:$0xf]
        %v801 = vld [vmem:[%s549 + $0x1c] sm:$0xf]
        %v802 = vld [vmem:[%s549 + $0x20] sm:$0xf]
        %v803 = vld [vmem:[%s549 + $0x24] sm:$0xf]
        %v804 = vld [vmem:[%s549 + $0x28] sm:$0xf]
        %v805 = vld [vmem:[%s549 + $0x2c] sm:$0xf]
        %v806 = vld [vmem:[%s549 + $0x30] sm:$0xf]
        %v807 = vld [vmem:[%s549 + $0x34] sm:$0xf]
        %v808 = vld [vmem:[%s549 + $0x38] sm:$0xf]
        %v809 = vld [vmem:[%s549 + $0x3c] sm:$0xf]
        %v811 = vshrl.u32 %v794, 16
        %v813 = vrot.slane %v811, 7
        %v814 = vshll.u32 %v794, 16
        %v816 = vor.u32 %v813, %v814
        %v817 = vrot.slane %v813, 4
        %v819 = vshrl.u32 %v795, 16
        %v821 = vrot.slane %v819, 7
        %v822 = vshll.u32 %v795, 16
        %v824 = vor.u32 %v821, %v822
        %v825 = vsel %vm764, %v817, %v824
        %v826 = vrot.slane %v821, 4
        %v828 = vshrl.u32 %v796, 16
        %v830 = vrot.slane %v828, 7
        %v831 = vshll.u32 %v796, 16
        %v833 = vor.u32 %v830, %v831
        %v834 = vrot.slane %v830, 4
        %v836 = vshrl.u32 %v797, 16
        %v838 = vrot.slane %v836, 7
        %v839 = vshll.u32 %v797, 16
        %v841 = vor.u32 %v838, %v839
        %v842 = vsel %vm764, %v834, %v841
        %v843 = vrot.slane %v838, 4
        %v845 = vshrl.u32 %v798, 16
        %v847 = vrot.slane %v845, 7
        %v848 = vshll.u32 %v798, 16
        %v850 = vor.u32 %v847, %v848
        %v851 = vrot.slane %v847, 4
        %v853 = vshrl.u32 %v799, 16
        %v855 = vrot.slane %v853, 7
        %v856 = vshll.u32 %v799, 16
        %v858 = vor.u32 %v855, %v856
        %v859 = vsel %vm764, %v851, %v858
        %v860 = vrot.slane %v855, 4
        %v862 = vshrl.u32 %v800, 16
        %v864 = vrot.slane %v862, 7
        %v865 = vshll.u32 %v800, 16
        %v867 = vor.u32 %v864, %v865
        %v868 = vrot.slane %v864, 4
        %v870 = vshrl.u32 %v801, 16
        %v872 = vrot.slane %v870, 7
        %v873 = vshll.u32 %v801, 16
        %v875 = vor.u32 %v872, %v873
        %v876 = vsel %vm764, %v868, %v875
        %v877 = vrot.slane %v872, 4
        %v879 = vshrl.u32 %v802, 16
        %v881 = vrot.slane %v879, 7
        %v882 = vshll.u32 %v802, 16
        %v884 = vor.u32 %v881, %v882
        %v885 = vrot.slane %v881, 4
        %v887 = vshrl.u32 %v803, 16
        %v889 = vrot.slane %v887, 7
        %v890 = vshll.u32 %v803, 16
        %v892 = vor.u32 %v889, %v890
        %v893 = vsel %vm764, %v885, %v892
        %v894 = vrot.slane %v889, 4
        %v896 = vshrl.u32 %v804, 16
        %v898 = vrot.slane %v896, 7
        %v899 = vshll.u32 %v804, 16
        %v901 = vor.u32 %v898, %v899
        %v902 = vrot.slane %v898, 4
        %v904 = vshrl.u32 %v805, 16
        %v906 = vrot.slane %v904, 7
        %v907 = vshll.u32 %v805, 16
        %v909 = vor.u32 %v906, %v907
        %v910 = vsel %vm764, %v902, %v909
        %v911 = vrot.slane %v906, 4
        %v913 = vshrl.u32 %v806, 16
        %v915 = vrot.slane %v913, 7
        %v916 = vshll.u32 %v806, 16
        %v918 = vor.u32 %v915, %v916
        %v919 = vrot.slane %v915, 4
        %v921 = vshrl.u32 %v807, 16
        %v923 = vrot.slane %v921, 7
        %v924 = vshll.u32 %v807, 16
        %v926 = vor.u32 %v923, %v924
        %v927 = vsel %vm764, %v919, %v926
        %v928 = vrot.slane %v923, 4
        %v930 = vshrl.u32 %v808, 16
        %v932 = vrot.slane %v930, 7
        %v933 = vshll.u32 %v808, 16
        %v935 = vor.u32 %v932, %v933
        %v936 = vrot.slane %v932, 4
        %v938 = vshrl.u32 %v809, 16
        %v940 = vrot.slane %v938, 7
        %v941 = vshll.u32 %v809, 16
        %v943 = vor.u32 %v940, %v941
        %v944 = vsel %vm764, %v936, %v943
        %v945 = vrot.slane %v940, 4
        %s970 = scalar_lea.vmem [#allocation2], 12
        %v971 = vld [vmem:[%s970] sm:$0xf]
        %v972 = vsel %vm786, %v816, %v971
        %973 = vst [vmem:[%s970] sm:$0xf] %v972
        %974 = vst [vmem:[%s970 + $0x4] sm:$0xf] %v825
        %v975 = vld [vmem:[%s970 + $0x8] sm:$0x1]
        %v976 = vsel %vm686, %v826, %v975
        %977 = vst [vmem:[%s970 + $0x8] sm:$0x1] %v976
        %v978 = vld [vmem:[%s970 + $0xc] sm:$0xf]
        %v979 = vsel %vm786, %v833, %v978
        %980 = vst [vmem:[%s970 + $0xc] sm:$0xf] %v979
        %981 = vst [vmem:[%s970 + $0x10] sm:$0xf] %v842
        %v982 = vld [vmem:[%s970 + $0x14] sm:$0x1]
        %v983 = vsel %vm686, %v843, %v982
        %984 = vst [vmem:[%s970 + $0x14] sm:$0x1] %v983
        %v985 = vld [vmem:[%s970 + $0x18] sm:$0xf]
        %v986 = vsel %vm786, %v850, %v985
        %987 = vst [vmem:[%s970 + $0x18] sm:$0xf] %v986
        %988 = vst [vmem:[%s970 + $0x1c] sm:$0xf] %v859
        %v989 = vld [vmem:[%s970 + $0x20] sm:$0x1]
        %v990 = vsel %vm686, %v860, %v989
        %991 = vst [vmem:[%s970 + $0x20] sm:$0x1] %v990
        %v992 = vld [vmem:[%s970 + $0x24] sm:$0xf]
        %v993 = vsel %vm786, %v867, %v992
        %994 = vst [vmem:[%s970 + $0x24] sm:$0xf] %v993
        %995 = vst [vmem:[%s970 + $0x28] sm:$0xf] %v876
        %v996 = vld [vmem:[%s970 + $0x2c] sm:$0x1]
        %v997 = vsel %vm686, %v877, %v996
        %998 = vst [vmem:[%s970 + $0x2c] sm:$0x1] %v997
        %v999 = vld [vmem:[%s970 + $0x30] sm:$0xf]
        %v1000 = vsel %vm786, %v884, %v999
        %1001 = vst [vmem:[%s970 + $0x30] sm:$0xf] %v1000
        %1002 = vst [vmem:[%s970 + $0x34] sm:$0xf] %v893
        %v1003 = vld [vmem:[%s970 + $0x38] sm:$0x1]
        %v1004 = vsel %vm686, %v894, %v1003
        %1005 = vst [vmem:[%s970 + $0x38] sm:$0x1] %v1004
        %v1006 = vld [vmem:[%s970 + $0x3c] sm:$0xf]
        %v1007 = vsel %vm786, %v901, %v1006
        %1008 = vst [vmem:[%s970 + $0x3c] sm:$0xf] %v1007
        %1009 = vst [vmem:[%s970 + $0x40] sm:$0xf] %v910
        %v1010 = vld [vmem:[%s970 + $0x44] sm:$0x1]
        %v1011 = vsel %vm686, %v911, %v1010
        %1012 = vst [vmem:[%s970 + $0x44] sm:$0x1] %v1011
        %v1013 = vld [vmem:[%s970 + $0x48] sm:$0xf]
        %v1014 = vsel %vm786, %v918, %v1013
        %1015 = vst [vmem:[%s970 + $0x48] sm:$0xf] %v1014
        %1016 = vst [vmem:[%s970 + $0x4c] sm:$0xf] %v927
        %v1017 = vld [vmem:[%s970 + $0x50] sm:$0x1]
        %v1018 = vsel %vm686, %v928, %v1017
        %1019 = vst [vmem:[%s970 + $0x50] sm:$0x1] %v1018
        %v1020 = vld [vmem:[%s970 + $0x54] sm:$0xf]
        %v1021 = vsel %vm786, %v935, %v1020
        %1022 = vst [vmem:[%s970 + $0x54] sm:$0xf] %v1021
        %1023 = vst [vmem:[%s970 + $0x58] sm:$0xf] %v944
        %v1024 = vld [vmem:[%s970 + $0x5c] sm:$0x1]
        %v1025 = vsel %vm686, %v945, %v1024
        %1026 = vst [vmem:[%s970 + $0x5c] sm:$0x1] %v1025
        %v1028 = vshrl.u32 %v761, 16
        %v1030 = vrot.slane %v1028, 7
        %v1031 = vshll.u32 %v761, 16
        %v1033 = vor.u32 %v1030, %v1031
        %v1034 = vrot.slane %v1030, 4
        %v1036 = vshrl.u32 %v762, 16
        %v1038 = vrot.slane %v1036, 7
        %v1039 = vshll.u32 %v762, 16
        %v1041 = vor.u32 %v1038, %v1039
        %v1042 = vsel %vm764, %v1034, %v1041
        %v1043 = vrot.slane %v1038, 4
        %s1047 = scalar_lea.vmem [#allocation2], 108
        %v1048 = vld [vmem:[%s1047] sm:$0xf]
        %v1049 = vsel %vm786, %v1033, %v1048
        %1050 = vst [vmem:[%s1047] sm:$0xf] %v1049
        %1051 = vst [vmem:[%s1047 + $0x4] sm:$0xf] %v1042
        %v1052 = vld [vmem:[%s1047 + $0x8] sm:$0x1]
        %v1053 = vsel %vm686, %v1043, %v1052
        %1054 = vst [vmem:[%s1047 + $0x8] sm:$0x1] %v1053
        %v1055 = vld [vmem:[#allocation3] sm:$0x1]
        %v1056 = vsel %vm686, 0, %v1055
        %1057 = vst [vmem:[#allocation3] sm:$0x1] %v1056
        %v1058 = vld [vmem:[#allocation3 + $0xc] sm:$0x1]
        %v1059 = vsel %vm686, 0, %v1058
        %1060 = vst [vmem:[#allocation3 + $0xc] sm:$0x1] %v1059
        %v1061 = vld [vmem:[#allocation3 + $0x18] sm:$0x1]
        %v1062 = vsel %vm686, 0, %v1061
        %1063 = vst [vmem:[#allocation3 + $0x18] sm:$0x1] %v1062
        %v1064 = vld [vmem:[#allocation3 + $0x24] sm:$0x1]
        %v1065 = vsel %vm686, 0, %v1064
        %1066 = vst [vmem:[#allocation3 + $0x24] sm:$0x1] %v1065
        %v1067 = vld [vmem:[#allocation3 + $0x30] sm:$0x1]
        %v1068 = vsel %vm686, 0, %v1067
        %1069 = vst [vmem:[#allocation3 + $0x30] sm:$0x1] %v1068
        %v1070 = vld [vmem:[#allocation3 + $0x3c] sm:$0x1]
        %v1071 = vsel %vm686, 0, %v1070
        %1072 = vst [vmem:[#allocation3 + $0x3c] sm:$0x1] %v1071
        %v1073 = vld [vmem:[#allocation3 + $0x48] sm:$0x1]
        %v1074 = vsel %vm686, 0, %v1073
        %1075 = vst [vmem:[#allocation3 + $0x48] sm:$0x1] %v1074
        %v1076 = vld [vmem:[#allocation3 + $0x54] sm:$0x1]
        %v1077 = vsel %vm686, 0, %v1076
        %1078 = vst [vmem:[#allocation3 + $0x54] sm:$0x1] %v1077
        %v1079 = vld [vmem:[#allocation3 + $0x60] sm:$0x1]
        %v1080 = vsel %vm686, 0, %v1079
        %1081 = vst [vmem:[#allocation3 + $0x60] sm:$0x1] %v1080
        %v1082 = vld [vmem:[#allocation3 + $0x6c] sm:$0x1]
        %v1083 = vsel %vm686, 0, %v1082
        %1084 = vst [vmem:[#allocation3 + $0x6c] sm:$0x1] %v1083
        %v1085 = vld [vmem:[#allocation3 + $0x8] sm:$0x1]
        %v1086 = vsel %vm718, 0, %v1085
        %1087 = vst [vmem:[#allocation3 + $0x8] sm:$0x1] %v1086
        %v1088 = vld [vmem:[#allocation3 + $0x14] sm:$0x1]
        %v1089 = vsel %vm718, 0, %v1088
        %1090 = vst [vmem:[#allocation3 + $0x14] sm:$0x1] %v1089
        %v1091 = vld [vmem:[#allocation3 + $0x20] sm:$0x1]
        %v1092 = vsel %vm718, 0, %v1091
        %1093 = vst [vmem:[#allocation3 + $0x20] sm:$0x1] %v1092
        %v1094 = vld [vmem:[#allocation3 + $0x2c] sm:$0x1]
        %v1095 = vsel %vm718, 0, %v1094
        %1096 = vst [vmem:[#allocation3 + $0x2c] sm:$0x1] %v1095
        %v1097 = vld [vmem:[#allocation3 + $0x38] sm:$0x1]
        %v1098 = vsel %vm718, 0, %v1097
        %1099 = vst [vmem:[#allocation3 + $0x38] sm:$0x1] %v1098
        %v1100 = vld [vmem:[#allocation3 + $0x44] sm:$0x1]
        %v1101 = vsel %vm718, 0, %v1100
        %1102 = vst [vmem:[#allocation3 + $0x44] sm:$0x1] %v1101
        %v1103 = vld [vmem:[#allocation3 + $0x50] sm:$0x1]
        %v1104 = vsel %vm718, 0, %v1103
        %1105 = vst [vmem:[#allocation3 + $0x50] sm:$0x1] %v1104
        %v1106 = vld [vmem:[#allocation3 + $0x5c] sm:$0x1]
        %v1107 = vsel %vm718, 0, %v1106
        %1108 = vst [vmem:[#allocation3 + $0x5c] sm:$0x1] %v1107
        %v1109 = vld [vmem:[#allocation3 + $0x68] sm:$0x1]
        %v1110 = vsel %vm718, 0, %v1109
        %1111 = vst [vmem:[#allocation3 + $0x68] sm:$0x1] %v1110
        %v1112 = vld [vmem:[#allocation3 + $0x74] sm:$0x1]
        %v1113 = vsel %vm718, 0, %v1112
        %1114 = vst [vmem:[#allocation3 + $0x74] sm:$0x1] %v1113
        %v1115 = vld [vmem:[%s585] sm:$0xf]
        %v1116 = vld [vmem:[%s585 + $0x4] sm:$0xf]
        %v1117 = vld [vmem:[%s594] sm:$0xf]
        %v1118 = vld [vmem:[%s594 + $0x4] sm:$0xf]
        %v1119 = vsel %vm755, %v1115, 0
        %v1120 = vsel %vm755, %v1116, 0
        %v1121 = vsel %vm760, %v1117, 0
        %v1122 = vsel %vm760, %v1118, 0
        %v1124 = vshrl.u32 %v1119, 16
        %v1126 = vrot.slane %v1124, 7
        %v1127 = vshll.u32 %v1119, 16
        %v1129 = vor.u32 %v1126, %v1127
        %v1130 = vrot.slane %v1126, 4
        %v1132 = vshrl.u32 %v1120, 16
        %v1134 = vrot.slane %v1132, 7
        %v1135 = vshll.u32 %v1120, 16
        %v1137 = vor.u32 %v1134, %v1135
        %v1138 = vsel %vm764, %v1130, %v1137
        %v1139 = vrot.slane %v1134, 4
        %v1143 = vld [vmem:[#allocation3] sm:$0xf]
        %v1144 = vsel %vm786, %v1129, %v1143
        %1145 = vst [vmem:[#allocation3] sm:$0xf] %v1144
        %1146 = vst [vmem:[#allocation3 + $0x4] sm:$0xf] %v1138
        %v1147 = vld [vmem:[#allocation3 + $0x8] sm:$0x1]
        %v1148 = vsel %vm686, %v1139, %v1147
        %1149 = vst [vmem:[#allocation3 + $0x8] sm:$0x1] %v1148
        %v1150 = vld [vmem:[%s576] sm:$0xf]
        %v1151 = vld [vmem:[%s576 + $0x4] sm:$0xf]
        %v1152 = vld [vmem:[%s576 + $0x8] sm:$0xf]
        %v1153 = vld [vmem:[%s576 + $0xc] sm:$0xf]
        %v1154 = vld [vmem:[%s576 + $0x10] sm:$0xf]
        %v1155 = vld [vmem:[%s576 + $0x14] sm:$0xf]
        %v1156 = vld [vmem:[%s576 + $0x18] sm:$0xf]
        %v1157 = vld [vmem:[%s576 + $0x1c] sm:$0xf]
        %v1158 = vld [vmem:[%s576 + $0x20] sm:$0xf]
        %v1159 = vld [vmem:[%s576 + $0x24] sm:$0xf]
        %v1160 = vld [vmem:[%s576 + $0x28] sm:$0xf]
        %v1161 = vld [vmem:[%s576 + $0x2c] sm:$0xf]
        %v1162 = vld [vmem:[%s576 + $0x30] sm:$0xf]
        %v1163 = vld [vmem:[%s576 + $0x34] sm:$0xf]
        %v1164 = vld [vmem:[%s576 + $0x38] sm:$0xf]
        %v1165 = vld [vmem:[%s576 + $0x3c] sm:$0xf]
        %v1167 = vshrl.u32 %v1150, 16
        %v1169 = vrot.slane %v1167, 7
        %v1170 = vshll.u32 %v1150, 16
        %v1172 = vor.u32 %v1169, %v1170
        %v1173 = vrot.slane %v1169, 4
        %v1175 = vshrl.u32 %v1151, 16
        %v1177 = vrot.slane %v1175, 7
        %v1178 = vshll.u32 %v1151, 16
        %v1180 = vor.u32 %v1177, %v1178
        %v1181 = vsel %vm764, %v1173, %v1180
        %v1182 = vrot.slane %v1177, 4
        %v1184 = vshrl.u32 %v1152, 16
        %v1186 = vrot.slane %v1184, 7
        %v1187 = vshll.u32 %v1152, 16
        %v1189 = vor.u32 %v1186, %v1187
        %v1190 = vrot.slane %v1186, 4
        %v1192 = vshrl.u32 %v1153, 16
        %v1194 = vrot.slane %v1192, 7
        %v1195 = vshll.u32 %v1153, 16
        %v1197 = vor.u32 %v1194, %v1195
        %v1198 = vsel %vm764, %v1190, %v1197
        %v1199 = vrot.slane %v1194, 4
        %v1201 = vshrl.u32 %v1154, 16
        %v1203 = vrot.slane %v1201, 7
        %v1204 = vshll.u32 %v1154, 16
        %v1206 = vor.u32 %v1203, %v1204
        %v1207 = vrot.slane %v1203, 4
        %v1209 = vshrl.u32 %v1155, 16
        %v1211 = vrot.slane %v1209, 7
        %v1212 = vshll.u32 %v1155, 16
        %v1214 = vor.u32 %v1211, %v1212
        %v1215 = vsel %vm764, %v1207, %v1214
        %v1216 = vrot.slane %v1211, 4
        %v1218 = vshrl.u32 %v1156, 16
        %v1220 = vrot.slane %v1218, 7
        %v1221 = vshll.u32 %v1156, 16
        %v1223 = vor.u32 %v1220, %v1221
        %v1224 = vrot.slane %v1220, 4
        %v1226 = vshrl.u32 %v1157, 16
        %v1228 = vrot.slane %v1226, 7
        %v1229 = vshll.u32 %v1157, 16
        %v1231 = vor.u32 %v1228, %v1229
        %v1232 = vsel %vm764, %v1224, %v1231
        %v1233 = vrot.slane %v1228, 4
        %v1235 = vshrl.u32 %v1158, 16
        %v1237 = vrot.slane %v1235, 7
        %v1238 = vshll.u32 %v1158, 16
        %v1240 = vor.u32 %v1237, %v1238
        %v1241 = vrot.slane %v1237, 4
        %v1243 = vshrl.u32 %v1159, 16
        %v1245 = vrot.slane %v1243, 7
        %v1246 = vshll.u32 %v1159, 16
        %v1248 = vor.u32 %v1245, %v1246
        %v1249 = vsel %vm764, %v1241, %v1248
        %v1250 = vrot.slane %v1245, 4
        %v1252 = vshrl.u32 %v1160, 16
        %v1254 = vrot.slane %v1252, 7
        %v1255 = vshll.u32 %v1160, 16
        %v1257 = vor.u32 %v1254, %v1255
        %v1258 = vrot.slane %v1254, 4
        %v1260 = vshrl.u32 %v1161, 16
        %v1262 = vrot.slane %v1260, 7
        %v1263 = vshll.u32 %v1161, 16
        %v1265 = vor.u32 %v1262, %v1263
        %v1266 = vsel %vm764, %v1258, %v1265
        %v1267 = vrot.slane %v1262, 4
        %v1269 = vshrl.u32 %v1162, 16
        %v1271 = vrot.slane %v1269, 7
        %v1272 = vshll.u32 %v1162, 16
        %v1274 = vor.u32 %v1271, %v1272
        %v1275 = vrot.slane %v1271, 4
        %v1277 = vshrl.u32 %v1163, 16
        %v1279 = vrot.slane %v1277, 7
        %v1280 = vshll.u32 %v1163, 16
        %v1282 = vor.u32 %v1279, %v1280
        %v1283 = vsel %vm764, %v1275, %v1282
        %v1284 = vrot.slane %v1279, 4
        %v1286 = vshrl.u32 %v1164, 16
        %v1288 = vrot.slane %v1286, 7
        %v1289 = vshll.u32 %v1164, 16
        %v1291 = vor.u32 %v1288, %v1289
        %v1292 = vrot.slane %v1288, 4
        %v1294 = vshrl.u32 %v1165, 16
        %v1296 = vrot.slane %v1294, 7
        %v1297 = vshll.u32 %v1165, 16
        %v1299 = vor.u32 %v1296, %v1297
        %v1300 = vsel %vm764, %v1292, %v1299
        %v1301 = vrot.slane %v1296, 4
        %s1326 = scalar_lea.vmem [#allocation3], 12
        %v1327 = vld [vmem:[%s1326] sm:$0xf]
        %v1328 = vsel %vm786, %v1172, %v1327
        %1329 = vst [vmem:[%s1326] sm:$0xf] %v1328
        %1330 = vst [vmem:[%s1326 + $0x4] sm:$0xf] %v1181
        %v1331 = vld [vmem:[%s1326 + $0x8] sm:$0x1]
        %v1332 = vsel %vm686, %v1182, %v1331
        %1333 = vst [vmem:[%s1326 + $0x8] sm:$0x1] %v1332
        %v1334 = vld [vmem:[%s1326 + $0xc] sm:$0xf]
        %v1335 = vsel %vm786, %v1189, %v1334
        %1336 = vst [vmem:[%s1326 + $0xc] sm:$0xf] %v1335
        %1337 = vst [vmem:[%s1326 + $0x10] sm:$0xf] %v1198
        %v1338 = vld [vmem:[%s1326 + $0x14] sm:$0x1]
        %v1339 = vsel %vm686, %v1199, %v1338
        %1340 = vst [vmem:[%s1326 + $0x14] sm:$0x1] %v1339
        %v1341 = vld [vmem:[%s1326 + $0x18] sm:$0xf]
        %v1342 = vsel %vm786, %v1206, %v1341
        %1343 = vst [vmem:[%s1326 + $0x18] sm:$0xf] %v1342
        %1344 = vst [vmem:[%s1326 + $0x1c] sm:$0xf] %v1215
        %v1345 = vld [vmem:[%s1326 + $0x20] sm:$0x1]
        %v1346 = vsel %vm686, %v1216, %v1345
        %1347 = vst [vmem:[%s1326 + $0x20] sm:$0x1] %v1346
        %v1348 = vld [vmem:[%s1326 + $0x24] sm:$0xf]
        %v1349 = vsel %vm786, %v1223, %v1348
        %1350 = vst [vmem:[%s1326 + $0x24] sm:$0xf] %v1349
        %1351 = vst [vmem:[%s1326 + $0x28] sm:$0xf] %v1232
        %v1352 = vld [vmem:[%s1326 + $0x2c] sm:$0x1]
        %v1353 = vsel %vm686, %v1233, %v1352
        %1354 = vst [vmem:[%s1326 + $0x2c] sm:$0x1] %v1353
        %v1355 = vld [vmem:[%s1326 + $0x30] sm:$0xf]
        %v1356 = vsel %vm786, %v1240, %v1355
        %1357 = vst [vmem:[%s1326 + $0x30] sm:$0xf] %v1356
        %1358 = vst [vmem:[%s1326 + $0x34] sm:$0xf] %v1249
        %v1359 = vld [vmem:[%s1326 + $0x38] sm:$0x1]
        %v1360 = vsel %vm686, %v1250, %v1359
        %1361 = vst [vmem:[%s1326 + $0x38] sm:$0x1] %v1360
        %v1362 = vld [vmem:[%s1326 + $0x3c] sm:$0xf]
        %v1363 = vsel %vm786, %v1257, %v1362
        %1364 = vst [vmem:[%s1326 + $0x3c] sm:$0xf] %v1363
        %1365 = vst [vmem:[%s1326 + $0x40] sm:$0xf] %v1266
        %v1366 = vld [vmem:[%s1326 + $0x44] sm:$0x1]
        %v1367 = vsel %vm686, %v1267, %v1366
        %1368 = vst [vmem:[%s1326 + $0x44] sm:$0x1] %v1367
        %v1369 = vld [vmem:[%s1326 + $0x48] sm:$0xf]
        %v1370 = vsel %vm786, %v1274, %v1369
        %1371 = vst [vmem:[%s1326 + $0x48] sm:$0xf] %v1370
        %1372 = vst [vmem:[%s1326 + $0x4c] sm:$0xf] %v1283
        %v1373 = vld [vmem:[%s1326 + $0x50] sm:$0x1]
        %v1374 = vsel %vm686, %v1284, %v1373
        %1375 = vst [vmem:[%s1326 + $0x50] sm:$0x1] %v1374
        %v1376 = vld [vmem:[%s1326 + $0x54] sm:$0xf]
        %v1377 = vsel %vm786, %v1291, %v1376
        %1378 = vst [vmem:[%s1326 + $0x54] sm:$0xf] %v1377
        %1379 = vst [vmem:[%s1326 + $0x58] sm:$0xf] %v1300
        %v1380 = vld [vmem:[%s1326 + $0x5c] sm:$0x1]
        %v1381 = vsel %vm686, %v1301, %v1380
        %1382 = vst [vmem:[%s1326 + $0x5c] sm:$0x1] %v1381
        %v1384 = vshrl.u32 %v1121, 16
        %v1386 = vrot.slane %v1384, 7
        %v1387 = vshll.u32 %v1121, 16
        %v1389 = vor.u32 %v1386, %v1387
        %v1390 = vrot.slane %v1386, 4
        %v1392 = vshrl.u32 %v1122, 16
        %v1394 = vrot.slane %v1392, 7
        %v1395 = vshll.u32 %v1122, 16
        %v1397 = vor.u32 %v1394, %v1395
        %v1398 = vsel %vm764, %v1390, %v1397
        %v1399 = vrot.slane %v1394, 4
        %s1403 = scalar_lea.vmem [#allocation3], 108
        %v1404 = vld [vmem:[%s1403] sm:$0xf]
        %v1405 = vsel %vm786, %v1389, %v1404
        %1406 = vst [vmem:[%s1403] sm:$0xf] %v1405
        %1407 = vst [vmem:[%s1403 + $0x4] sm:$0xf] %v1398
        %v1408 = vld [vmem:[%s1403 + $0x8] sm:$0x1]
        %v1409 = vsel %vm686, %v1399, %v1408
        %1410 = vst [vmem:[%s1403 + $0x8] sm:$0x1] %v1409
        %v1411 = vld [vmem:[#allocation2] sm:$0xf]
        %v1412 = vld [vmem:[#allocation2 + $0x4] sm:$0xf]
        %v1413 = vld [vmem:[#allocation2 + $0xc] sm:$0xf]
        %v1414 = vld [vmem:[#allocation2 + $0x10] sm:$0xf]
        %v1415 = vld [vmem:[#allocation2 + $0x18] sm:$0xf]
        %v1416 = vld [vmem:[#allocation2 + $0x1c] sm:$0xf]
        %v1417 = vld [vmem:[#allocation2 + $0x24] sm:$0xf]
        %v1418 = vld [vmem:[#allocation2 + $0x28] sm:$0xf]
        %v1419 = vld [vmem:[#allocation2 + $0x30] sm:$0xf]
        %v1420 = vld [vmem:[#allocation2 + $0x34] sm:$0xf]
        %v1421 = vld [vmem:[#allocation2 + $0x3c] sm:$0xf]
        %v1422 = vld [vmem:[#allocation2 + $0x40] sm:$0xf]
        %v1423 = vld [vmem:[#allocation2 + $0x48] sm:$0xf]
        %v1424 = vld [vmem:[#allocation2 + $0x4c] sm:$0xf]
        %v1425 = vld [vmem:[#allocation2 + $0x54] sm:$0xf]
        %v1426 = vld [vmem:[#allocation2 + $0x58] sm:$0xf]
        %v1427 = vld [vmem:[#allocation2 + $0x60] sm:$0xf]
        %v1428 = vld [vmem:[#allocation2 + $0x64] sm:$0xf]
        %v1429 = vld [vmem:[#allocation2 + $0x6c] sm:$0xf]
        %v1430 = vld [vmem:[#allocation2 + $0x70] sm:$0xf]
        %v1431 = vld [vmem:[#allocation2 + $0x8] sm:$0x1]
        %v1432 = vld [vmem:[#allocation2 + $0x14] sm:$0x1]
        %v1433 = vld [vmem:[#allocation2 + $0x20] sm:$0x1]
        %v1434 = vld [vmem:[#allocation2 + $0x2c] sm:$0x1]
        %v1435 = vld [vmem:[#allocation2 + $0x38] sm:$0x1]
        %v1436 = vld [vmem:[#allocation2 + $0x44] sm:$0x1]
        %v1437 = vld [vmem:[#allocation2 + $0x50] sm:$0x1]
        %v1438 = vld [vmem:[#allocation2 + $0x5c] sm:$0x1]
        %v1439 = vld [vmem:[#allocation2 + $0x68] sm:$0x1]
        %v1440 = vld [vmem:[#allocation2 + $0x74] sm:$0x1]
        %v1441 = vld [vmem:[#allocation2] sm:$0xe]
        %v1442 = vld [vmem:[#allocation2 + $0xc] sm:$0xe]
        %v1443 = vld [vmem:[#allocation2 + $0x18] sm:$0xe]
        %v1444 = vld [vmem:[#allocation2 + $0x24] sm:$0xe]
        %v1445 = vld [vmem:[#allocation2 + $0x30] sm:$0xe]
        %v1446 = vld [vmem:[#allocation2 + $0x3c] sm:$0xe]
        %v1447 = vld [vmem:[#allocation2 + $0x48] sm:$0xe]
        %v1448 = vld [vmem:[#allocation2 + $0x54] sm:$0xe]
        %v1449 = vld [vmem:[#allocation2 + $0x60] sm:$0xe]
        %v1450 = vld [vmem:[#allocation2 + $0x6c] sm:$0xe]
        %v1471 = vunpack.c.l.b16 %v1411
        %v1472 = vunpack.c.l.b16 %v1412
        %v1473 = vunpack.c.l.b16 %v1413
        %v1474 = vunpack.c.l.b16 %v1414
        %v1475 = vunpack.c.l.b16 %v1415
        %v1476 = vunpack.c.l.b16 %v1416
        %v1477 = vunpack.c.l.b16 %v1417
        %v1478 = vunpack.c.l.b16 %v1418
        %v1479 = vunpack.c.l.b16 %v1419
        %v1480 = vunpack.c.l.b16 %v1420
        %v1481 = vunpack.c.l.b16 %v1421
        %v1482 = vunpack.c.l.b16 %v1422
        %v1483 = vunpack.c.l.b16 %v1423
        %v1484 = vunpack.c.l.b16 %v1424
        %v1485 = vunpack.c.l.b16 %v1425
        %v1486 = vunpack.c.l.b16 %v1426
        %v1487 = vunpack.c.l.b16 %v1427
        %v1488 = vunpack.c.l.b16 %v1428
        %v1489 = vunpack.c.l.b16 %v1429
        %v1490 = vunpack.c.l.b16 %v1430
        %v1491 = vpack.c.b16 %v1472, %v1471
        %v1492 = vpack.c.b16 %v1474, %v1473
        %v1493 = vpack.c.b16 %v1476, %v1475
        %v1494 = vpack.c.b16 %v1478, %v1477
        %v1495 = vpack.c.b16 %v1480, %v1479
        %v1496 = vpack.c.b16 %v1482, %v1481
        %v1497 = vpack.c.b16 %v1484, %v1483
        %v1498 = vpack.c.b16 %v1486, %v1485
        %v1499 = vpack.c.b16 %v1488, %v1487
        %v1500 = vpack.c.b16 %v1490, %v1489
        %v1521 = vunpack.c.l.b16 %v1431
        %v1522 = vunpack.c.l.b16 %v1432
        %v1523 = vunpack.c.l.b16 %v1433
        %v1524 = vunpack.c.l.b16 %v1434
        %v1525 = vunpack.c.l.b16 %v1435
        %v1526 = vunpack.c.l.b16 %v1436
        %v1527 = vunpack.c.l.b16 %v1437
        %v1528 = vunpack.c.l.b16 %v1438
        %v1529 = vunpack.c.l.b16 %v1439
        %v1530 = vunpack.c.l.b16 %v1440
        %v1531 = vpack.c.b16 %v1521, %v1521
        %v1532 = vpack.c.b16 %v1522, %v1522
        %v1533 = vpack.c.b16 %v1523, %v1523
        %v1534 = vpack.c.b16 %v1524, %v1524
        %v1535 = vpack.c.b16 %v1525, %v1525
        %v1536 = vpack.c.b16 %v1526, %v1526
        %v1537 = vpack.c.b16 %v1527, %v1527
        %v1538 = vpack.c.b16 %v1528, %v1528
        %v1539 = vpack.c.b16 %v1529, %v1529
        %v1540 = vpack.c.b16 %v1530, %v1530
        %vm1541 = vsmask.f32 7424
        %v1543 = vshrl.u32 %v1491, 16
        %v1545 = vshll.u32 %v1491, 16
        %v1547 = vrot.slane %v1545, 1
        %v1548 = vor.u32 %v1543, %v1547
        %v1550 = vshll.u32 %v1531, 16
        %v1552 = vrot.slane %v1550, 1
        %v1553 = vsel %vm1541, %v1548, %v1552
        %v1555 = vshrl.u32 %v1492, 16
        %v1557 = vshll.u32 %v1492, 16
        %v1559 = vrot.slane %v1557, 1
        %v1560 = vor.u32 %v1555, %v1559
        %v1562 = vshll.u32 %v1532, 16
        %v1564 = vrot.slane %v1562, 1
        %v1565 = vsel %vm1541, %v1560, %v1564
        %v1567 = vshrl.u32 %v1493, 16
        %v1569 = vshll.u32 %v1493, 16
        %v1571 = vrot.slane %v1569, 1
        %v1572 = vor.u32 %v1567, %v1571
        %v1574 = vshll.u32 %v1533, 16
        %v1576 = vrot.slane %v1574, 1
        %v1577 = vsel %vm1541, %v1572, %v1576
        %v1579 = vshrl.u32 %v1494, 16
        %v1581 = vshll.u32 %v1494, 16
        %v1583 = vrot.slane %v1581, 1
        %v1584 = vor.u32 %v1579, %v1583
        %v1586 = vshll.u32 %v1534, 16
        %v1588 = vrot.slane %v1586, 1
        %v1589 = vsel %vm1541, %v1584, %v1588
        %v1591 = vshrl.u32 %v1495, 16
        %v1593 = vshll.u32 %v1495, 16
        %v1595 = vrot.slane %v1593, 1
        %v1596 = vor.u32 %v1591, %v1595
        %v1598 = vshll.u32 %v1535, 16
        %v1600 = vrot.slane %v1598, 1
        %v1601 = vsel %vm1541, %v1596, %v1600
        %v1603 = vshrl.u32 %v1496, 16
        %v1605 = vshll.u32 %v1496, 16
        %v1607 = vrot.slane %v1605, 1
        %v1608 = vor.u32 %v1603, %v1607
        %v1610 = vshll.u32 %v1536, 16
        %v1612 = vrot.slane %v1610, 1
        %v1613 = vsel %vm1541, %v1608, %v1612
        %v1615 = vshrl.u32 %v1497, 16
        %v1617 = vshll.u32 %v1497, 16
        %v1619 = vrot.slane %v1617, 1
        %v1620 = vor.u32 %v1615, %v1619
        %v1622 = vshll.u32 %v1537, 16
        %v1624 = vrot.slane %v1622, 1
        %v1625 = vsel %vm1541, %v1620, %v1624
        %v1627 = vshrl.u32 %v1498, 16
        %v1629 = vshll.u32 %v1498, 16
        %v1631 = vrot.slane %v1629, 1
        %v1632 = vor.u32 %v1627, %v1631
        %v1634 = vshll.u32 %v1538, 16
        %v1636 = vrot.slane %v1634, 1
        %v1637 = vsel %vm1541, %v1632, %v1636
        %v1639 = vshrl.u32 %v1499, 16
        %v1641 = vshll.u32 %v1499, 16
        %v1643 = vrot.slane %v1641, 1
        %v1644 = vor.u32 %v1639, %v1643
        %v1646 = vshll.u32 %v1539, 16
        %v1648 = vrot.slane %v1646, 1
        %v1649 = vsel %vm1541, %v1644, %v1648
        %v1651 = vshrl.u32 %v1500, 16
        %v1653 = vshll.u32 %v1500, 16
        %v1655 = vrot.slane %v1653, 1
        %v1656 = vor.u32 %v1651, %v1655
        %v1658 = vshll.u32 %v1540, 16
        %v1660 = vrot.slane %v1658, 1
        %v1661 = vsel %vm1541, %v1656, %v1660
        %v1682 = vunpack.c.l.b16 %v1441
        %v1683 = vunpack.c.l.b16 %v1442
        %v1684 = vunpack.c.l.b16 %v1443
        %v1685 = vunpack.c.l.b16 %v1444
        %v1686 = vunpack.c.l.b16 %v1445
        %v1687 = vunpack.c.l.b16 %v1446
        %v1688 = vunpack.c.l.b16 %v1447
        %v1689 = vunpack.c.l.b16 %v1448
        %v1690 = vunpack.c.l.b16 %v1449
        %v1691 = vunpack.c.l.b16 %v1450
        %v1692 = vpack.c.b16 %v1472, %v1682
        %v1693 = vpack.c.b16 %v1474, %v1683
        %v1694 = vpack.c.b16 %v1476, %v1684
        %v1695 = vpack.c.b16 %v1478, %v1685
        %v1696 = vpack.c.b16 %v1480, %v1686
        %v1697 = vpack.c.b16 %v1482, %v1687
        %v1698 = vpack.c.b16 %v1484, %v1688
        %v1699 = vpack.c.b16 %v1486, %v1689
        %v1700 = vpack.c.b16 %v1488, %v1690
        %v1701 = vpack.c.b16 %v1490, %v1691
        %vm1702 = vcmask 1046528
        %v1703 = vrot.slane %v1692, 1
        %v1704 = vrot.slane %v1531, 1
        %v1705 = vsel %vm1702, %v1703, %v1704
        %v1706 = vrot.slane %v1693, 1
        %v1707 = vrot.slane %v1532, 1
        %v1708 = vsel %vm1702, %v1706, %v1707
        %v1709 = vrot.slane %v1694, 1
        %v1710 = vrot.slane %v1533, 1
        %v1711 = vsel %vm1702, %v1709, %v1710
        %v1712 = vrot.slane %v1695, 1
        %v1713 = vrot.slane %v1534, 1
        %v1714 = vsel %vm1702, %v1712, %v1713
        %v1715 = vrot.slane %v1696, 1
        %v1716 = vrot.slane %v1535, 1
        %v1717 = vsel %vm1702, %v1715, %v1716
        %v1718 = vrot.slane %v1697, 1
        %v1719 = vrot.slane %v1536, 1
        %v1720 = vsel %vm1702, %v1718, %v1719
        %v1721 = vrot.slane %v1698, 1
        %v1722 = vrot.slane %v1537, 1
        %v1723 = vsel %vm1702, %v1721, %v1722
        %v1724 = vrot.slane %v1699, 1
        %v1725 = vrot.slane %v1538, 1
        %v1726 = vsel %vm1702, %v1724, %v1725
        %v1727 = vrot.slane %v1700, 1
        %v1728 = vrot.slane %v1539, 1
        %v1729 = vsel %vm1702, %v1727, %v1728
        %v1730 = vrot.slane %v1701, 1
        %v1731 = vrot.slane %v1540, 1
        %v1732 = vsel %vm1702, %v1730, %v1731
        %v1743 = vld [vmem:[#allocation3] sm:$0xf]
        %v1744 = vld [vmem:[#allocation3 + $0x4] sm:$0xf]
        %v1745 = vld [vmem:[#allocation3 + $0xc] sm:$0xf]
        %v1746 = vld [vmem:[#allocation3 + $0x10] sm:$0xf]
        %v1747 = vld [vmem:[#allocation3 + $0x18] sm:$0xf]
        %v1748 = vld [vmem:[#allocation3 + $0x1c] sm:$0xf]
        %v1749 = vld [vmem:[#allocation3 + $0x24] sm:$0xf]
        %v1750 = vld [vmem:[#allocation3 + $0x28] sm:$0xf]
        %v1751 = vld [vmem:[#allocation3 + $0x30] sm:$0xf]
        %v1752 = vld [vmem:[#allocation3 + $0x34] sm:$0xf]
        %v1753 = vld [vmem:[#allocation3 + $0x3c] sm:$0xf]
        %v1754 = vld [vmem:[#allocation3 + $0x40] sm:$0xf]
        %v1755 = vld [vmem:[#allocation3 + $0x48] sm:$0xf]
        %v1756 = vld [vmem:[#allocation3 + $0x4c] sm:$0xf]
        %v1757 = vld [vmem:[#allocation3 + $0x54] sm:$0xf]
        %v1758 = vld [vmem:[#allocation3 + $0x58] sm:$0xf]
        %v1759 = vld [vmem:[#allocation3 + $0x60] sm:$0xf]
        %v1760 = vld [vmem:[#allocation3 + $0x64] sm:$0xf]
        %v1761 = vld [vmem:[#allocation3 + $0x6c] sm:$0xf]
        %v1762 = vld [vmem:[#allocation3 + $0x70] sm:$0xf]
        %v1763 = vld [vmem:[#allocation3 + $0x8] sm:$0x1]
        %v1764 = vld [vmem:[#allocation3 + $0x14] sm:$0x1]
        %v1765 = vld [vmem:[#allocation3 + $0x20] sm:$0x1]
        %v1766 = vld [vmem:[#allocation3 + $0x2c] sm:$0x1]
        %v1767 = vld [vmem:[#allocation3 + $0x38] sm:$0x1]
        %v1768 = vld [vmem:[#allocation3 + $0x44] sm:$0x1]
        %v1769 = vld [vmem:[#allocation3 + $0x50] sm:$0x1]
        %v1770 = vld [vmem:[#allocation3 + $0x5c] sm:$0x1]
        %v1771 = vld [vmem:[#allocation3 + $0x68] sm:$0x1]
        %v1772 = vld [vmem:[#allocation3 + $0x74] sm:$0x1]
        %v1773 = vld [vmem:[#allocation3] sm:$0xe]
        %v1774 = vld [vmem:[#allocation3 + $0xc] sm:$0xe]
        %v1775 = vld [vmem:[#allocation3 + $0x18] sm:$0xe]
        %v1776 = vld [vmem:[#allocation3 + $0x24] sm:$0xe]
        %v1777 = vld [vmem:[#allocation3 + $0x30] sm:$0xe]
        %v1778 = vld [vmem:[#allocation3 + $0x3c] sm:$0xe]
        %v1779 = vld [vmem:[#allocation3 + $0x48] sm:$0xe]
        %v1780 = vld [vmem:[#allocation3 + $0x54] sm:$0xe]
        %v1781 = vld [vmem:[#allocation3 + $0x60] sm:$0xe]
        %v1782 = vld [vmem:[#allocation3 + $0x6c] sm:$0xe]
        %v1803 = vunpack.c.l.b16 %v1743
        %v1804 = vunpack.c.l.b16 %v1744
        %v1805 = vunpack.c.l.b16 %v1745
        %v1806 = vunpack.c.l.b16 %v1746
        %v1807 = vunpack.c.l.b16 %v1747
        %v1808 = vunpack.c.l.b16 %v1748
        %v1809 = vunpack.c.l.b16 %v1749
        %v1810 = vunpack.c.l.b16 %v1750
        %v1811 = vunpack.c.l.b16 %v1751
        %v1812 = vunpack.c.l.b16 %v1752
        %v1813 = vunpack.c.l.b16 %v1753
        %v1814 = vunpack.c.l.b16 %v1754
        %v1815 = vunpack.c.l.b16 %v1755
        %v1816 = vunpack.c.l.b16 %v1756
        %v1817 = vunpack.c.l.b16 %v1757
        %v1818 = vunpack.c.l.b16 %v1758
        %v1819 = vunpack.c.l.b16 %v1759
        %v1820 = vunpack.c.l.b16 %v1760
        %v1821 = vunpack.c.l.b16 %v1761
        %v1822 = vunpack.c.l.b16 %v1762
        %v1823 = vpack.c.b16 %v1804, %v1803
        %v1824 = vpack.c.b16 %v1806, %v1805
        %v1825 = vpack.c.b16 %v1808, %v1807
        %v1826 = vpack.c.b16 %v1810, %v1809
        %v1827 = vpack.c.b16 %v1812, %v1811
        %v1828 = vpack.c.b16 %v1814, %v1813
        %v1829 = vpack.c.b16 %v1816, %v1815
        %v1830 = vpack.c.b16 %v1818, %v1817
        %v1831 = vpack.c.b16 %v1820, %v1819
        %v1832 = vpack.c.b16 %v1822, %v1821
        %v1853 = vunpack.c.l.b16 %v1763
        %v1854 = vunpack.c.l.b16 %v1764
        %v1855 = vunpack.c.l.b16 %v1765
        %v1856 = vunpack.c.l.b16 %v1766
        %v1857 = vunpack.c.l.b16 %v1767
        %v1858 = vunpack.c.l.b16 %v1768
        %v1859 = vunpack.c.l.b16 %v1769
        %v1860 = vunpack.c.l.b16 %v1770
        %v1861 = vunpack.c.l.b16 %v1771
        %v1862 = vunpack.c.l.b16 %v1772
        %v1863 = vpack.c.b16 %v1853, %v1853
        %v1864 = vpack.c.b16 %v1854, %v1854
        %v1865 = vpack.c.b16 %v1855, %v1855
        %v1866 = vpack.c.b16 %v1856, %v1856
        %v1867 = vpack.c.b16 %v1857, %v1857
        %v1868 = vpack.c.b16 %v1858, %v1858
        %v1869 = vpack.c.b16 %v1859, %v1859
        %v1870 = vpack.c.b16 %v1860, %v1860
        %v1871 = vpack.c.b16 %v1861, %v1861
        %v1872 = vpack.c.b16 %v1862, %v1862
        %v1874 = vshrl.u32 %v1823, 16
        %v1876 = vshll.u32 %v1823, 16
        %v1878 = vrot.slane %v1876, 1
        %v1879 = vor.u32 %v1874, %v1878
        %v1881 = vshll.u32 %v1863, 16
        %v1883 = vrot.slane %v1881, 1
        %v1884 = vsel %vm1541, %v1879, %v1883
        %v1886 = vshrl.u32 %v1824, 16
        %v1888 = vshll.u32 %v1824, 16
        %v1890 = vrot.slane %v1888, 1
        %v1891 = vor.u32 %v1886, %v1890
        %v1893 = vshll.u32 %v1864, 16
        %v1895 = vrot.slane %v1893, 1
        %v1896 = vsel %vm1541, %v1891, %v1895
        %v1898 = vshrl.u32 %v1825, 16
        %v1900 = vshll.u32 %v1825, 16
        %v1902 = vrot.slane %v1900, 1
        %v1903 = vor.u32 %v1898, %v1902
        %v1905 = vshll.u32 %v1865, 16
        %v1907 = vrot.slane %v1905, 1
        %v1908 = vsel %vm1541, %v1903, %v1907
        %v1910 = vshrl.u32 %v1826, 16
        %v1912 = vshll.u32 %v1826, 16
        %v1914 = vrot.slane %v1912, 1
        %v1915 = vor.u32 %v1910, %v1914
        %v1917 = vshll.u32 %v1866, 16
        %v1919 = vrot.slane %v1917, 1
        %v1920 = vsel %vm1541, %v1915, %v1919
        %v1922 = vshrl.u32 %v1827, 16
        %v1924 = vshll.u32 %v1827, 16
        %v1926 = vrot.slane %v1924, 1
        %v1927 = vor.u32 %v1922, %v1926
        %v1929 = vshll.u32 %v1867, 16
        %v1931 = vrot.slane %v1929, 1
        %v1932 = vsel %vm1541, %v1927, %v1931
        %v1934 = vshrl.u32 %v1828, 16
        %v1936 = vshll.u32 %v1828, 16
        %v1938 = vrot.slane %v1936, 1
        %v1939 = vor.u32 %v1934, %v1938
        %v1941 = vshll.u32 %v1868, 16
        %v1943 = vrot.slane %v1941, 1
        %v1944 = vsel %vm1541, %v1939, %v1943
        %v1946 = vshrl.u32 %v1829, 16
        %v1948 = vshll.u32 %v1829, 16
        %v1950 = vrot.slane %v1948, 1
        %v1951 = vor.u32 %v1946, %v1950
        %v1953 = vshll.u32 %v1869, 16
        %v1955 = vrot.slane %v1953, 1
        %v1956 = vsel %vm1541, %v1951, %v1955
        %v1958 = vshrl.u32 %v1830, 16
        %v1960 = vshll.u32 %v1830, 16
        %v1962 = vrot.slane %v1960, 1
        %v1963 = vor.u32 %v1958, %v1962
        %v1965 = vshll.u32 %v1870, 16
        %v1967 = vrot.slane %v1965, 1
        %v1968 = vsel %vm1541, %v1963, %v1967
        %v1970 = vshrl.u32 %v1831, 16
        %v1972 = vshll.u32 %v1831, 16
        %v1974 = vrot.slane %v1972, 1
        %v1975 = vor.u32 %v1970, %v1974
        %v1977 = vshll.u32 %v1871, 16
        %v1979 = vrot.slane %v1977, 1
        %v1980 = vsel %vm1541, %v1975, %v1979
        %v1982 = vshrl.u32 %v1832, 16
        %v1984 = vshll.u32 %v1832, 16
        %v1986 = vrot.slane %v1984, 1
        %v1987 = vor.u32 %v1982, %v1986
        %v1989 = vshll.u32 %v1872, 16
        %v1991 = vrot.slane %v1989, 1
        %v1992 = vsel %vm1541, %v1987, %v1991
        %v2013 = vunpack.c.l.b16 %v1773
        %v2014 = vunpack.c.l.b16 %v1774
        %v2015 = vunpack.c.l.b16 %v1775
        %v2016 = vunpack.c.l.b16 %v1776
        %v2017 = vunpack.c.l.b16 %v1777
        %v2018 = vunpack.c.l.b16 %v1778
        %v2019 = vunpack.c.l.b16 %v1779
        %v2020 = vunpack.c.l.b16 %v1780
        %v2021 = vunpack.c.l.b16 %v1781
        %v2022 = vunpack.c.l.b16 %v1782
        %v2023 = vpack.c.b16 %v1804, %v2013
        %v2024 = vpack.c.b16 %v1806, %v2014
        %v2025 = vpack.c.b16 %v1808, %v2015
        %v2026 = vpack.c.b16 %v1810, %v2016
        %v2027 = vpack.c.b16 %v1812, %v2017
        %v2028 = vpack.c.b16 %v1814, %v2018
        %v2029 = vpack.c.b16 %v1816, %v2019
        %v2030 = vpack.c.b16 %v1818, %v2020
        %v2031 = vpack.c.b16 %v1820, %v2021
        %v2032 = vpack.c.b16 %v1822, %v2022
        %v2033 = vrot.slane %v2023, 1
        %v2034 = vrot.slane %v1863, 1
        %v2035 = vsel %vm1702, %v2033, %v2034
        %v2036 = vrot.slane %v2024, 1
        %v2037 = vrot.slane %v1864, 1
        %v2038 = vsel %vm1702, %v2036, %v2037
        %v2039 = vrot.slane %v2025, 1
        %v2040 = vrot.slane %v1865, 1
        %v2041 = vsel %vm1702, %v2039, %v2040
        %v2042 = vrot.slane %v2026, 1
        %v2043 = vrot.slane %v1866, 1
        %v2044 = vsel %vm1702, %v2042, %v2043
        %v2045 = vrot.slane %v2027, 1
        %v2046 = vrot.slane %v1867, 1
        %v2047 = vsel %vm1702, %v2045, %v2046
        %v2048 = vrot.slane %v2028, 1
        %v2049 = vrot.slane %v1868, 1
        %v2050 = vsel %vm1702, %v2048, %v2049
        %v2051 = vrot.slane %v2029, 1
        %v2052 = vrot.slane %v1869, 1
        %v2053 = vsel %vm1702, %v2051, %v2052
        %v2054 = vrot.slane %v2030, 1
        %v2055 = vrot.slane %v1870, 1
        %v2056 = vsel %vm1702, %v2054, %v2055
        %v2057 = vrot.slane %v2031, 1
        %v2058 = vrot.slane %v1871, 1
        %v2059 = vsel %vm1702, %v2057, %v2058
        %v2060 = vrot.slane %v2032, 1
        %v2061 = vrot.slane %v1872, 1
        %v2062 = vsel %vm1702, %v2060, %v2061
        %v2073 = vld [vmem:[#allocation15] sm:$0xf]
        %v2074 = vld [vmem:[#allocation15 + $0x4] sm:$0xf]
        %v2075 = vld [vmem:[#allocation15 + $0x8] sm:$0xf]
        %v2076 = vld [vmem:[#allocation15 + $0xc] sm:$0xf]
        %v2077 = vld [vmem:[#allocation15 + $0x10] sm:$0xf]
        %v2078 = vld [vmem:[#allocation15 + $0x14] sm:$0xf]
        %v2079 = vld [vmem:[#allocation15 + $0x18] sm:$0xf]
        %v2080 = vld [vmem:[#allocation15 + $0x1c] sm:$0xf]
        %v2081 = vld [vmem:[#allocation15 + $0x20] sm:$0xf]
        %v2082 = vld [vmem:[#allocation15 + $0x24] sm:$0xf]
        %v2083 = vld [vmem:[#allocation15 + $0x28] sm:$0xf]
        %v2084 = vld [vmem:[#allocation15 + $0x2c] sm:$0xf]
        %v2085 = vld [vmem:[#allocation15 + $0x30] sm:$0xf]
        %v2086 = vld [vmem:[#allocation15 + $0x34] sm:$0xf]
        %v2087 = vld [vmem:[#allocation15 + $0x38] sm:$0xf]
        %v2088 = vld [vmem:[#allocation15 + $0x3c] sm:$0xf]
        %v2089 = vld [vmem:[#allocation15 + $0x40] sm:$0xf]
        %v2090 = vld [vmem:[#allocation15 + $0x44] sm:$0xf]
        %v2091 = vld [vmem:[#allocation15 + $0x48] sm:$0xf]
        %v2092 = vld [vmem:[#allocation15 + $0x4c] sm:$0xf]
        %v2093 = vld [vmem:[#allocation15 + $0x50] sm:$0xf]
        %v2094 = vld [vmem:[#allocation15 + $0x54] sm:$0xf]
        %v2095 = vld [vmem:[#allocation15 + $0x58] sm:$0xf]
        %v2096 = vld [vmem:[#allocation15 + $0x5c] sm:$0xf]
        %v2097 = vld [vmem:[#allocation15 + $0x60] sm:$0xf]
        %v2098 = vld [vmem:[#allocation15 + $0x64] sm:$0xf]
        %v2099 = vld [vmem:[#allocation15 + $0x68] sm:$0xf]
        %v2100 = vld [vmem:[#allocation15 + $0x6c] sm:$0xf]
        %v2101 = vld [vmem:[#allocation15 + $0x70] sm:$0xf]
        %v2102 = vld [vmem:[#allocation15 + $0x74] sm:$0xf]
        %v2103 = vld [vmem:[#allocation15 + $0x78] sm:$0xf]
        %v2104 = vld [vmem:[#allocation15 + $0x7c] sm:$0xf]
        %v2105 = vld [vmem:[#allocation15 + $0x80] sm:$0xf]
        %v2106 = vld [vmem:[#allocation15 + $0x84] sm:$0xf]
        %v2107 = vld [vmem:[#allocation15 + $0x88] sm:$0xf]
        %v2108 = vld [vmem:[#allocation15 + $0x8c] sm:$0xf]
        %v2109 = vld [vmem:[#allocation15 + $0x90] sm:$0xf]
        %v2110 = vld [vmem:[#allocation15 + $0x94] sm:$0xf]
        %v2111 = vld [vmem:[#allocation15 + $0x98] sm:$0xf]
        %v2112 = vld [vmem:[#allocation15 + $0x9c] sm:$0xf]
        %v2113 = vld [vmem:[#allocation15 + $0xa0] sm:$0xf]
        %v2114 = vld [vmem:[#allocation15 + $0xa4] sm:$0xf]
        %v2115 = vld [vmem:[#allocation15 + $0xa8] sm:$0xf]
        %v2116 = vld [vmem:[#allocation15 + $0xac] sm:$0xf]
        %v2117 = vld [vmem:[#allocation15 + $0xb0] sm:$0xf]
        %v2118 = vld [vmem:[#allocation15 + $0xb4] sm:$0xf]
        %v2119 = vld [vmem:[#allocation15 + $0xb8] sm:$0xf]
        %v2120 = vld [vmem:[#allocation15 + $0xbc] sm:$0xf]
        %v2121 = vld [vmem:[#allocation16] sm:$0xf]
        %v2122 = vld [vmem:[#allocation16 + $0x4] sm:$0xf]
        %v2123 = vld [vmem:[#allocation16 + $0x8] sm:$0xf]
        %v2124 = vld [vmem:[#allocation16 + $0xc] sm:$0xf]
        %v2125 = vld [vmem:[#allocation16 + $0x10] sm:$0xf]
        %v2126 = vld [vmem:[#allocation16 + $0x14] sm:$0xf]
        %v2127 = vld [vmem:[#allocation16 + $0x18] sm:$0xf]
        %v2128 = vld [vmem:[#allocation16 + $0x1c] sm:$0xf]
        %v2129 = vld [vmem:[#allocation16 + $0x20] sm:$0xf]
        %v2130 = vld [vmem:[#allocation16 + $0x24] sm:$0xf]
        %v2131 = vld [vmem:[#allocation16 + $0x28] sm:$0xf]
        %v2132 = vld [vmem:[#allocation16 + $0x2c] sm:$0xf]
        %v2133 = vld [vmem:[#allocation16 + $0x30] sm:$0xf]
        %v2134 = vld [vmem:[#allocation16 + $0x34] sm:$0xf]
        %v2135 = vld [vmem:[#allocation16 + $0x38] sm:$0xf]
        %v2136 = vld [vmem:[#allocation16 + $0x3c] sm:$0xf]
        %v2137 = vld [vmem:[#allocation16 + $0x40] sm:$0xf]
        %v2138 = vld [vmem:[#allocation16 + $0x44] sm:$0xf]
        %v2139 = vld [vmem:[#allocation16 + $0x48] sm:$0xf]
        %v2140 = vld [vmem:[#allocation16 + $0x4c] sm:$0xf]
        %v2141 = vld [vmem:[#allocation16 + $0x50] sm:$0xf]
        %v2142 = vld [vmem:[#allocation16 + $0x54] sm:$0xf]
        %v2143 = vld [vmem:[#allocation16 + $0x58] sm:$0xf]
        %v2144 = vld [vmem:[#allocation16 + $0x5c] sm:$0xf]
        %v2145 = vld [vmem:[#allocation16 + $0x60] sm:$0xf]
        %v2146 = vld [vmem:[#allocation16 + $0x64] sm:$0xf]
        %v2147 = vld [vmem:[#allocation16 + $0x68] sm:$0xf]
        %v2148 = vld [vmem:[#allocation16 + $0x6c] sm:$0xf]
        %v2149 = vld [vmem:[#allocation16 + $0x70] sm:$0xf]
        %v2150 = vld [vmem:[#allocation16 + $0x74] sm:$0xf]
        %v2151 = vld [vmem:[#allocation16 + $0x78] sm:$0xf]
        %v2152 = vld [vmem:[#allocation16 + $0x7c] sm:$0xf]
        %v2153 = vld [vmem:[#allocation16 + $0x80] sm:$0xf]
        %v2154 = vld [vmem:[#allocation16 + $0x84] sm:$0xf]
        %v2155 = vld [vmem:[#allocation16 + $0x88] sm:$0xf]
        %v2156 = vld [vmem:[#allocation16 + $0x8c] sm:$0xf]
        %v2157 = vld [vmem:[#allocation16 + $0x90] sm:$0xf]
        %v2158 = vld [vmem:[#allocation16 + $0x94] sm:$0xf]
        %v2159 = vld [vmem:[#allocation16 + $0x98] sm:$0xf]
        %v2160 = vld [vmem:[#allocation16 + $0x9c] sm:$0xf]
        %v2161 = vld [vmem:[#allocation16 + $0xa0] sm:$0xf]
        %v2162 = vld [vmem:[#allocation16 + $0xa4] sm:$0xf]
        %v2163 = vld [vmem:[#allocation16 + $0xa8] sm:$0xf]
        %v2164 = vld [vmem:[#allocation16 + $0xac] sm:$0xf]
        %v2165 = vld [vmem:[#allocation16 + $0xb0] sm:$0xf]
        %v2166 = vld [vmem:[#allocation16 + $0xb4] sm:$0xf]
        %v2167 = vld [vmem:[#allocation16 + $0xb8] sm:$0xf]
        %v2168 = vld [vmem:[#allocation16 + $0xbc] sm:$0xf]
        %v2217 = vunpack.c.l.b16 %v2121
        %v2218 = vunpack.c.l.b16 %v2122
        %v2219 = vunpack.c.l.b16 %v2123
        %v2220 = vunpack.c.l.b16 %v2124
        %v2221 = vunpack.c.l.b16 %v2125
        %v2222 = vunpack.c.l.b16 %v2126
        %v2223 = vunpack.c.l.b16 %v2127
        %v2224 = vunpack.c.l.b16 %v2128
        %v2225 = vunpack.c.l.b16 %v2129
        %v2226 = vunpack.c.l.b16 %v2130
        %v2227 = vunpack.c.l.b16 %v2131
        %v2228 = vunpack.c.l.b16 %v2132
        %v2229 = vunpack.c.l.b16 %v2133
        %v2230 = vunpack.c.l.b16 %v2134
        %v2231 = vunpack.c.l.b16 %v2135
        %v2232 = vunpack.c.l.b16 %v2136
        %v2233 = vunpack.c.l.b16 %v2137
        %v2234 = vunpack.c.l.b16 %v2138
        %v2235 = vunpack.c.l.b16 %v2139
        %v2236 = vunpack.c.l.b16 %v2140
        %v2237 = vunpack.c.l.b16 %v2141
        %v2238 = vunpack.c.l.b16 %v2142
        %v2239 = vunpack.c.l.b16 %v2143
        %v2240 = vunpack.c.l.b16 %v2144
        %v2241 = vunpack.c.l.b16 %v2145
        %v2242 = vunpack.c.l.b16 %v2146
        %v2243 = vunpack.c.l.b16 %v2147
        %v2244 = vunpack.c.l.b16 %v2148
        %v2245 = vunpack.c.l.b16 %v2149
        %v2246 = vunpack.c.l.b16 %v2150
        %v2247 = vunpack.c.l.b16 %v2151
        %v2248 = vunpack.c.l.b16 %v2152
        %v2249 = vunpack.c.l.b16 %v2153
        %v2250 = vunpack.c.l.b16 %v2154
        %v2251 = vunpack.c.l.b16 %v2155
        %v2252 = vunpack.c.l.b16 %v2156
        %v2253 = vunpack.c.l.b16 %v2157
        %v2254 = vunpack.c.l.b16 %v2158
        %v2255 = vunpack.c.l.b16 %v2159
        %v2256 = vunpack.c.l.b16 %v2160
        %v2257 = vunpack.c.l.b16 %v2161
        %v2258 = vunpack.c.l.b16 %v2162
        %v2259 = vunpack.c.l.b16 %v2163
        %v2260 = vunpack.c.l.b16 %v2164
        %v2261 = vunpack.c.l.b16 %v2165
        %v2262 = vunpack.c.l.b16 %v2166
        %v2263 = vunpack.c.l.b16 %v2167
        %v2264 = vunpack.c.l.b16 %v2168
        %v2265 = vpack.c.b16 %v2218, %v2217
        %v2266 = vpack.c.b16 %v2220, %v2219
        %v2267 = vpack.c.b16 %v2222, %v2221
        %v2268 = vpack.c.b16 %v2224, %v2223
        %v2269 = vpack.c.b16 %v2226, %v2225
        %v2270 = vpack.c.b16 %v2228, %v2227
        %v2271 = vpack.c.b16 %v2230, %v2229
        %v2272 = vpack.c.b16 %v2232, %v2231
        %v2273 = vpack.c.b16 %v2234, %v2233
        %v2274 = vpack.c.b16 %v2236, %v2235
        %v2275 = vpack.c.b16 %v2238, %v2237
        %v2276 = vpack.c.b16 %v2240, %v2239
        %v2277 = vpack.c.b16 %v2242, %v2241
        %v2278 = vpack.c.b16 %v2244, %v2243
        %v2279 = vpack.c.b16 %v2246, %v2245
        %v2280 = vpack.c.b16 %v2248, %v2247
        %v2281 = vpack.c.b16 %v2250, %v2249
        %v2282 = vpack.c.b16 %v2252, %v2251
        %v2283 = vpack.c.b16 %v2254, %v2253
        %v2284 = vpack.c.b16 %v2256, %v2255
        %v2285 = vpack.c.b16 %v2258, %v2257
        %v2286 = vpack.c.b16 %v2260, %v2259
        %v2287 = vpack.c.b16 %v2262, %v2261
        %v2288 = vpack.c.b16 %v2264, %v2263
        %2313 = vmatprep.subr.bf16.mxu0 0
        %2314 = vmatpush1.bf16.msra.mxu0 %v2272
        %2315 = vmatprep.subr.bf16.mxu0 0
        %2316 = vmatpush1.bf16.msra.mxu0 %v2271
        %2317 = vmatprep.subr.bf16.mxu0 0
        %2318 = vmatpush1.bf16.msra.mxu0 %v2270
        %2319 = vmatprep.subr.bf16.mxu0 0
        %2320 = vmatpush1.bf16.msra.mxu0 %v2269
        %2321 = vmatprep.subr.bf16.mxu0 0
        %2322 = vmatpush1.bf16.msra.mxu0 %v2268
        %2323 = vmatprep.subr.bf16.mxu0 0
        %2324 = vmatpush1.bf16.msra.mxu0 %v2267
        %2325 = vmatprep.subr.bf16.mxu0 0
        %2326 = vmatpush1.bf16.msra.mxu0 %v2266
        %2327 = vmatprep.subr.bf16.mxu0 0
        %2328 = vmatpush1.bf16.msra.mxu0 %v2265
        %2329 = vmatprep.subr.bf16.mxu0 0
        %2330 = vmatpush2.bf16.msra.mxu0 %v2280
        %2331 = vmatprep.subr.bf16.mxu0 0
        %2332 = vmatpush2.bf16.msra.mxu0 %v2279
        %2333 = vmatprep.subr.bf16.mxu0 0
        %2334 = vmatpush2.bf16.msra.mxu0 %v2278
        %2335 = vmatprep.subr.bf16.mxu0 0
        %2336 = vmatpush2.bf16.msra.mxu0 %v2277
        %2337 = vmatprep.subr.bf16.mxu0 0
        %2338 = vmatpush2.bf16.msra.mxu0 %v2276
        %2339 = vmatprep.subr.bf16.mxu0 0
        %2340 = vmatpush2.bf16.msra.mxu0 %v2275
        %2341 = vmatprep.subr.bf16.mxu0 0
        %2342 = vmatpush2.bf16.msra.mxu0 %v2274
        %2343 = vmatprep.subr.bf16.mxu0 0
        %2344 = vmatpush2.bf16.msra.mxu0 %v2273
        %2345 = vmatprep.mubr.bf16.mxu0 %v1884
        %2346 = vmatmul.mubr.bf16.gmra.mxu0 %v1823
        %v2347 = vpop.f32.mrf.mxu0
        %v2348 = vadd.f32 0.0, %v2347
        %v2349 = vpop.f32.mrf.mxu0
        %v2350 = vpop.f32.mrf.mxu0
        %v2351 = vadd.f32 0.0, %v2350
        %v2352 = vpop.f32.mrf.mxu0
        %2353 = vmatprep.mubr.bf16.mxu0 %v1896
        %2354 = vmatmul.mubr.bf16.gmra.mxu0 %v1824
        %v2355 = vpop.f32.mrf.mxu0
        %v2356 = vadd.f32 0.0, %v2355
        %v2357 = vpop.f32.mrf.mxu0
        %v2358 = vpop.f32.mrf.mxu0
        %v2359 = vadd.f32 0.0, %v2358
        %v2360 = vpop.f32.mrf.mxu0
        %2361 = vmatprep.mubr.bf16.mxu0 %v1908
        %2362 = vmatmul.mubr.bf16.gmra.mxu0 %v1825
        %v2363 = vpop.f32.mrf.mxu0
        %v2364 = vadd.f32 0.0, %v2363
        %v2365 = vpop.f32.mrf.mxu0
        %v2366 = vpop.f32.mrf.mxu0
        %v2367 = vadd.f32 0.0, %v2366
        %v2368 = vpop.f32.mrf.mxu0
        %2369 = vmatprep.mubr.bf16.mxu0 %v1920
        %2370 = vmatmul.mubr.bf16.gmra.mxu0 %v1826
        %v2371 = vpop.f32.mrf.mxu0
        %v2372 = vadd.f32 0.0, %v2371
        %v2373 = vpop.f32.mrf.mxu0
        %v2374 = vpop.f32.mrf.mxu0
        %v2375 = vadd.f32 0.0, %v2374
        %v2376 = vpop.f32.mrf.mxu0
        %2377 = vmatprep.mubr.bf16.mxu0 %v1932
        %2378 = vmatmul.mubr.bf16.gmra.mxu0 %v1827
        %v2379 = vpop.f32.mrf.mxu0
        %v2380 = vadd.f32 0.0, %v2379
        %v2381 = vpop.f32.mrf.mxu0
        %v2382 = vpop.f32.mrf.mxu0
        %v2383 = vadd.f32 0.0, %v2382
        %v2384 = vpop.f32.mrf.mxu0
        %2385 = vmatprep.mubr.bf16.mxu0 %v1944
        %2386 = vmatmul.mubr.bf16.gmra.mxu0 %v1828
        %v2387 = vpop.f32.mrf.mxu0
        %v2388 = vadd.f32 0.0, %v2387
        %v2389 = vpop.f32.mrf.mxu0
        %v2390 = vpop.f32.mrf.mxu0
        %v2391 = vadd.f32 0.0, %v2390
        %v2392 = vpop.f32.mrf.mxu0
        %2393 = vmatprep.mubr.bf16.mxu0 %v1956
        %2394 = vmatmul.mubr.bf16.gmra.mxu0 %v1829
        %v2395 = vpop.f32.mrf.mxu0
        %v2396 = vadd.f32 0.0, %v2395
        %v2397 = vpop.f32.mrf.mxu0
        %v2398 = vpop.f32.mrf.mxu0
        %v2399 = vadd.f32 0.0, %v2398
        %v2400 = vpop.f32.mrf.mxu0
        %2401 = vmatprep.mubr.bf16.mxu0 %v1968
        %2402 = vmatmul.mubr.bf16.gmra.mxu0 %v1830
        %v2403 = vpop.f32.mrf.mxu0
        %v2404 = vadd.f32 0.0, %v2403
        %v2405 = vpop.f32.mrf.mxu0
        %v2406 = vpop.f32.mrf.mxu0
        %v2407 = vadd.f32 0.0, %v2406
        %v2408 = vpop.f32.mrf.mxu0
        %2409 = vdwg.mxu0
        %2410 = vmatprep.subr.bf16.mxu0 0
        %2411 = vmatpush1.bf16.msra.mxu0 %v2288
        %2412 = vmatprep.subr.bf16.mxu0 0
        %2413 = vmatpush1.bf16.msra.mxu0 %v2287
        %2414 = vmatprep.subr.bf16.mxu0 0
        %2415 = vmatpush1.bf16.msra.mxu0 %v2286
        %2416 = vmatprep.subr.bf16.mxu0 0
        %2417 = vmatpush1.bf16.msra.mxu0 %v2285
        %2418 = vmatprep.subr.bf16.mxu0 0
        %2419 = vmatpush1.bf16.msra.mxu0 %v2284
        %2420 = vmatprep.subr.bf16.mxu0 0
        %2421 = vmatpush1.bf16.msra.mxu0 %v2283
        %2422 = vmatprep.subr.bf16.mxu0 0
        %2423 = vmatpush1.bf16.msra.mxu0 %v2282
        %2424 = vmatprep.subr.bf16.mxu0 0
        %2425 = vmatpush1.bf16.msra.mxu0 %v2281
        %2426 = vmatprep.subr.bf16.mxu0 0
        %2427 = vmatpush2.bf16.msra.mxu0 0
        %2428 = vmatprep.subr.bf16.mxu0 0
        %2429 = vmatpush2.bf16.msra.mxu0 0
        %2430 = vmatprep.subr.bf16.mxu0 0
        %2431 = vmatpush2.bf16.msra.mxu0 0
        %2432 = vmatprep.subr.bf16.mxu0 0
        %2433 = vmatpush2.bf16.msra.mxu0 0
        %2434 = vmatprep.subr.bf16.mxu0 0
        %2435 = vmatpush2.bf16.msra.mxu0 0
        %2436 = vmatprep.subr.bf16.mxu0 0
        %2437 = vmatpush2.bf16.msra.mxu0 0
        %2438 = vmatprep.subr.bf16.mxu0 0
        %2439 = vmatpush2.bf16.msra.mxu0 0
        %2440 = vmatprep.subr.bf16.mxu0 0
        %2441 = vmatpush2.bf16.msra.mxu0 0
        %2442 = vmatprep.mubr.bf16.mxu0 0
        %2443 = vmatmul.mubr.bf16.gmra.mxu0 %v2035
        %v2444 = vpop.f32.mrf.mxu0
        %v2445 = vadd.f32 %v2348, %v2444
        %v2446 = vpop.f32.mrf.mxu0
        %v2447 = vpop.f32.mrf.mxu0
        %v2448 = vadd.f32 %v2351, %v2447
        %v2449 = vpop.f32.mrf.mxu0
        %2450 = vmatprep.mubr.bf16.mxu0 0
        %2451 = vmatmul.mubr.bf16.gmra.mxu0 %v2038
        %v2452 = vpop.f32.mrf.mxu0
        %v2453 = vadd.f32 %v2356, %v2452
        %v2454 = vpop.f32.mrf.mxu0
        %v2455 = vpop.f32.mrf.mxu0
        %v2456 = vadd.f32 %v2359, %v2455
        %v2457 = vpop.f32.mrf.mxu0
        %2458 = vmatprep.mubr.bf16.mxu0 0
        %2459 = vmatmul.mubr.bf16.gmra.mxu0 %v2041
        %v2460 = vpop.f32.mrf.mxu0
        %v2461 = vadd.f32 %v2364, %v2460
        %v2462 = vpop.f32.mrf.mxu0
        %v2463 = vpop.f32.mrf.mxu0
        %v2464 = vadd.f32 %v2367, %v2463
        %v2465 = vpop.f32.mrf.mxu0
        %2466 = vmatprep.mubr.bf16.mxu0 0
        %2467 = vmatmul.mubr.bf16.gmra.mxu0 %v2044
        %v2468 = vpop.f32.mrf.mxu0
        %v2469 = vadd.f32 %v2372, %v2468
        %v2470 = vpop.f32.mrf.mxu0
        %v2471 = vpop.f32.mrf.mxu0
        %v2472 = vadd.f32 %v2375, %v2471
        %v2473 = vpop.f32.mrf.mxu0
        %2474 = vmatprep.mubr.bf16.mxu0 0
        %2475 = vmatmul.mubr.bf16.gmra.mxu0 %v2047
        %v2476 = vpop.f32.mrf.mxu0
        %v2477 = vadd.f32 %v2380, %v2476
        %v2478 = vpop.f32.mrf.mxu0
        %v2479 = vpop.f32.mrf.mxu0
        %v2480 = vadd.f32 %v2383, %v2479
        %v2481 = vpop.f32.mrf.mxu0
        %2482 = vmatprep.mubr.bf16.mxu0 0
        %2483 = vmatmul.mubr.bf16.gmra.mxu0 %v2050
        %v2484 = vpop.f32.mrf.mxu0
        %v2485 = vadd.f32 %v2388, %v2484
        %v2486 = vpop.f32.mrf.mxu0
        %v2487 = vpop.f32.mrf.mxu0
        %v2488 = vadd.f32 %v2391, %v2487
        %v2489 = vpop.f32.mrf.mxu0
        %2490 = vmatprep.mubr.bf16.mxu0 0
        %2491 = vmatmul.mubr.bf16.gmra.mxu0 %v2053
        %v2492 = vpop.f32.mrf.mxu0
        %v2493 = vadd.f32 %v2396, %v2492
        %v2494 = vpop.f32.mrf.mxu0
        %v2495 = vpop.f32.mrf.mxu0
        %v2496 = vadd.f32 %v2399, %v2495
        %v2497 = vpop.f32.mrf.mxu0
        %2498 = vmatprep.mubr.bf16.mxu0 0
        %2499 = vmatmul.mubr.bf16.gmra.mxu0 %v2056
        %v2500 = vpop.f32.mrf.mxu0
        %v2501 = vadd.f32 %v2404, %v2500
        %v2502 = vpop.f32.mrf.mxu0
        %v2503 = vpop.f32.mrf.mxu0
        %v2504 = vadd.f32 %v2407, %v2503
        %v2505 = vpop.f32.mrf.mxu0
        %2506 = vdwg.mxu0
        %v2555 = vunpack.c.l.b16 %v2073
        %v2556 = vunpack.c.l.b16 %v2074
        %v2557 = vunpack.c.l.b16 %v2075
        %v2558 = vunpack.c.l.b16 %v2076
        %v2559 = vunpack.c.l.b16 %v2077
        %v2560 = vunpack.c.l.b16 %v2078
        %v2561 = vunpack.c.l.b16 %v2079
        %v2562 = vunpack.c.l.b16 %v2080
        %v2563 = vunpack.c.l.b16 %v2081
        %v2564 = vunpack.c.l.b16 %v2082
        %v2565 = vunpack.c.l.b16 %v2083
        %v2566 = vunpack.c.l.b16 %v2084
        %v2567 = vunpack.c.l.b16 %v2085
        %v2568 = vunpack.c.l.b16 %v2086
        %v2569 = vunpack.c.l.b16 %v2087
        %v2570 = vunpack.c.l.b16 %v2088
        %v2571 = vunpack.c.l.b16 %v2089
        %v2572 = vunpack.c.l.b16 %v2090
        %v2573 = vunpack.c.l.b16 %v2091
        %v2574 = vunpack.c.l.b16 %v2092
        %v2575 = vunpack.c.l.b16 %v2093
        %v2576 = vunpack.c.l.b16 %v2094
        %v2577 = vunpack.c.l.b16 %v2095
        %v2578 = vunpack.c.l.b16 %v2096
        %v2579 = vunpack.c.l.b16 %v2097
        %v2580 = vunpack.c.l.b16 %v2098
        %v2581 = vunpack.c.l.b16 %v2099
        %v2582 = vunpack.c.l.b16 %v2100
        %v2583 = vunpack.c.l.b16 %v2101
        %v2584 = vunpack.c.l.b16 %v2102
        %v2585 = vunpack.c.l.b16 %v2103
        %v2586 = vunpack.c.l.b16 %v2104
        %v2587 = vunpack.c.l.b16 %v2105
        %v2588 = vunpack.c.l.b16 %v2106
        %v2589 = vunpack.c.l.b16 %v2107
        %v2590 = vunpack.c.l.b16 %v2108
        %v2591 = vunpack.c.l.b16 %v2109
        %v2592 = vunpack.c.l.b16 %v2110
        %v2593 = vunpack.c.l.b16 %v2111
        %v2594 = vunpack.c.l.b16 %v2112
        %v2595 = vunpack.c.l.b16 %v2113
        %v2596 = vunpack.c.l.b16 %v2114
        %v2597 = vunpack.c.l.b16 %v2115
        %v2598 = vunpack.c.l.b16 %v2116
        %v2599 = vunpack.c.l.b16 %v2117
        %v2600 = vunpack.c.l.b16 %v2118
        %v2601 = vunpack.c.l.b16 %v2119
        %v2602 = vunpack.c.l.b16 %v2120
        %v2603 = vpack.c.b16 %v2556, %v2555
        %v2604 = vpack.c.b16 %v2558, %v2557
        %v2605 = vpack.c.b16 %v2560, %v2559
        %v2606 = vpack.c.b16 %v2562, %v2561
        %v2607 = vpack.c.b16 %v2564, %v2563
        %v2608 = vpack.c.b16 %v2566, %v2565
        %v2609 = vpack.c.b16 %v2568, %v2567
        %v2610 = vpack.c.b16 %v2570, %v2569
        %v2611 = vpack.c.b16 %v2572, %v2571
        %v2612 = vpack.c.b16 %v2574, %v2573
        %v2613 = vpack.c.b16 %v2576, %v2575
        %v2614 = vpack.c.b16 %v2578, %v2577
        %v2615 = vpack.c.b16 %v2580, %v2579
        %v2616 = vpack.c.b16 %v2582, %v2581
        %v2617 = vpack.c.b16 %v2584, %v2583
        %v2618 = vpack.c.b16 %v2586, %v2585
        %v2619 = vpack.c.b16 %v2588, %v2587
        %v2620 = vpack.c.b16 %v2590, %v2589
        %v2621 = vpack.c.b16 %v2592, %v2591
        %v2622 = vpack.c.b16 %v2594, %v2593
        %v2623 = vpack.c.b16 %v2596, %v2595
        %v2624 = vpack.c.b16 %v2598, %v2597
        %v2625 = vpack.c.b16 %v2600, %v2599
        %v2626 = vpack.c.b16 %v2602, %v2601
        %2651 = vmatprep.subr.bf16.mxu0 0
        %2652 = vmatpush1.bf16.msra.mxu0 %v2610
        %2653 = vmatprep.subr.bf16.mxu0 0
        %2654 = vmatpush1.bf16.msra.mxu0 %v2609
        %2655 = vmatprep.subr.bf16.mxu0 0
        %2656 = vmatpush1.bf16.msra.mxu0 %v2608
        %2657 = vmatprep.subr.bf16.mxu0 0
        %2658 = vmatpush1.bf16.msra.mxu0 %v2607
        %2659 = vmatprep.subr.bf16.mxu0 0
        %2660 = vmatpush1.bf16.msra.mxu0 %v2606
        %2661 = vmatprep.subr.bf16.mxu0 0
        %2662 = vmatpush1.bf16.msra.mxu0 %v2605
        %2663 = vmatprep.subr.bf16.mxu0 0
        %2664 = vmatpush1.bf16.msra.mxu0 %v2604
        %2665 = vmatprep.subr.bf16.mxu0 0
        %2666 = vmatpush1.bf16.msra.mxu0 %v2603
        %2667 = vmatprep.subr.bf16.mxu0 0
        %2668 = vmatpush2.bf16.msra.mxu0 %v2618
        %2669 = vmatprep.subr.bf16.mxu0 0
        %2670 = vmatpush2.bf16.msra.mxu0 %v2617
        %2671 = vmatprep.subr.bf16.mxu0 0
        %2672 = vmatpush2.bf16.msra.mxu0 %v2616
        %2673 = vmatprep.subr.bf16.mxu0 0
        %2674 = vmatpush2.bf16.msra.mxu0 %v2615
        %2675 = vmatprep.subr.bf16.mxu0 0
        %2676 = vmatpush2.bf16.msra.mxu0 %v2614
        %2677 = vmatprep.subr.bf16.mxu0 0
        %2678 = vmatpush2.bf16.msra.mxu0 %v2613
        %2679 = vmatprep.subr.bf16.mxu0 0
        %2680 = vmatpush2.bf16.msra.mxu0 %v2612
        %2681 = vmatprep.subr.bf16.mxu0 0
        %2682 = vmatpush2.bf16.msra.mxu0 %v2611
        %2683 = vmatprep.mubr.bf16.mxu0 %v1553
        %2684 = vmatmul.mubr.bf16.gmra.mxu0 %v1491
        %v2685 = vpop.f32.mrf.mxu0
        %v2686 = vadd.f32 %v2445, %v2685
        %v2687 = vpop.f32.mrf.mxu0
        %v2688 = vpop.f32.mrf.mxu0
        %v2689 = vadd.f32 %v2448, %v2688
        %v2690 = vpop.f32.mrf.mxu0
        %2691 = vmatprep.mubr.bf16.mxu0 %v1565
        %2692 = vmatmul.mubr.bf16.gmra.mxu0 %v1492
        %v2693 = vpop.f32.mrf.mxu0
        %v2694 = vadd.f32 %v2453, %v2693
        %v2695 = vpop.f32.mrf.mxu0
        %v2696 = vpop.f32.mrf.mxu0
        %v2697 = vadd.f32 %v2456, %v2696
        %v2698 = vpop.f32.mrf.mxu0
        %2699 = vmatprep.mubr.bf16.mxu0 %v1577
        %2700 = vmatmul.mubr.bf16.gmra.mxu0 %v1493
        %v2701 = vpop.f32.mrf.mxu0
        %v2702 = vadd.f32 %v2461, %v2701
        %v2703 = vpop.f32.mrf.mxu0
        %v2704 = vpop.f32.mrf.mxu0
        %v2705 = vadd.f32 %v2464, %v2704
        %v2706 = vpop.f32.mrf.mxu0
        %2707 = vmatprep.mubr.bf16.mxu0 %v1589
        %2708 = vmatmul.mubr.bf16.gmra.mxu0 %v1494
        %v2709 = vpop.f32.mrf.mxu0
        %v2710 = vadd.f32 %v2469, %v2709
        %v2711 = vpop.f32.mrf.mxu0
        %v2712 = vpop.f32.mrf.mxu0
        %v2713 = vadd.f32 %v2472, %v2712
        %v2714 = vpop.f32.mrf.mxu0
        %2715 = vmatprep.mubr.bf16.mxu0 %v1601
        %2716 = vmatmul.mubr.bf16.gmra.mxu0 %v1495
        %v2717 = vpop.f32.mrf.mxu0
        %v2718 = vadd.f32 %v2477, %v2717
        %v2719 = vpop.f32.mrf.mxu0
        %v2720 = vpop.f32.mrf.mxu0
        %v2721 = vadd.f32 %v2480, %v2720
        %v2722 = vpop.f32.mrf.mxu0
        %2723 = vmatprep.mubr.bf16.mxu0 %v1613
        %2724 = vmatmul.mubr.bf16.gmra.mxu0 %v1496
        %v2725 = vpop.f32.mrf.mxu0
        %v2726 = vadd.f32 %v2485, %v2725
        %v2727 = vpop.f32.mrf.mxu0
        %v2728 = vpop.f32.mrf.mxu0
        %v2729 = vadd.f32 %v2488, %v2728
        %v2730 = vpop.f32.mrf.mxu0
        %2731 = vmatprep.mubr.bf16.mxu0 %v1625
        %2732 = vmatmul.mubr.bf16.gmra.mxu0 %v1497
        %v2733 = vpop.f32.mrf.mxu0
        %v2734 = vadd.f32 %v2493, %v2733
        %v2735 = vpop.f32.mrf.mxu0
        %v2736 = vpop.f32.mrf.mxu0
        %v2737 = vadd.f32 %v2496, %v2736
        %v2738 = vpop.f32.mrf.mxu0
        %2739 = vmatprep.mubr.bf16.mxu0 %v1637
        %2740 = vmatmul.mubr.bf16.gmra.mxu0 %v1498
        %v2741 = vpop.f32.mrf.mxu0
        %v2742 = vadd.f32 %v2501, %v2741
        %v2743 = vpop.f32.mrf.mxu0
        %v2744 = vpop.f32.mrf.mxu0
        %v2745 = vadd.f32 %v2504, %v2744
        %v2746 = vpop.f32.mrf.mxu0
        %2747 = vdwg.mxu0
        %2748 = vmatprep.subr.bf16.mxu0 0
        %2749 = vmatpush1.bf16.msra.mxu0 %v2626
        %2750 = vmatprep.subr.bf16.mxu0 0
        %2751 = vmatpush1.bf16.msra.mxu0 %v2625
        %2752 = vmatprep.subr.bf16.mxu0 0
        %2753 = vmatpush1.bf16.msra.mxu0 %v2624
        %2754 = vmatprep.subr.bf16.mxu0 0
        %2755 = vmatpush1.bf16.msra.mxu0 %v2623
        %2756 = vmatprep.subr.bf16.mxu0 0
        %2757 = vmatpush1.bf16.msra.mxu0 %v2622
        %2758 = vmatprep.subr.bf16.mxu0 0
        %2759 = vmatpush1.bf16.msra.mxu0 %v2621
        %2760 = vmatprep.subr.bf16.mxu0 0
        %2761 = vmatpush1.bf16.msra.mxu0 %v2620
        %2762 = vmatprep.subr.bf16.mxu0 0
        %2763 = vmatpush1.bf16.msra.mxu0 %v2619
        %2764 = vmatprep.subr.bf16.mxu0 0
        %2765 = vmatpush2.bf16.msra.mxu0 0
        %2766 = vmatprep.subr.bf16.mxu0 0
        %2767 = vmatpush2.bf16.msra.mxu0 0
        %2768 = vmatprep.subr.bf16.mxu0 0
        %2769 = vmatpush2.bf16.msra.mxu0 0
        %2770 = vmatprep.subr.bf16.mxu0 0
        %2771 = vmatpush2.bf16.msra.mxu0 0
        %2772 = vmatprep.subr.bf16.mxu0 0
        %2773 = vmatpush2.bf16.msra.mxu0 0
        %2774 = vmatprep.subr.bf16.mxu0 0
        %2775 = vmatpush2.bf16.msra.mxu0 0
        %2776 = vmatprep.subr.bf16.mxu0 0
        %2777 = vmatpush2.bf16.msra.mxu0 0
        %2778 = vmatprep.subr.bf16.mxu0 0
        %2779 = vmatpush2.bf16.msra.mxu0 0
        %2780 = vmatprep.mubr.bf16.mxu0 0
        %2781 = vmatmul.mubr.bf16.gmra.mxu0 %v1705
        %v2782 = vpop.f32.mrf.mxu0
        %v2783 = vadd.f32 %v2686, %v2782
        %v2784 = vpop.f32.mrf.mxu0
        %v2785 = vpop.f32.mrf.mxu0
        %v2786 = vadd.f32 %v2689, %v2785
        %v2787 = vpop.f32.mrf.mxu0
        %2788 = vmatprep.mubr.bf16.mxu0 0
        %2789 = vmatmul.mubr.bf16.gmra.mxu0 %v1708
        %v2790 = vpop.f32.mrf.mxu0
        %v2791 = vadd.f32 %v2694, %v2790
        %v2792 = vpop.f32.mrf.mxu0
        %v2793 = vpop.f32.mrf.mxu0
        %v2794 = vadd.f32 %v2697, %v2793
        %v2795 = vpop.f32.mrf.mxu0
        %2796 = vmatprep.mubr.bf16.mxu0 0
        %2797 = vmatmul.mubr.bf16.gmra.mxu0 %v1711
        %v2798 = vpop.f32.mrf.mxu0
        %v2799 = vadd.f32 %v2702, %v2798
        %v2800 = vpop.f32.mrf.mxu0
        %v2801 = vpop.f32.mrf.mxu0
        %v2802 = vadd.f32 %v2705, %v2801
        %v2803 = vpop.f32.mrf.mxu0
        %2804 = vmatprep.mubr.bf16.mxu0 0
        %2805 = vmatmul.mubr.bf16.gmra.mxu0 %v1714
        %v2806 = vpop.f32.mrf.mxu0
        %v2807 = vadd.f32 %v2710, %v2806
        %v2808 = vpop.f32.mrf.mxu0
        %v2809 = vpop.f32.mrf.mxu0
        %v2810 = vadd.f32 %v2713, %v2809
        %v2811 = vpop.f32.mrf.mxu0
        %2812 = vmatprep.mubr.bf16.mxu0 0
        %2813 = vmatmul.mubr.bf16.gmra.mxu0 %v1717
        %v2814 = vpop.f32.mrf.mxu0
        %v2815 = vadd.f32 %v2718, %v2814
        %v2816 = vpop.f32.mrf.mxu0
        %v2817 = vpop.f32.mrf.mxu0
        %v2818 = vadd.f32 %v2721, %v2817
        %v2819 = vpop.f32.mrf.mxu0
        %2820 = vmatprep.mubr.bf16.mxu0 0
        %2821 = vmatmul.mubr.bf16.gmra.mxu0 %v1720
        %v2822 = vpop.f32.mrf.mxu0
        %v2823 = vadd.f32 %v2726, %v2822
        %v2824 = vpop.f32.mrf.mxu0
        %v2825 = vpop.f32.mrf.mxu0
        %v2826 = vadd.f32 %v2729, %v2825
        %v2827 = vpop.f32.mrf.mxu0
        %2828 = vmatprep.mubr.bf16.mxu0 0
        %2829 = vmatmul.mubr.bf16.gmra.mxu0 %v1723
        %v2830 = vpop.f32.mrf.mxu0
        %v2831 = vadd.f32 %v2734, %v2830
        %v2832 = vpop.f32.mrf.mxu0
        %v2833 = vpop.f32.mrf.mxu0
        %v2834 = vadd.f32 %v2737, %v2833
        %v2835 = vpop.f32.mrf.mxu0
        %2836 = vmatprep.mubr.bf16.mxu0 0
        %2837 = vmatmul.mubr.bf16.gmra.mxu0 %v1726
        %v2838 = vpop.f32.mrf.mxu0
        %v2839 = vadd.f32 %v2742, %v2838
        %v2840 = vpop.f32.mrf.mxu0
        %v2841 = vpop.f32.mrf.mxu0
        %v2842 = vadd.f32 %v2745, %v2841
        %v2843 = vpop.f32.mrf.mxu0
        %2844 = vdwg.mxu0
        %s2845 = scalar_lea.vmem [#allocation15], 192
        %v2846 = vld [vmem:[%s2845] sm:$0xf]
        %v2847 = vld [vmem:[%s2845 + $0x4] sm:$0xf]
        %v2848 = vld [vmem:[%s2845 + $0x8] sm:$0xf]
        %v2849 = vld [vmem:[%s2845 + $0xc] sm:$0xf]
        %v2850 = vld [vmem:[%s2845 + $0x10] sm:$0xf]
        %v2851 = vld [vmem:[%s2845 + $0x14] sm:$0xf]
        %v2852 = vld [vmem:[%s2845 + $0x18] sm:$0xf]
        %v2853 = vld [vmem:[%s2845 + $0x1c] sm:$0xf]
        %v2854 = vld [vmem:[%s2845 + $0x20] sm:$0xf]
        %v2855 = vld [vmem:[%s2845 + $0x24] sm:$0xf]
        %v2856 = vld [vmem:[%s2845 + $0x28] sm:$0xf]
        %v2857 = vld [vmem:[%s2845 + $0x2c] sm:$0xf]
        %v2858 = vld [vmem:[%s2845 + $0x30] sm:$0xf]
        %v2859 = vld [vmem:[%s2845 + $0x34] sm:$0xf]
        %v2860 = vld [vmem:[%s2845 + $0x38] sm:$0xf]
        %v2861 = vld [vmem:[%s2845 + $0x3c] sm:$0xf]
        %v2862 = vld [vmem:[%s2845 + $0x40] sm:$0xf]
        %v2863 = vld [vmem:[%s2845 + $0x44] sm:$0xf]
        %v2864 = vld [vmem:[%s2845 + $0x48] sm:$0xf]
        %v2865 = vld [vmem:[%s2845 + $0x4c] sm:$0xf]
        %v2866 = vld [vmem:[%s2845 + $0x50] sm:$0xf]
        %v2867 = vld [vmem:[%s2845 + $0x54] sm:$0xf]
        %v2868 = vld [vmem:[%s2845 + $0x58] sm:$0xf]
        %v2869 = vld [vmem:[%s2845 + $0x5c] sm:$0xf]
        %v2870 = vld [vmem:[%s2845 + $0x60] sm:$0xf]
        %v2871 = vld [vmem:[%s2845 + $0x64] sm:$0xf]
        %v2872 = vld [vmem:[%s2845 + $0x68] sm:$0xf]
        %v2873 = vld [vmem:[%s2845 + $0x6c] sm:$0xf]
        %v2874 = vld [vmem:[%s2845 + $0x70] sm:$0xf]
        %v2875 = vld [vmem:[%s2845 + $0x74] sm:$0xf]
        %v2876 = vld [vmem:[%s2845 + $0x78] sm:$0xf]
        %v2877 = vld [vmem:[%s2845 + $0x7c] sm:$0xf]
        %v2878 = vld [vmem:[%s2845 + $0x80] sm:$0xf]
        %v2879 = vld [vmem:[%s2845 + $0x84] sm:$0xf]
        %v2880 = vld [vmem:[%s2845 + $0x88] sm:$0xf]
        %v2881 = vld [vmem:[%s2845 + $0x8c] sm:$0xf]
        %v2882 = vld [vmem:[%s2845 + $0x90] sm:$0xf]
        %v2883 = vld [vmem:[%s2845 + $0x94] sm:$0xf]
        %v2884 = vld [vmem:[%s2845 + $0x98] sm:$0xf]
        %v2885 = vld [vmem:[%s2845 + $0x9c] sm:$0xf]
        %v2886 = vld [vmem:[%s2845 + $0xa0] sm:$0xf]
        %v2887 = vld [vmem:[%s2845 + $0xa4] sm:$0xf]
        %v2888 = vld [vmem:[%s2845 + $0xa8] sm:$0xf]
        %v2889 = vld [vmem:[%s2845 + $0xac] sm:$0xf]
        %v2890 = vld [vmem:[%s2845 + $0xb0] sm:$0xf]
        %v2891 = vld [vmem:[%s2845 + $0xb4] sm:$0xf]
        %v2892 = vld [vmem:[%s2845 + $0xb8] sm:$0xf]
        %v2893 = vld [vmem:[%s2845 + $0xbc] sm:$0xf]
        %v2942 = vunpack.c.l.b16 %v2846
        %v2943 = vunpack.c.l.b16 %v2847
        %v2944 = vunpack.c.l.b16 %v2848
        %v2945 = vunpack.c.l.b16 %v2849
        %v2946 = vunpack.c.l.b16 %v2850
        %v2947 = vunpack.c.l.b16 %v2851
        %v2948 = vunpack.c.l.b16 %v2852
        %v2949 = vunpack.c.l.b16 %v2853
        %v2950 = vunpack.c.l.b16 %v2854
        %v2951 = vunpack.c.l.b16 %v2855
        %v2952 = vunpack.c.l.b16 %v2856
        %v2953 = vunpack.c.l.b16 %v2857
        %v2954 = vunpack.c.l.b16 %v2858
        %v2955 = vunpack.c.l.b16 %v2859
        %v2956 = vunpack.c.l.b16 %v2860
        %v2957 = vunpack.c.l.b16 %v2861
        %v2958 = vunpack.c.l.b16 %v2862
        %v2959 = vunpack.c.l.b16 %v2863
        %v2960 = vunpack.c.l.b16 %v2864
        %v2961 = vunpack.c.l.b16 %v2865
        %v2962 = vunpack.c.l.b16 %v2866
        %v2963 = vunpack.c.l.b16 %v2867
        %v2964 = vunpack.c.l.b16 %v2868
        %v2965 = vunpack.c.l.b16 %v2869
        %v2966 = vunpack.c.l.b16 %v2870
        %v2967 = vunpack.c.l.b16 %v2871
        %v2968 = vunpack.c.l.b16 %v2872
        %v2969 = vunpack.c.l.b16 %v2873
        %v2970 = vunpack.c.l.b16 %v2874
        %v2971 = vunpack.c.l.b16 %v2875
        %v2972 = vunpack.c.l.b16 %v2876
        %v2973 = vunpack.c.l.b16 %v2877
        %v2974 = vunpack.c.l.b16 %v2878
        %v2975 = vunpack.c.l.b16 %v2879
        %v2976 = vunpack.c.l.b16 %v2880
        %v2977 = vunpack.c.l.b16 %v2881
        %v2978 = vunpack.c.l.b16 %v2882
        %v2979 = vunpack.c.l.b16 %v2883
        %v2980 = vunpack.c.l.b16 %v2884
        %v2981 = vunpack.c.l.b16 %v2885
        %v2982 = vunpack.c.l.b16 %v2886
        %v2983 = vunpack.c.l.b16 %v2887
        %v2984 = vunpack.c.l.b16 %v2888
        %v2985 = vunpack.c.l.b16 %v2889
        %v2986 = vunpack.c.l.b16 %v2890
        %v2987 = vunpack.c.l.b16 %v2891
        %v2988 = vunpack.c.l.b16 %v2892
        %v2989 = vunpack.c.l.b16 %v2893
        %v2990 = vpack.c.b16 %v2943, %v2942
        %v2991 = vpack.c.b16 %v2945, %v2944
        %v2992 = vpack.c.b16 %v2947, %v2946
        %v2993 = vpack.c.b16 %v2949, %v2948
        %v2994 = vpack.c.b16 %v2951, %v2950
        %v2995 = vpack.c.b16 %v2953, %v2952
        %v2996 = vpack.c.b16 %v2955, %v2954
        %v2997 = vpack.c.b16 %v2957, %v2956
        %v2998 = vpack.c.b16 %v2959, %v2958
        %v2999 = vpack.c.b16 %v2961, %v2960
        %v3000 = vpack.c.b16 %v2963, %v2962
        %v3001 = vpack.c.b16 %v2965, %v2964
        %v3002 = vpack.c.b16 %v2967, %v2966
        %v3003 = vpack.c.b16 %v2969, %v2968
        %v3004 = vpack.c.b16 %v2971, %v2970
        %v3005 = vpack.c.b16 %v2973, %v2972
        %v3006 = vpack.c.b16 %v2975, %v2974
        %v3007 = vpack.c.b16 %v2977, %v2976
        %v3008 = vpack.c.b16 %v2979, %v2978
        %v3009 = vpack.c.b16 %v2981, %v2980
        %v3010 = vpack.c.b16 %v2983, %v2982
        %v3011 = vpack.c.b16 %v2985, %v2984
        %v3012 = vpack.c.b16 %v2987, %v2986
        %v3013 = vpack.c.b16 %v2989, %v2988
        %3038 = vmatprep.subr.bf16.mxu0 0
        %3039 = vmatpush1.bf16.msra.mxu0 %v2997
        %3040 = vmatprep.subr.bf16.mxu0 0
        %3041 = vmatpush1.bf16.msra.mxu0 %v2996
        %3042 = vmatprep.subr.bf16.mxu0 0
        %3043 = vmatpush1.bf16.msra.mxu0 %v2995
        %3044 = vmatprep.subr.bf16.mxu0 0
        %3045 = vmatpush1.bf16.msra.mxu0 %v2994
        %3046 = vmatprep.subr.bf16.mxu0 0
        %3047 = vmatpush1.bf16.msra.mxu0 %v2993
        %3048 = vmatprep.subr.bf16.mxu0 0
        %3049 = vmatpush1.bf16.msra.mxu0 %v2992
        %3050 = vmatprep.subr.bf16.mxu0 0
        %3051 = vmatpush1.bf16.msra.mxu0 %v2991
        %3052 = vmatprep.subr.bf16.mxu0 0
        %3053 = vmatpush1.bf16.msra.mxu0 %v2990
        %3054 = vmatprep.subr.bf16.mxu0 0
        %3055 = vmatpush2.bf16.msra.mxu0 %v3005
        %3056 = vmatprep.subr.bf16.mxu0 0
        %3057 = vmatpush2.bf16.msra.mxu0 %v3004
        %3058 = vmatprep.subr.bf16.mxu0 0
        %3059 = vmatpush2.bf16.msra.mxu0 %v3003
        %3060 = vmatprep.subr.bf16.mxu0 0
        %3061 = vmatpush2.bf16.msra.mxu0 %v3002
        %3062 = vmatprep.subr.bf16.mxu0 0
        %3063 = vmatpush2.bf16.msra.mxu0 %v3001
        %3064 = vmatprep.subr.bf16.mxu0 0
        %3065 = vmatpush2.bf16.msra.mxu0 %v3000
        %3066 = vmatprep.subr.bf16.mxu0 0
        %3067 = vmatpush2.bf16.msra.mxu0 %v2999
        %3068 = vmatprep.subr.bf16.mxu0 0
        %3069 = vmatpush2.bf16.msra.mxu0 %v2998
        %3070 = vmatprep.mubr.bf16.mxu0 %v1565
        %3071 = vmatmul.mubr.bf16.gmra.mxu0 %v1492
        %v3072 = vpop.f32.mrf.mxu0
        %v3073 = vadd.f32 0.0, %v3072
        %v3074 = vpop.f32.mrf.mxu0
        %v3075 = vpop.f32.mrf.mxu0
        %v3076 = vadd.f32 0.0, %v3075
        %v3077 = vpop.f32.mrf.mxu0
        %3078 = vmatprep.mubr.bf16.mxu0 %v1577
        %3079 = vmatmul.mubr.bf16.gmra.mxu0 %v1493
        %v3080 = vpop.f32.mrf.mxu0
        %v3081 = vadd.f32 0.0, %v3080
        %v3082 = vpop.f32.mrf.mxu0
        %v3083 = vpop.f32.mrf.mxu0
        %v3084 = vadd.f32 0.0, %v3083
        %v3085 = vpop.f32.mrf.mxu0
        %3086 = vmatprep.mubr.bf16.mxu0 %v1589
        %3087 = vmatmul.mubr.bf16.gmra.mxu0 %v1494
        %v3088 = vpop.f32.mrf.mxu0
        %v3089 = vadd.f32 0.0, %v3088
        %v3090 = vpop.f32.mrf.mxu0
        %v3091 = vpop.f32.mrf.mxu0
        %v3092 = vadd.f32 0.0, %v3091
        %v3093 = vpop.f32.mrf.mxu0
        %3094 = vmatprep.mubr.bf16.mxu0 %v1601
        %3095 = vmatmul.mubr.bf16.gmra.mxu0 %v1495
        %v3096 = vpop.f32.mrf.mxu0
        %v3097 = vadd.f32 0.0, %v3096
        %v3098 = vpop.f32.mrf.mxu0
        %v3099 = vpop.f32.mrf.mxu0
        %v3100 = vadd.f32 0.0, %v3099
        %v3101 = vpop.f32.mrf.mxu0
        %3102 = vmatprep.mubr.bf16.mxu0 %v1613
        %3103 = vmatmul.mubr.bf16.gmra.mxu0 %v1496
        %v3104 = vpop.f32.mrf.mxu0
        %v3105 = vadd.f32 0.0, %v3104
        %v3106 = vpop.f32.mrf.mxu0
        %v3107 = vpop.f32.mrf.mxu0
        %v3108 = vadd.f32 0.0, %v3107
        %v3109 = vpop.f32.mrf.mxu0
        %3110 = vmatprep.mubr.bf16.mxu0 %v1625
        %3111 = vmatmul.mubr.bf16.gmra.mxu0 %v1497
        %v3112 = vpop.f32.mrf.mxu0
        %v3113 = vadd.f32 0.0, %v3112
        %v3114 = vpop.f32.mrf.mxu0
        %v3115 = vpop.f32.mrf.mxu0
        %v3116 = vadd.f32 0.0, %v3115
        %v3117 = vpop.f32.mrf.mxu0
        %3118 = vmatprep.mubr.bf16.mxu0 %v1637
        %3119 = vmatmul.mubr.bf16.gmra.mxu0 %v1498
        %v3120 = vpop.f32.mrf.mxu0
        %v3121 = vadd.f32 0.0, %v3120
        %v3122 = vpop.f32.mrf.mxu0
        %v3123 = vpop.f32.mrf.mxu0
        %v3124 = vadd.f32 0.0, %v3123
        %v3125 = vpop.f32.mrf.mxu0
        %3126 = vmatprep.mubr.bf16.mxu0 %v1649
        %3127 = vmatmul.mubr.bf16.gmra.mxu0 %v1499
        %v3128 = vpop.f32.mrf.mxu0
        %v3129 = vadd.f32 0.0, %v3128
        %v3130 = vpop.f32.mrf.mxu0
        %v3131 = vpop.f32.mrf.mxu0
        %v3132 = vadd.f32 0.0, %v3131
        %v3133 = vpop.f32.mrf.mxu0
        %3134 = vdwg.mxu0
        %3135 = vmatprep.subr.bf16.mxu0 0
        %3136 = vmatpush1.bf16.msra.mxu0 %v3013
        %3137 = vmatprep.subr.bf16.mxu0 0
        %3138 = vmatpush1.bf16.msra.mxu0 %v3012
        %3139 = vmatprep.subr.bf16.mxu0 0
        %3140 = vmatpush1.bf16.msra.mxu0 %v3011
        %3141 = vmatprep.subr.bf16.mxu0 0
        %3142 = vmatpush1.bf16.msra.mxu0 %v3010
        %3143 = vmatprep.subr.bf16.mxu0 0
        %3144 = vmatpush1.bf16.msra.mxu0 %v3009
        %3145 = vmatprep.subr.bf16.mxu0 0
        %3146 = vmatpush1.bf16.msra.mxu0 %v3008
        %3147 = vmatprep.subr.bf16.mxu0 0
        %3148 = vmatpush1.bf16.msra.mxu0 %v3007
        %3149 = vmatprep.subr.bf16.mxu0 0
        %3150 = vmatpush1.bf16.msra.mxu0 %v3006
        %3151 = vmatprep.subr.bf16.mxu0 0
        %3152 = vmatpush2.bf16.msra.mxu0 0
        %3153 = vmatprep.subr.bf16.mxu0 0
        %3154 = vmatpush2.bf16.msra.mxu0 0
        %3155 = vmatprep.subr.bf16.mxu0 0
        %3156 = vmatpush2.bf16.msra.mxu0 0
        %3157 = vmatprep.subr.bf16.mxu0 0
        %3158 = vmatpush2.bf16.msra.mxu0 0
        %3159 = vmatprep.subr.bf16.mxu0 0
        %3160 = vmatpush2.bf16.msra.mxu0 0
        %3161 = vmatprep.subr.bf16.mxu0 0
        %3162 = vmatpush2.bf16.msra.mxu0 0
        %3163 = vmatprep.subr.bf16.mxu0 0
        %3164 = vmatpush2.bf16.msra.mxu0 0
        %3165 = vmatprep.subr.bf16.mxu0 0
        %3166 = vmatpush2.bf16.msra.mxu0 0
        %3167 = vmatprep.mubr.bf16.mxu0 0
        %3168 = vmatmul.mubr.bf16.gmra.mxu0 %v1708
        %v3169 = vpop.f32.mrf.mxu0
        %v3170 = vadd.f32 %v3073, %v3169
        %v3171 = vpop.f32.mrf.mxu0
        %v3172 = vpop.f32.mrf.mxu0
        %v3173 = vadd.f32 %v3076, %v3172
        %v3174 = vpop.f32.mrf.mxu0
        %3175 = vmatprep.mubr.bf16.mxu0 0
        %3176 = vmatmul.mubr.bf16.gmra.mxu0 %v1711
        %v3177 = vpop.f32.mrf.mxu0
        %v3178 = vadd.f32 %v3081, %v3177
        %v3179 = vpop.f32.mrf.mxu0
        %v3180 = vpop.f32.mrf.mxu0
        %v3181 = vadd.f32 %v3084, %v3180
        %v3182 = vpop.f32.mrf.mxu0
        %3183 = vmatprep.mubr.bf16.mxu0 0
        %3184 = vmatmul.mubr.bf16.gmra.mxu0 %v1714
        %v3185 = vpop.f32.mrf.mxu0
        %v3186 = vadd.f32 %v3089, %v3185
        %v3187 = vpop.f32.mrf.mxu0
        %v3188 = vpop.f32.mrf.mxu0
        %v3189 = vadd.f32 %v3092, %v3188
        %v3190 = vpop.f32.mrf.mxu0
        %3191 = vmatprep.mubr.bf16.mxu0 0
        %3192 = vmatmul.mubr.bf16.gmra.mxu0 %v1717
        %v3193 = vpop.f32.mrf.mxu0
        %v3194 = vadd.f32 %v3097, %v3193
        %v3195 = vpop.f32.mrf.mxu0
        %v3196 = vpop.f32.mrf.mxu0
        %v3197 = vadd.f32 %v3100, %v3196
        %v3198 = vpop.f32.mrf.mxu0
        %3199 = vmatprep.mubr.bf16.mxu0 0
        %3200 = vmatmul.mubr.bf16.gmra.mxu0 %v1720
        %v3201 = vpop.f32.mrf.mxu0
        %v3202 = vadd.f32 %v3105, %v3201
        %v3203 = vpop.f32.mrf.mxu0
        %v3204 = vpop.f32.mrf.mxu0
        %v3205 = vadd.f32 %v3108, %v3204
        %v3206 = vpop.f32.mrf.mxu0
        %3207 = vmatprep.mubr.bf16.mxu0 0
        %3208 = vmatmul.mubr.bf16.gmra.mxu0 %v1723
        %v3209 = vpop.f32.mrf.mxu0
        %v3210 = vadd.f32 %v3113, %v3209
        %v3211 = vpop.f32.mrf.mxu0
        %v3212 = vpop.f32.mrf.mxu0
        %v3213 = vadd.f32 %v3116, %v3212
        %v3214 = vpop.f32.mrf.mxu0
        %3215 = vmatprep.mubr.bf16.mxu0 0
        %3216 = vmatmul.mubr.bf16.gmra.mxu0 %v1726
        %v3217 = vpop.f32.mrf.mxu0
        %v3218 = vadd.f32 %v3121, %v3217
        %v3219 = vpop.f32.mrf.mxu0
        %v3220 = vpop.f32.mrf.mxu0
        %v3221 = vadd.f32 %v3124, %v3220
        %v3222 = vpop.f32.mrf.mxu0
        %3223 = vmatprep.mubr.bf16.mxu0 0
        %3224 = vmatmul.mubr.bf16.gmra.mxu0 %v1729
        %v3225 = vpop.f32.mrf.mxu0
        %v3226 = vadd.f32 %v3129, %v3225
        %v3227 = vpop.f32.mrf.mxu0
        %v3228 = vpop.f32.mrf.mxu0
        %v3229 = vadd.f32 %v3132, %v3228
        %v3230 = vpop.f32.mrf.mxu0
        %3231 = vdwg.mxu0
        %v3232 = vadd.f32 %v2783, %v3170
        %v3233 = vadd.f32 %v2786, %v3173
        %v3234 = vadd.f32 %v2791, %v3178
        %v3235 = vadd.f32 %v2794, %v3181
        %v3236 = vadd.f32 %v2799, %v3186
        %v3237 = vadd.f32 %v2802, %v3189
        %v3238 = vadd.f32 %v2807, %v3194
        %v3239 = vadd.f32 %v2810, %v3197
        %v3240 = vadd.f32 %v2815, %v3202
        %v3241 = vadd.f32 %v2818, %v3205
        %v3242 = vadd.f32 %v2823, %v3210
        %v3243 = vadd.f32 %v2826, %v3213
        %v3244 = vadd.f32 %v2831, %v3218
        %v3245 = vadd.f32 %v2834, %v3221
        %v3246 = vadd.f32 %v2839, %v3226
        %v3247 = vadd.f32 %v2842, %v3229
        %s3248 = scalar_lea.vmem [#allocation16], 192
        %v3249 = vld [vmem:[%s3248] sm:$0xf]
        %v3250 = vld [vmem:[%s3248 + $0x4] sm:$0xf]
        %v3251 = vld [vmem:[%s3248 + $0x8] sm:$0xf]
        %v3252 = vld [vmem:[%s3248 + $0xc] sm:$0xf]
        %v3253 = vld [vmem:[%s3248 + $0x10] sm:$0xf]
        %v3254 = vld [vmem:[%s3248 + $0x14] sm:$0xf]
        %v3255 = vld [vmem:[%s3248 + $0x18] sm:$0xf]
        %v3256 = vld [vmem:[%s3248 + $0x1c] sm:$0xf]
        %v3257 = vld [vmem:[%s3248 + $0x20] sm:$0xf]
        %v3258 = vld [vmem:[%s3248 + $0x24] sm:$0xf]
        %v3259 = vld [vmem:[%s3248 + $0x28] sm:$0xf]
        %v3260 = vld [vmem:[%s3248 + $0x2c] sm:$0xf]
        %v3261 = vld [vmem:[%s3248 + $0x30] sm:$0xf]
        %v3262 = vld [vmem:[%s3248 + $0x34] sm:$0xf]
        %v3263 = vld [vmem:[%s3248 + $0x38] sm:$0xf]
        %v3264 = vld [vmem:[%s3248 + $0x3c] sm:$0xf]
        %v3265 = vld [vmem:[%s3248 + $0x40] sm:$0xf]
        %v3266 = vld [vmem:[%s3248 + $0x44] sm:$0xf]
        %v3267 = vld [vmem:[%s3248 + $0x48] sm:$0xf]
        %v3268 = vld [vmem:[%s3248 + $0x4c] sm:$0xf]
        %v3269 = vld [vmem:[%s3248 + $0x50] sm:$0xf]
        %v3270 = vld [vmem:[%s3248 + $0x54] sm:$0xf]
        %v3271 = vld [vmem:[%s3248 + $0x58] sm:$0xf]
        %v3272 = vld [vmem:[%s3248 + $0x5c] sm:$0xf]
        %v3273 = vld [vmem:[%s3248 + $0x60] sm:$0xf]
        %v3274 = vld [vmem:[%s3248 + $0x64] sm:$0xf]
        %v3275 = vld [vmem:[%s3248 + $0x68] sm:$0xf]
        %v3276 = vld [vmem:[%s3248 + $0x6c] sm:$0xf]
        %v3277 = vld [vmem:[%s3248 + $0x70] sm:$0xf]
        %v3278 = vld [vmem:[%s3248 + $0x74] sm:$0xf]
        %v3279 = vld [vmem:[%s3248 + $0x78] sm:$0xf]
        %v3280 = vld [vmem:[%s3248 + $0x7c] sm:$0xf]
        %v3281 = vld [vmem:[%s3248 + $0x80] sm:$0xf]
        %v3282 = vld [vmem:[%s3248 + $0x84] sm:$0xf]
        %v3283 = vld [vmem:[%s3248 + $0x88] sm:$0xf]
        %v3284 = vld [vmem:[%s3248 + $0x8c] sm:$0xf]
        %v3285 = vld [vmem:[%s3248 + $0x90] sm:$0xf]
        %v3286 = vld [vmem:[%s3248 + $0x94] sm:$0xf]
        %v3287 = vld [vmem:[%s3248 + $0x98] sm:$0xf]
        %v3288 = vld [vmem:[%s3248 + $0x9c] sm:$0xf]
        %v3289 = vld [vmem:[%s3248 + $0xa0] sm:$0xf]
        %v3290 = vld [vmem:[%s3248 + $0xa4] sm:$0xf]
        %v3291 = vld [vmem:[%s3248 + $0xa8] sm:$0xf]
        %v3292 = vld [vmem:[%s3248 + $0xac] sm:$0xf]
        %v3293 = vld [vmem:[%s3248 + $0xb0] sm:$0xf]
        %v3294 = vld [vmem:[%s3248 + $0xb4] sm:$0xf]
        %v3295 = vld [vmem:[%s3248 + $0xb8] sm:$0xf]
        %v3296 = vld [vmem:[%s3248 + $0xbc] sm:$0xf]
        %v3345 = vunpack.c.l.b16 %v3249
        %v3346 = vunpack.c.l.b16 %v3250
        %v3347 = vunpack.c.l.b16 %v3251
        %v3348 = vunpack.c.l.b16 %v3252
        %v3349 = vunpack.c.l.b16 %v3253
        %v3350 = vunpack.c.l.b16 %v3254
        %v3351 = vunpack.c.l.b16 %v3255
        %v3352 = vunpack.c.l.b16 %v3256
        %v3353 = vunpack.c.l.b16 %v3257
        %v3354 = vunpack.c.l.b16 %v3258
        %v3355 = vunpack.c.l.b16 %v3259
        %v3356 = vunpack.c.l.b16 %v3260
        %v3357 = vunpack.c.l.b16 %v3261
        %v3358 = vunpack.c.l.b16 %v3262
        %v3359 = vunpack.c.l.b16 %v3263
        %v3360 = vunpack.c.l.b16 %v3264
        %v3361 = vunpack.c.l.b16 %v3265
        %v3362 = vunpack.c.l.b16 %v3266
        %v3363 = vunpack.c.l.b16 %v3267
        %v3364 = vunpack.c.l.b16 %v3268
        %v3365 = vunpack.c.l.b16 %v3269
        %v3366 = vunpack.c.l.b16 %v3270
        %v3367 = vunpack.c.l.b16 %v3271
        %v3368 = vunpack.c.l.b16 %v3272
        %v3369 = vunpack.c.l.b16 %v3273
        %v3370 = vunpack.c.l.b16 %v3274
        %v3371 = vunpack.c.l.b16 %v3275
        %v3372 = vunpack.c.l.b16 %v3276
        %v3373 = vunpack.c.l.b16 %v3277
        %v3374 = vunpack.c.l.b16 %v3278
        %v3375 = vunpack.c.l.b16 %v3279
        %v3376 = vunpack.c.l.b16 %v3280
        %v3377 = vunpack.c.l.b16 %v3281
        %v3378 = vunpack.c.l.b16 %v3282
        %v3379 = vunpack.c.l.b16 %v3283
        %v3380 = vunpack.c.l.b16 %v3284
        %v3381 = vunpack.c.l.b16 %v3285
        %v3382 = vunpack.c.l.b16 %v3286
        %v3383 = vunpack.c.l.b16 %v3287
        %v3384 = vunpack.c.l.b16 %v3288
        %v3385 = vunpack.c.l.b16 %v3289
        %v3386 = vunpack.c.l.b16 %v3290
        %v3387 = vunpack.c.l.b16 %v3291
        %v3388 = vunpack.c.l.b16 %v3292
        %v3389 = vunpack.c.l.b16 %v3293
        %v3390 = vunpack.c.l.b16 %v3294
        %v3391 = vunpack.c.l.b16 %v3295
        %v3392 = vunpack.c.l.b16 %v3296
        %v3393 = vpack.c.b16 %v3346, %v3345
        %v3394 = vpack.c.b16 %v3348, %v3347
        %v3395 = vpack.c.b16 %v3350, %v3349
        %v3396 = vpack.c.b16 %v3352, %v3351
        %v3397 = vpack.c.b16 %v3354, %v3353
        %v3398 = vpack.c.b16 %v3356, %v3355
        %v3399 = vpack.c.b16 %v3358, %v3357
        %v3400 = vpack.c.b16 %v3360, %v3359
        %v3401 = vpack.c.b16 %v3362, %v3361
        %v3402 = vpack.c.b16 %v3364, %v3363
        %v3403 = vpack.c.b16 %v3366, %v3365
        %v3404 = vpack.c.b16 %v3368, %v3367
        %v3405 = vpack.c.b16 %v3370, %v3369
        %v3406 = vpack.c.b16 %v3372, %v3371
        %v3407 = vpack.c.b16 %v3374, %v3373
        %v3408 = vpack.c.b16 %v3376, %v3375
        %v3409 = vpack.c.b16 %v3378, %v3377
        %v3410 = vpack.c.b16 %v3380, %v3379
        %v3411 = vpack.c.b16 %v3382, %v3381
        %v3412 = vpack.c.b16 %v3384, %v3383
        %v3413 = vpack.c.b16 %v3386, %v3385
        %v3414 = vpack.c.b16 %v3388, %v3387
        %v3415 = vpack.c.b16 %v3390, %v3389
        %v3416 = vpack.c.b16 %v3392, %v3391
        %3441 = vmatprep.subr.bf16.mxu0 0
        %3442 = vmatpush1.bf16.msra.mxu0 %v3400
        %3443 = vmatprep.subr.bf16.mxu0 0
        %3444 = vmatpush1.bf16.msra.mxu0 %v3399
        %3445 = vmatprep.subr.bf16.mxu0 0
        %3446 = vmatpush1.bf16.msra.mxu0 %v3398
        %3447 = vmatprep.subr.bf16.mxu0 0
        %3448 = vmatpush1.bf16.msra.mxu0 %v3397
        %3449 = vmatprep.subr.bf16.mxu0 0
        %3450 = vmatpush1.bf16.msra.mxu0 %v3396
        %3451 = vmatprep.subr.bf16.mxu0 0
        %3452 = vmatpush1.bf16.msra.mxu0 %v3395
        %3453 = vmatprep.subr.bf16.mxu0 0
        %3454 = vmatpush1.bf16.msra.mxu0 %v3394
        %3455 = vmatprep.subr.bf16.mxu0 0
        %3456 = vmatpush1.bf16.msra.mxu0 %v3393
        %3457 = vmatprep.subr.bf16.mxu0 0
        %3458 = vmatpush2.bf16.msra.mxu0 %v3408
        %3459 = vmatprep.subr.bf16.mxu0 0
        %3460 = vmatpush2.bf16.msra.mxu0 %v3407
        %3461 = vmatprep.subr.bf16.mxu0 0
        %3462 = vmatpush2.bf16.msra.mxu0 %v3406
        %3463 = vmatprep.subr.bf16.mxu0 0
        %3464 = vmatpush2.bf16.msra.mxu0 %v3405
        %3465 = vmatprep.subr.bf16.mxu0 0
        %3466 = vmatpush2.bf16.msra.mxu0 %v3404
        %3467 = vmatprep.subr.bf16.mxu0 0
        %3468 = vmatpush2.bf16.msra.mxu0 %v3403
        %3469 = vmatprep.subr.bf16.mxu0 0
        %3470 = vmatpush2.bf16.msra.mxu0 %v3402
        %3471 = vmatprep.subr.bf16.mxu0 0
        %3472 = vmatpush2.bf16.msra.mxu0 %v3401
        %3473 = vmatprep.mubr.bf16.mxu0 %v1896
        %3474 = vmatmul.mubr.bf16.gmra.mxu0 %v1824
        %v3475 = vpop.f32.mrf.mxu0
        %v3476 = vadd.f32 0.0, %v3475
        %v3477 = vpop.f32.mrf.mxu0
        %v3478 = vpop.f32.mrf.mxu0
        %v3479 = vadd.f32 0.0, %v3478
        %v3480 = vpop.f32.mrf.mxu0
        %3481 = vmatprep.mubr.bf16.mxu0 %v1908
        %3482 = vmatmul.mubr.bf16.gmra.mxu0 %v1825
        %v3483 = vpop.f32.mrf.mxu0
        %v3484 = vadd.f32 0.0, %v3483
        %v3485 = vpop.f32.mrf.mxu0
        %v3486 = vpop.f32.mrf.mxu0
        %v3487 = vadd.f32 0.0, %v3486
        %v3488 = vpop.f32.mrf.mxu0
        %3489 = vmatprep.mubr.bf16.mxu0 %v1920
        %3490 = vmatmul.mubr.bf16.gmra.mxu0 %v1826
        %v3491 = vpop.f32.mrf.mxu0
        %v3492 = vadd.f32 0.0, %v3491
        %v3493 = vpop.f32.mrf.mxu0
        %v3494 = vpop.f32.mrf.mxu0
        %v3495 = vadd.f32 0.0, %v3494
        %v3496 = vpop.f32.mrf.mxu0
        %3497 = vmatprep.mubr.bf16.mxu0 %v1932
        %3498 = vmatmul.mubr.bf16.gmra.mxu0 %v1827
        %v3499 = vpop.f32.mrf.mxu0
        %v3500 = vadd.f32 0.0, %v3499
        %v3501 = vpop.f32.mrf.mxu0
        %v3502 = vpop.f32.mrf.mxu0
        %v3503 = vadd.f32 0.0, %v3502
        %v3504 = vpop.f32.mrf.mxu0
        %3505 = vmatprep.mubr.bf16.mxu0 %v1944
        %3506 = vmatmul.mubr.bf16.gmra.mxu0 %v1828
        %v3507 = vpop.f32.mrf.mxu0
        %v3508 = vadd.f32 0.0, %v3507
        %v3509 = vpop.f32.mrf.mxu0
        %v3510 = vpop.f32.mrf.mxu0
        %v3511 = vadd.f32 0.0, %v3510
        %v3512 = vpop.f32.mrf.mxu0
        %3513 = vmatprep.mubr.bf16.mxu0 %v1956
        %3514 = vmatmul.mubr.bf16.gmra.mxu0 %v1829
        %v3515 = vpop.f32.mrf.mxu0
        %v3516 = vadd.f32 0.0, %v3515
        %v3517 = vpop.f32.mrf.mxu0
        %v3518 = vpop.f32.mrf.mxu0
        %v3519 = vadd.f32 0.0, %v3518
        %v3520 = vpop.f32.mrf.mxu0
        %3521 = vmatprep.mubr.bf16.mxu0 %v1968
        %3522 = vmatmul.mubr.bf16.gmra.mxu0 %v1830
        %v3523 = vpop.f32.mrf.mxu0
        %v3524 = vadd.f32 0.0, %v3523
        %v3525 = vpop.f32.mrf.mxu0
        %v3526 = vpop.f32.mrf.mxu0
        %v3527 = vadd.f32 0.0, %v3526
        %v3528 = vpop.f32.mrf.mxu0
        %3529 = vmatprep.mubr.bf16.mxu0 %v1980
        %3530 = vmatmul.mubr.bf16.gmra.mxu0 %v1831
        %v3531 = vpop.f32.mrf.mxu0
        %v3532 = vadd.f32 0.0, %v3531
        %v3533 = vpop.f32.mrf.mxu0
        %v3534 = vpop.f32.mrf.mxu0
        %v3535 = vadd.f32 0.0, %v3534
        %v3536 = vpop.f32.mrf.mxu0
        %3537 = vdwg.mxu0
        %3538 = vmatprep.subr.bf16.mxu0 0
        %3539 = vmatpush1.bf16.msra.mxu0 %v3416
        %3540 = vmatprep.subr.bf16.mxu0 0
        %3541 = vmatpush1.bf16.msra.mxu0 %v3415
        %3542 = vmatprep.subr.bf16.mxu0 0
        %3543 = vmatpush1.bf16.msra.mxu0 %v3414
        %3544 = vmatprep.subr.bf16.mxu0 0
        %3545 = vmatpush1.bf16.msra.mxu0 %v3413
        %3546 = vmatprep.subr.bf16.mxu0 0
        %3547 = vmatpush1.bf16.msra.mxu0 %v3412
        %3548 = vmatprep.subr.bf16.mxu0 0
        %3549 = vmatpush1.bf16.msra.mxu0 %v3411
        %3550 = vmatprep.subr.bf16.mxu0 0
        %3551 = vmatpush1.bf16.msra.mxu0 %v3410
        %3552 = vmatprep.subr.bf16.mxu0 0
        %3553 = vmatpush1.bf16.msra.mxu0 %v3409
        %3554 = vmatprep.subr.bf16.mxu0 0
        %3555 = vmatpush2.bf16.msra.mxu0 0
        %3556 = vmatprep.subr.bf16.mxu0 0
        %3557 = vmatpush2.bf16.msra.mxu0 0
        %3558 = vmatprep.subr.bf16.mxu0 0
        %3559 = vmatpush2.bf16.msra.mxu0 0
        %3560 = vmatprep.subr.bf16.mxu0 0
        %3561 = vmatpush2.bf16.msra.mxu0 0
        %3562 = vmatprep.subr.bf16.mxu0 0
        %3563 = vmatpush2.bf16.msra.mxu0 0
        %3564 = vmatprep.subr.bf16.mxu0 0
        %3565 = vmatpush2.bf16.msra.mxu0 0
        %3566 = vmatprep.subr.bf16.mxu0 0
        %3567 = vmatpush2.bf16.msra.mxu0 0
        %3568 = vmatprep.subr.bf16.mxu0 0
        %3569 = vmatpush2.bf16.msra.mxu0 0
        %3570 = vmatprep.mubr.bf16.mxu0 0
        %3571 = vmatmul.mubr.bf16.gmra.mxu0 %v2038
        %v3572 = vpop.f32.mrf.mxu0
        %v3573 = vadd.f32 %v3476, %v3572
        %v3574 = vpop.f32.mrf.mxu0
        %v3575 = vpop.f32.mrf.mxu0
        %v3576 = vadd.f32 %v3479, %v3575
        %v3577 = vpop.f32.mrf.mxu0
        %3578 = vmatprep.mubr.bf16.mxu0 0
        %3579 = vmatmul.mubr.bf16.gmra.mxu0 %v2041
        %v3580 = vpop.f32.mrf.mxu0
        %v3581 = vadd.f32 %v3484, %v3580
        %v3582 = vpop.f32.mrf.mxu0
        %v3583 = vpop.f32.mrf.mxu0
        %v3584 = vadd.f32 %v3487, %v3583
        %v3585 = vpop.f32.mrf.mxu0
        %3586 = vmatprep.mubr.bf16.mxu0 0
        %3587 = vmatmul.mubr.bf16.gmra.mxu0 %v2044
        %v3588 = vpop.f32.mrf.mxu0
        %v3589 = vadd.f32 %v3492, %v3588
        %v3590 = vpop.f32.mrf.mxu0
        %v3591 = vpop.f32.mrf.mxu0
        %v3592 = vadd.f32 %v3495, %v3591
        %v3593 = vpop.f32.mrf.mxu0
        %3594 = vmatprep.mubr.bf16.mxu0 0
        %3595 = vmatmul.mubr.bf16.gmra.mxu0 %v2047
        %v3596 = vpop.f32.mrf.mxu0
        %v3597 = vadd.f32 %v3500, %v3596
        %v3598 = vpop.f32.mrf.mxu0
        %v3599 = vpop.f32.mrf.mxu0
        %v3600 = vadd.f32 %v3503, %v3599
        %v3601 = vpop.f32.mrf.mxu0
        %3602 = vmatprep.mubr.bf16.mxu0 0
        %3603 = vmatmul.mubr.bf16.gmra.mxu0 %v2050
        %v3604 = vpop.f32.mrf.mxu0
        %v3605 = vadd.f32 %v3508, %v3604
        %v3606 = vpop.f32.mrf.mxu0
        %v3607 = vpop.f32.mrf.mxu0
        %v3608 = vadd.f32 %v3511, %v3607
        %v3609 = vpop.f32.mrf.mxu0
        %3610 = vmatprep.mubr.bf16.mxu0 0
        %3611 = vmatmul.mubr.bf16.gmra.mxu0 %v2053
        %v3612 = vpop.f32.mrf.mxu0
        %v3613 = vadd.f32 %v3516, %v3612
        %v3614 = vpop.f32.mrf.mxu0
        %v3615 = vpop.f32.mrf.mxu0
        %v3616 = vadd.f32 %v3519, %v3615
        %v3617 = vpop.f32.mrf.mxu0
        %3618 = vmatprep.mubr.bf16.mxu0 0
        %3619 = vmatmul.mubr.bf16.gmra.mxu0 %v2056
        %v3620 = vpop.f32.mrf.mxu0
        %v3621 = vadd.f32 %v3524, %v3620
        %v3622 = vpop.f32.mrf.mxu0
        %v3623 = vpop.f32.mrf.mxu0
        %v3624 = vadd.f32 %v3527, %v3623
        %v3625 = vpop.f32.mrf.mxu0
        %3626 = vmatprep.mubr.bf16.mxu0 0
        %3627 = vmatmul.mubr.bf16.gmra.mxu0 %v2059
        %v3628 = vpop.f32.mrf.mxu0
        %v3629 = vadd.f32 %v3532, %v3628
        %v3630 = vpop.f32.mrf.mxu0
        %v3631 = vpop.f32.mrf.mxu0
        %v3632 = vadd.f32 %v3535, %v3631
        %v3633 = vpop.f32.mrf.mxu0
        %3634 = vdwg.mxu0
        %v3635 = vadd.f32 %v3232, %v3573
        %v3636 = vadd.f32 %v3233, %v3576
        %v3637 = vadd.f32 %v3234, %v3581
        %v3638 = vadd.f32 %v3235, %v3584
        %v3639 = vadd.f32 %v3236, %v3589
        %v3640 = vadd.f32 %v3237, %v3592
        %v3641 = vadd.f32 %v3238, %v3597
        %v3642 = vadd.f32 %v3239, %v3600
        %v3643 = vadd.f32 %v3240, %v3605
        %v3644 = vadd.f32 %v3241, %v3608
        %v3645 = vadd.f32 %v3242, %v3613
        %v3646 = vadd.f32 %v3243, %v3616
        %v3647 = vadd.f32 %v3244, %v3621
        %v3648 = vadd.f32 %v3245, %v3624
        %v3649 = vadd.f32 %v3246, %v3629
        %v3650 = vadd.f32 %v3247, %v3632
        %s3651 = scalar_lea.vmem [#allocation15], 384
        %v3652 = vld [vmem:[%s3651] sm:$0xf]
        %v3653 = vld [vmem:[%s3651 + $0x4] sm:$0xf]
        %v3654 = vld [vmem:[%s3651 + $0x8] sm:$0xf]
        %v3655 = vld [vmem:[%s3651 + $0xc] sm:$0xf]
        %v3656 = vld [vmem:[%s3651 + $0x10] sm:$0xf]
        %v3657 = vld [vmem:[%s3651 + $0x14] sm:$0xf]
        %v3658 = vld [vmem:[%s3651 + $0x18] sm:$0xf]
        %v3659 = vld [vmem:[%s3651 + $0x1c] sm:$0xf]
        %v3660 = vld [vmem:[%s3651 + $0x20] sm:$0xf]
        %v3661 = vld [vmem:[%s3651 + $0x24] sm:$0xf]
        %v3662 = vld [vmem:[%s3651 + $0x28] sm:$0xf]
        %v3663 = vld [vmem:[%s3651 + $0x2c] sm:$0xf]
        %v3664 = vld [vmem:[%s3651 + $0x30] sm:$0xf]
        %v3665 = vld [vmem:[%s3651 + $0x34] sm:$0xf]
        %v3666 = vld [vmem:[%s3651 + $0x38] sm:$0xf]
        %v3667 = vld [vmem:[%s3651 + $0x3c] sm:$0xf]
        %v3668 = vld [vmem:[%s3651 + $0x40] sm:$0xf]
        %v3669 = vld [vmem:[%s3651 + $0x44] sm:$0xf]
        %v3670 = vld [vmem:[%s3651 + $0x48] sm:$0xf]
        %v3671 = vld [vmem:[%s3651 + $0x4c] sm:$0xf]
        %v3672 = vld [vmem:[%s3651 + $0x50] sm:$0xf]
        %v3673 = vld [vmem:[%s3651 + $0x54] sm:$0xf]
        %v3674 = vld [vmem:[%s3651 + $0x58] sm:$0xf]
        %v3675 = vld [vmem:[%s3651 + $0x5c] sm:$0xf]
        %v3676 = vld [vmem:[%s3651 + $0x60] sm:$0xf]
        %v3677 = vld [vmem:[%s3651 + $0x64] sm:$0xf]
        %v3678 = vld [vmem:[%s3651 + $0x68] sm:$0xf]
        %v3679 = vld [vmem:[%s3651 + $0x6c] sm:$0xf]
        %v3680 = vld [vmem:[%s3651 + $0x70] sm:$0xf]
        %v3681 = vld [vmem:[%s3651 + $0x74] sm:$0xf]
        %v3682 = vld [vmem:[%s3651 + $0x78] sm:$0xf]
        %v3683 = vld [vmem:[%s3651 + $0x7c] sm:$0xf]
        %v3684 = vld [vmem:[%s3651 + $0x80] sm:$0xf]
        %v3685 = vld [vmem:[%s3651 + $0x84] sm:$0xf]
        %v3686 = vld [vmem:[%s3651 + $0x88] sm:$0xf]
        %v3687 = vld [vmem:[%s3651 + $0x8c] sm:$0xf]
        %v3688 = vld [vmem:[%s3651 + $0x90] sm:$0xf]
        %v3689 = vld [vmem:[%s3651 + $0x94] sm:$0xf]
        %v3690 = vld [vmem:[%s3651 + $0x98] sm:$0xf]
        %v3691 = vld [vmem:[%s3651 + $0x9c] sm:$0xf]
        %v3692 = vld [vmem:[%s3651 + $0xa0] sm:$0xf]
        %v3693 = vld [vmem:[%s3651 + $0xa4] sm:$0xf]
        %v3694 = vld [vmem:[%s3651 + $0xa8] sm:$0xf]
        %v3695 = vld [vmem:[%s3651 + $0xac] sm:$0xf]
        %v3696 = vld [vmem:[%s3651 + $0xb0] sm:$0xf]
        %v3697 = vld [vmem:[%s3651 + $0xb4] sm:$0xf]
        %v3698 = vld [vmem:[%s3651 + $0xb8] sm:$0xf]
        %v3699 = vld [vmem:[%s3651 + $0xbc] sm:$0xf]
        %v3748 = vunpack.c.l.b16 %v3652
        %v3749 = vunpack.c.l.b16 %v3653
        %v3750 = vunpack.c.l.b16 %v3654
        %v3751 = vunpack.c.l.b16 %v3655
        %v3752 = vunpack.c.l.b16 %v3656
        %v3753 = vunpack.c.l.b16 %v3657
        %v3754 = vunpack.c.l.b16 %v3658
        %v3755 = vunpack.c.l.b16 %v3659
        %v3756 = vunpack.c.l.b16 %v3660
        %v3757 = vunpack.c.l.b16 %v3661
        %v3758 = vunpack.c.l.b16 %v3662
        %v3759 = vunpack.c.l.b16 %v3663
        %v3760 = vunpack.c.l.b16 %v3664
        %v3761 = vunpack.c.l.b16 %v3665
        %v3762 = vunpack.c.l.b16 %v3666
        %v3763 = vunpack.c.l.b16 %v3667
        %v3764 = vunpack.c.l.b16 %v3668
        %v3765 = vunpack.c.l.b16 %v3669
        %v3766 = vunpack.c.l.b16 %v3670
        %v3767 = vunpack.c.l.b16 %v3671
        %v3768 = vunpack.c.l.b16 %v3672
        %v3769 = vunpack.c.l.b16 %v3673
        %v3770 = vunpack.c.l.b16 %v3674
        %v3771 = vunpack.c.l.b16 %v3675
        %v3772 = vunpack.c.l.b16 %v3676
        %v3773 = vunpack.c.l.b16 %v3677
        %v3774 = vunpack.c.l.b16 %v3678
        %v3775 = vunpack.c.l.b16 %v3679
        %v3776 = vunpack.c.l.b16 %v3680
        %v3777 = vunpack.c.l.b16 %v3681
        %v3778 = vunpack.c.l.b16 %v3682
        %v3779 = vunpack.c.l.b16 %v3683
        %v3780 = vunpack.c.l.b16 %v3684
        %v3781 = vunpack.c.l.b16 %v3685
        %v3782 = vunpack.c.l.b16 %v3686
        %v3783 = vunpack.c.l.b16 %v3687
        %v3784 = vunpack.c.l.b16 %v3688
        %v3785 = vunpack.c.l.b16 %v3689
        %v3786 = vunpack.c.l.b16 %v3690
        %v3787 = vunpack.c.l.b16 %v3691
        %v3788 = vunpack.c.l.b16 %v3692
        %v3789 = vunpack.c.l.b16 %v3693
        %v3790 = vunpack.c.l.b16 %v3694
        %v3791 = vunpack.c.l.b16 %v3695
        %v3792 = vunpack.c.l.b16 %v3696
        %v3793 = vunpack.c.l.b16 %v3697
        %v3794 = vunpack.c.l.b16 %v3698
        %v3795 = vunpack.c.l.b16 %v3699
        %v3796 = vpack.c.b16 %v3749, %v3748
        %v3797 = vpack.c.b16 %v3751, %v3750
        %v3798 = vpack.c.b16 %v3753, %v3752
        %v3799 = vpack.c.b16 %v3755, %v3754
        %v3800 = vpack.c.b16 %v3757, %v3756
        %v3801 = vpack.c.b16 %v3759, %v3758
        %v3802 = vpack.c.b16 %v3761, %v3760
        %v3803 = vpack.c.b16 %v3763, %v3762
        %v3804 = vpack.c.b16 %v3765, %v3764
        %v3805 = vpack.c.b16 %v3767, %v3766
        %v3806 = vpack.c.b16 %v3769, %v3768
        %v3807 = vpack.c.b16 %v3771, %v3770
        %v3808 = vpack.c.b16 %v3773, %v3772
        %v3809 = vpack.c.b16 %v3775, %v3774
        %v3810 = vpack.c.b16 %v3777, %v3776
        %v3811 = vpack.c.b16 %v3779, %v3778
        %v3812 = vpack.c.b16 %v3781, %v3780
        %v3813 = vpack.c.b16 %v3783, %v3782
        %v3814 = vpack.c.b16 %v3785, %v3784
        %v3815 = vpack.c.b16 %v3787, %v3786
        %v3816 = vpack.c.b16 %v3789, %v3788
        %v3817 = vpack.c.b16 %v3791, %v3790
        %v3818 = vpack.c.b16 %v3793, %v3792
        %v3819 = vpack.c.b16 %v3795, %v3794
        %3844 = vmatprep.subr.bf16.mxu0 0
        %3845 = vmatpush1.bf16.msra.mxu0 %v3803
        %3846 = vmatprep.subr.bf16.mxu0 0
        %3847 = vmatpush1.bf16.msra.mxu0 %v3802
        %3848 = vmatprep.subr.bf16.mxu0 0
        %3849 = vmatpush1.bf16.msra.mxu0 %v3801
        %3850 = vmatprep.subr.bf16.mxu0 0
        %3851 = vmatpush1.bf16.msra.mxu0 %v3800
        %3852 = vmatprep.subr.bf16.mxu0 0
        %3853 = vmatpush1.bf16.msra.mxu0 %v3799
        %3854 = vmatprep.subr.bf16.mxu0 0
        %3855 = vmatpush1.bf16.msra.mxu0 %v3798
        %3856 = vmatprep.subr.bf16.mxu0 0
        %3857 = vmatpush1.bf16.msra.mxu0 %v3797
        %3858 = vmatprep.subr.bf16.mxu0 0
        %3859 = vmatpush1.bf16.msra.mxu0 %v3796
        %3860 = vmatprep.subr.bf16.mxu0 0
        %3861 = vmatpush2.bf16.msra.mxu0 %v3811
        %3862 = vmatprep.subr.bf16.mxu0 0
        %3863 = vmatpush2.bf16.msra.mxu0 %v3810
        %3864 = vmatprep.subr.bf16.mxu0 0
        %3865 = vmatpush2.bf16.msra.mxu0 %v3809
        %3866 = vmatprep.subr.bf16.mxu0 0
        %3867 = vmatpush2.bf16.msra.mxu0 %v3808
        %3868 = vmatprep.subr.bf16.mxu0 0
        %3869 = vmatpush2.bf16.msra.mxu0 %v3807
        %3870 = vmatprep.subr.bf16.mxu0 0
        %3871 = vmatpush2.bf16.msra.mxu0 %v3806
        %3872 = vmatprep.subr.bf16.mxu0 0
        %3873 = vmatpush2.bf16.msra.mxu0 %v3805
        %3874 = vmatprep.subr.bf16.mxu0 0
        %3875 = vmatpush2.bf16.msra.mxu0 %v3804
        %3876 = vmatprep.mubr.bf16.mxu0 %v1577
        %3877 = vmatmul.mubr.bf16.gmra.mxu0 %v1493
        %v3878 = vpop.f32.mrf.mxu0
        %v3879 = vadd.f32 0.0, %v3878
        %v3880 = vpop.f32.mrf.mxu0
        %v3881 = vpop.f32.mrf.mxu0
        %v3882 = vadd.f32 0.0, %v3881
        %v3883 = vpop.f32.mrf.mxu0
        %3884 = vmatprep.mubr.bf16.mxu0 %v1589
        %3885 = vmatmul.mubr.bf16.gmra.mxu0 %v1494
        %v3886 = vpop.f32.mrf.mxu0
        %v3887 = vadd.f32 0.0, %v3886
        %v3888 = vpop.f32.mrf.mxu0
        %v3889 = vpop.f32.mrf.mxu0
        %v3890 = vadd.f32 0.0, %v3889
        %v3891 = vpop.f32.mrf.mxu0
        %3892 = vmatprep.mubr.bf16.mxu0 %v1601
        %3893 = vmatmul.mubr.bf16.gmra.mxu0 %v1495
        %v3894 = vpop.f32.mrf.mxu0
        %v3895 = vadd.f32 0.0, %v3894
        %v3896 = vpop.f32.mrf.mxu0
        %v3897 = vpop.f32.mrf.mxu0
        %v3898 = vadd.f32 0.0, %v3897
        %v3899 = vpop.f32.mrf.mxu0
        %3900 = vmatprep.mubr.bf16.mxu0 %v1613
        %3901 = vmatmul.mubr.bf16.gmra.mxu0 %v1496
        %v3902 = vpop.f32.mrf.mxu0
        %v3903 = vadd.f32 0.0, %v3902
        %v3904 = vpop.f32.mrf.mxu0
        %v3905 = vpop.f32.mrf.mxu0
        %v3906 = vadd.f32 0.0, %v3905
        %v3907 = vpop.f32.mrf.mxu0
        %3908 = vmatprep.mubr.bf16.mxu0 %v1625
        %3909 = vmatmul.mubr.bf16.gmra.mxu0 %v1497
        %v3910 = vpop.f32.mrf.mxu0
        %v3911 = vadd.f32 0.0, %v3910
        %v3912 = vpop.f32.mrf.mxu0
        %v3913 = vpop.f32.mrf.mxu0
        %v3914 = vadd.f32 0.0, %v3913
        %v3915 = vpop.f32.mrf.mxu0
        %3916 = vmatprep.mubr.bf16.mxu0 %v1637
        %3917 = vmatmul.mubr.bf16.gmra.mxu0 %v1498
        %v3918 = vpop.f32.mrf.mxu0
        %v3919 = vadd.f32 0.0, %v3918
        %v3920 = vpop.f32.mrf.mxu0
        %v3921 = vpop.f32.mrf.mxu0
        %v3922 = vadd.f32 0.0, %v3921
        %v3923 = vpop.f32.mrf.mxu0
        %3924 = vmatprep.mubr.bf16.mxu0 %v1649
        %3925 = vmatmul.mubr.bf16.gmra.mxu0 %v1499
        %v3926 = vpop.f32.mrf.mxu0
        %v3927 = vadd.f32 0.0, %v3926
        %v3928 = vpop.f32.mrf.mxu0
        %v3929 = vpop.f32.mrf.mxu0
        %v3930 = vadd.f32 0.0, %v3929
        %v3931 = vpop.f32.mrf.mxu0
        %3932 = vmatprep.mubr.bf16.mxu0 %v1661
        %3933 = vmatmul.mubr.bf16.gmra.mxu0 %v1500
        %v3934 = vpop.f32.mrf.mxu0
        %v3935 = vadd.f32 0.0, %v3934
        %v3936 = vpop.f32.mrf.mxu0
        %v3937 = vpop.f32.mrf.mxu0
        %v3938 = vadd.f32 0.0, %v3937
        %v3939 = vpop.f32.mrf.mxu0
        %3940 = vdwg.mxu0
        %3941 = vmatprep.subr.bf16.mxu0 0
        %3942 = vmatpush1.bf16.msra.mxu0 %v3819
        %3943 = vmatprep.subr.bf16.mxu0 0
        %3944 = vmatpush1.bf16.msra.mxu0 %v3818
        %3945 = vmatprep.subr.bf16.mxu0 0
        %3946 = vmatpush1.bf16.msra.mxu0 %v3817
        %3947 = vmatprep.subr.bf16.mxu0 0
        %3948 = vmatpush1.bf16.msra.mxu0 %v3816
        %3949 = vmatprep.subr.bf16.mxu0 0
        %3950 = vmatpush1.bf16.msra.mxu0 %v3815
        %3951 = vmatprep.subr.bf16.mxu0 0
        %3952 = vmatpush1.bf16.msra.mxu0 %v3814
        %3953 = vmatprep.subr.bf16.mxu0 0
        %3954 = vmatpush1.bf16.msra.mxu0 %v3813
        %3955 = vmatprep.subr.bf16.mxu0 0
        %3956 = vmatpush1.bf16.msra.mxu0 %v3812
        %3957 = vmatprep.subr.bf16.mxu0 0
        %3958 = vmatpush2.bf16.msra.mxu0 0
        %3959 = vmatprep.subr.bf16.mxu0 0
        %3960 = vmatpush2.bf16.msra.mxu0 0
        %3961 = vmatprep.subr.bf16.mxu0 0
        %3962 = vmatpush2.bf16.msra.mxu0 0
        %3963 = vmatprep.subr.bf16.mxu0 0
        %3964 = vmatpush2.bf16.msra.mxu0 0
        %3965 = vmatprep.subr.bf16.mxu0 0
        %3966 = vmatpush2.bf16.msra.mxu0 0
        %3967 = vmatprep.subr.bf16.mxu0 0
        %3968 = vmatpush2.bf16.msra.mxu0 0
        %3969 = vmatprep.subr.bf16.mxu0 0
        %3970 = vmatpush2.bf16.msra.mxu0 0
        %3971 = vmatprep.subr.bf16.mxu0 0
        %3972 = vmatpush2.bf16.msra.mxu0 0
        %3973 = vmatprep.mubr.bf16.mxu0 0
        %3974 = vmatmul.mubr.bf16.gmra.mxu0 %v1711
        %v3975 = vpop.f32.mrf.mxu0
        %v3976 = vadd.f32 %v3879, %v3975
        %v3977 = vpop.f32.mrf.mxu0
        %v3978 = vpop.f32.mrf.mxu0
        %v3979 = vadd.f32 %v3882, %v3978
        %v3980 = vpop.f32.mrf.mxu0
        %3981 = vmatprep.mubr.bf16.mxu0 0
        %3982 = vmatmul.mubr.bf16.gmra.mxu0 %v1714
        %v3983 = vpop.f32.mrf.mxu0
        %v3984 = vadd.f32 %v3887, %v3983
        %v3985 = vpop.f32.mrf.mxu0
        %v3986 = vpop.f32.mrf.mxu0
        %v3987 = vadd.f32 %v3890, %v3986
        %v3988 = vpop.f32.mrf.mxu0
        %3989 = vmatprep.mubr.bf16.mxu0 0
        %3990 = vmatmul.mubr.bf16.gmra.mxu0 %v1717
        %v3991 = vpop.f32.mrf.mxu0
        %v3992 = vadd.f32 %v3895, %v3991
        %v3993 = vpop.f32.mrf.mxu0
        %v3994 = vpop.f32.mrf.mxu0
        %v3995 = vadd.f32 %v3898, %v3994
        %v3996 = vpop.f32.mrf.mxu0
        %3997 = vmatprep.mubr.bf16.mxu0 0
        %3998 = vmatmul.mubr.bf16.gmra.mxu0 %v1720
        %v3999 = vpop.f32.mrf.mxu0
        %v4000 = vadd.f32 %v3903, %v3999
        %v4001 = vpop.f32.mrf.mxu0
        %v4002 = vpop.f32.mrf.mxu0
        %v4003 = vadd.f32 %v3906, %v4002
        %v4004 = vpop.f32.mrf.mxu0
        %4005 = vmatprep.mubr.bf16.mxu0 0
        %4006 = vmatmul.mubr.bf16.gmra.mxu0 %v1723
        %v4007 = vpop.f32.mrf.mxu0
        %v4008 = vadd.f32 %v3911, %v4007
        %v4009 = vpop.f32.mrf.mxu0
        %v4010 = vpop.f32.mrf.mxu0
        %v4011 = vadd.f32 %v3914, %v4010
        %v4012 = vpop.f32.mrf.mxu0
        %4013 = vmatprep.mubr.bf16.mxu0 0
        %4014 = vmatmul.mubr.bf16.gmra.mxu0 %v1726
        %v4015 = vpop.f32.mrf.mxu0
        %v4016 = vadd.f32 %v3919, %v4015
        %v4017 = vpop.f32.mrf.mxu0
        %v4018 = vpop.f32.mrf.mxu0
        %v4019 = vadd.f32 %v3922, %v4018
        %v4020 = vpop.f32.mrf.mxu0
        %4021 = vmatprep.mubr.bf16.mxu0 0
        %4022 = vmatmul.mubr.bf16.gmra.mxu0 %v1729
        %v4023 = vpop.f32.mrf.mxu0
        %v4024 = vadd.f32 %v3927, %v4023
        %v4025 = vpop.f32.mrf.mxu0
        %v4026 = vpop.f32.mrf.mxu0
        %v4027 = vadd.f32 %v3930, %v4026
        %v4028 = vpop.f32.mrf.mxu0
        %4029 = vmatprep.mubr.bf16.mxu0 0
        %4030 = vmatmul.mubr.bf16.gmra.mxu0 %v1732
        %v4031 = vpop.f32.mrf.mxu0
        %v4032 = vadd.f32 %v3935, %v4031
        %v4033 = vpop.f32.mrf.mxu0
        %v4034 = vpop.f32.mrf.mxu0
        %v4035 = vadd.f32 %v3938, %v4034
        %v4036 = vpop.f32.mrf.mxu0
        %4037 = vdwg.mxu0
        %v4038 = vadd.f32 %v3635, %v3976
        %v4039 = vadd.f32 %v3636, %v3979
        %v4040 = vadd.f32 %v3637, %v3984
        %v4041 = vadd.f32 %v3638, %v3987
        %v4042 = vadd.f32 %v3639, %v3992
        %v4043 = vadd.f32 %v3640, %v3995
        %v4044 = vadd.f32 %v3641, %v4000
        %v4045 = vadd.f32 %v3642, %v4003
        %v4046 = vadd.f32 %v3643, %v4008
        %v4047 = vadd.f32 %v3644, %v4011
        %v4048 = vadd.f32 %v3645, %v4016
        %v4049 = vadd.f32 %v3646, %v4019
        %v4050 = vadd.f32 %v3647, %v4024
        %v4051 = vadd.f32 %v3648, %v4027
        %v4052 = vadd.f32 %v3649, %v4032
        %v4053 = vadd.f32 %v3650, %v4035
        %s4054 = scalar_lea.vmem [#allocation16], 384
        %v4055 = vld [vmem:[%s4054] sm:$0xf]
        %v4056 = vld [vmem:[%s4054 + $0x4] sm:$0xf]
        %v4057 = vld [vmem:[%s4054 + $0x8] sm:$0xf]
        %v4058 = vld [vmem:[%s4054 + $0xc] sm:$0xf]
        %v4059 = vld [vmem:[%s4054 + $0x10] sm:$0xf]
        %v4060 = vld [vmem:[%s4054 + $0x14] sm:$0xf]
        %v4061 = vld [vmem:[%s4054 + $0x18] sm:$0xf]
        %v4062 = vld [vmem:[%s4054 + $0x1c] sm:$0xf]
        %v4063 = vld [vmem:[%s4054 + $0x20] sm:$0xf]
        %v4064 = vld [vmem:[%s4054 + $0x24] sm:$0xf]
        %v4065 = vld [vmem:[%s4054 + $0x28] sm:$0xf]
        %v4066 = vld [vmem:[%s4054 + $0x2c] sm:$0xf]
        %v4067 = vld [vmem:[%s4054 + $0x30] sm:$0xf]
        %v4068 = vld [vmem:[%s4054 + $0x34] sm:$0xf]
        %v4069 = vld [vmem:[%s4054 + $0x38] sm:$0xf]
        %v4070 = vld [vmem:[%s4054 + $0x3c] sm:$0xf]
        %v4071 = vld [vmem:[%s4054 + $0x40] sm:$0xf]
        %v4072 = vld [vmem:[%s4054 + $0x44] sm:$0xf]
        %v4073 = vld [vmem:[%s4054 + $0x48] sm:$0xf]
        %v4074 = vld [vmem:[%s4054 + $0x4c] sm:$0xf]
        %v4075 = vld [vmem:[%s4054 + $0x50] sm:$0xf]
        %v4076 = vld [vmem:[%s4054 + $0x54] sm:$0xf]
        %v4077 = vld [vmem:[%s4054 + $0x58] sm:$0xf]
        %v4078 = vld [vmem:[%s4054 + $0x5c] sm:$0xf]
        %v4079 = vld [vmem:[%s4054 + $0x60] sm:$0xf]
        %v4080 = vld [vmem:[%s4054 + $0x64] sm:$0xf]
        %v4081 = vld [vmem:[%s4054 + $0x68] sm:$0xf]
        %v4082 = vld [vmem:[%s4054 + $0x6c] sm:$0xf]
        %v4083 = vld [vmem:[%s4054 + $0x70] sm:$0xf]
        %v4084 = vld [vmem:[%s4054 + $0x74] sm:$0xf]
        %v4085 = vld [vmem:[%s4054 + $0x78] sm:$0xf]
        %v4086 = vld [vmem:[%s4054 + $0x7c] sm:$0xf]
        %v4087 = vld [vmem:[%s4054 + $0x80] sm:$0xf]
        %v4088 = vld [vmem:[%s4054 + $0x84] sm:$0xf]
        %v4089 = vld [vmem:[%s4054 + $0x88] sm:$0xf]
        %v4090 = vld [vmem:[%s4054 + $0x8c] sm:$0xf]
        %v4091 = vld [vmem:[%s4054 + $0x90] sm:$0xf]
        %v4092 = vld [vmem:[%s4054 + $0x94] sm:$0xf]
        %v4093 = vld [vmem:[%s4054 + $0x98] sm:$0xf]
        %v4094 = vld [vmem:[%s4054 + $0x9c] sm:$0xf]
        %v4095 = vld [vmem:[%s4054 + $0xa0] sm:$0xf]
        %v4096 = vld [vmem:[%s4054 + $0xa4] sm:$0xf]
        %v4097 = vld [vmem:[%s4054 + $0xa8] sm:$0xf]
        %v4098 = vld [vmem:[%s4054 + $0xac] sm:$0xf]
        %v4099 = vld [vmem:[%s4054 + $0xb0] sm:$0xf]
        %v4100 = vld [vmem:[%s4054 + $0xb4] sm:$0xf]
        %v4101 = vld [vmem:[%s4054 + $0xb8] sm:$0xf]
        %v4102 = vld [vmem:[%s4054 + $0xbc] sm:$0xf]
        %v4151 = vunpack.c.l.b16 %v4055
        %v4152 = vunpack.c.l.b16 %v4056
        %v4153 = vunpack.c.l.b16 %v4057
        %v4154 = vunpack.c.l.b16 %v4058
        %v4155 = vunpack.c.l.b16 %v4059
        %v4156 = vunpack.c.l.b16 %v4060
        %v4157 = vunpack.c.l.b16 %v4061
        %v4158 = vunpack.c.l.b16 %v4062
        %v4159 = vunpack.c.l.b16 %v4063
        %v4160 = vunpack.c.l.b16 %v4064
        %v4161 = vunpack.c.l.b16 %v4065
        %v4162 = vunpack.c.l.b16 %v4066
        %v4163 = vunpack.c.l.b16 %v4067
        %v4164 = vunpack.c.l.b16 %v4068
        %v4165 = vunpack.c.l.b16 %v4069
        %v4166 = vunpack.c.l.b16 %v4070
        %v4167 = vunpack.c.l.b16 %v4071
        %v4168 = vunpack.c.l.b16 %v4072
        %v4169 = vunpack.c.l.b16 %v4073
        %v4170 = vunpack.c.l.b16 %v4074
        %v4171 = vunpack.c.l.b16 %v4075
        %v4172 = vunpack.c.l.b16 %v4076
        %v4173 = vunpack.c.l.b16 %v4077
        %v4174 = vunpack.c.l.b16 %v4078
        %v4175 = vunpack.c.l.b16 %v4079
        %v4176 = vunpack.c.l.b16 %v4080
        %v4177 = vunpack.c.l.b16 %v4081
        %v4178 = vunpack.c.l.b16 %v4082
        %v4179 = vunpack.c.l.b16 %v4083
        %v4180 = vunpack.c.l.b16 %v4084
        %v4181 = vunpack.c.l.b16 %v4085
        %v4182 = vunpack.c.l.b16 %v4086
        %v4183 = vunpack.c.l.b16 %v4087
        %v4184 = vunpack.c.l.b16 %v4088
        %v4185 = vunpack.c.l.b16 %v4089
        %v4186 = vunpack.c.l.b16 %v4090
        %v4187 = vunpack.c.l.b16 %v4091
        %v4188 = vunpack.c.l.b16 %v4092
        %v4189 = vunpack.c.l.b16 %v4093
        %v4190 = vunpack.c.l.b16 %v4094
        %v4191 = vunpack.c.l.b16 %v4095
        %v4192 = vunpack.c.l.b16 %v4096
        %v4193 = vunpack.c.l.b16 %v4097
        %v4194 = vunpack.c.l.b16 %v4098
        %v4195 = vunpack.c.l.b16 %v4099
        %v4196 = vunpack.c.l.b16 %v4100
        %v4197 = vunpack.c.l.b16 %v4101
        %v4198 = vunpack.c.l.b16 %v4102
        %v4199 = vpack.c.b16 %v4152, %v4151
        %v4200 = vpack.c.b16 %v4154, %v4153
        %v4201 = vpack.c.b16 %v4156, %v4155
        %v4202 = vpack.c.b16 %v4158, %v4157
        %v4203 = vpack.c.b16 %v4160, %v4159
        %v4204 = vpack.c.b16 %v4162, %v4161
        %v4205 = vpack.c.b16 %v4164, %v4163
        %v4206 = vpack.c.b16 %v4166, %v4165
        %v4207 = vpack.c.b16 %v4168, %v4167
        %v4208 = vpack.c.b16 %v4170, %v4169
        %v4209 = vpack.c.b16 %v4172, %v4171
        %v4210 = vpack.c.b16 %v4174, %v4173
        %v4211 = vpack.c.b16 %v4176, %v4175
        %v4212 = vpack.c.b16 %v4178, %v4177
        %v4213 = vpack.c.b16 %v4180, %v4179
        %v4214 = vpack.c.b16 %v4182, %v4181
        %v4215 = vpack.c.b16 %v4184, %v4183
        %v4216 = vpack.c.b16 %v4186, %v4185
        %v4217 = vpack.c.b16 %v4188, %v4187
        %v4218 = vpack.c.b16 %v4190, %v4189
        %v4219 = vpack.c.b16 %v4192, %v4191
        %v4220 = vpack.c.b16 %v4194, %v4193
        %v4221 = vpack.c.b16 %v4196, %v4195
        %v4222 = vpack.c.b16 %v4198, %v4197
        %4247 = vmatprep.subr.bf16.mxu0 0
        %4248 = vmatpush1.bf16.msra.mxu0 %v4206
        %4249 = vmatprep.subr.bf16.mxu0 0
        %4250 = vmatpush1.bf16.msra.mxu0 %v4205
        %4251 = vmatprep.subr.bf16.mxu0 0
        %4252 = vmatpush1.bf16.msra.mxu0 %v4204
        %4253 = vmatprep.subr.bf16.mxu0 0
        %4254 = vmatpush1.bf16.msra.mxu0 %v4203
        %4255 = vmatprep.subr.bf16.mxu0 0
        %4256 = vmatpush1.bf16.msra.mxu0 %v4202
        %4257 = vmatprep.subr.bf16.mxu0 0
        %4258 = vmatpush1.bf16.msra.mxu0 %v4201
        %4259 = vmatprep.subr.bf16.mxu0 0
        %4260 = vmatpush1.bf16.msra.mxu0 %v4200
        %4261 = vmatprep.subr.bf16.mxu0 0
        %4262 = vmatpush1.bf16.msra.mxu0 %v4199
        %4263 = vmatprep.subr.bf16.mxu0 0
        %4264 = vmatpush2.bf16.msra.mxu0 %v4214
        %4265 = vmatprep.subr.bf16.mxu0 0
        %4266 = vmatpush2.bf16.msra.mxu0 %v4213
        %4267 = vmatprep.subr.bf16.mxu0 0
        %4268 = vmatpush2.bf16.msra.mxu0 %v4212
        %4269 = vmatprep.subr.bf16.mxu0 0
        %4270 = vmatpush2.bf16.msra.mxu0 %v4211
        %4271 = vmatprep.subr.bf16.mxu0 0
        %4272 = vmatpush2.bf16.msra.mxu0 %v4210
        %4273 = vmatprep.subr.bf16.mxu0 0
        %4274 = vmatpush2.bf16.msra.mxu0 %v4209
        %4275 = vmatprep.subr.bf16.mxu0 0
        %4276 = vmatpush2.bf16.msra.mxu0 %v4208
        %4277 = vmatprep.subr.bf16.mxu0 0
        %4278 = vmatpush2.bf16.msra.mxu0 %v4207
        %4279 = vmatprep.mubr.bf16.mxu0 %v1908
        %4280 = vmatmul.mubr.bf16.gmra.mxu0 %v1825
        %v4281 = vpop.f32.mrf.mxu0
        %v4282 = vadd.f32 0.0, %v4281
        %v4283 = vpop.f32.mrf.mxu0
        %v4284 = vpop.f32.mrf.mxu0
        %v4285 = vadd.f32 0.0, %v4284
        %v4286 = vpop.f32.mrf.mxu0
        %4287 = vmatprep.mubr.bf16.mxu0 %v1920
        %4288 = vmatmul.mubr.bf16.gmra.mxu0 %v1826
        %v4289 = vpop.f32.mrf.mxu0
        %v4290 = vadd.f32 0.0, %v4289
        %v4291 = vpop.f32.mrf.mxu0
        %v4292 = vpop.f32.mrf.mxu0
        %v4293 = vadd.f32 0.0, %v4292
        %v4294 = vpop.f32.mrf.mxu0
        %4295 = vmatprep.mubr.bf16.mxu0 %v1932
        %4296 = vmatmul.mubr.bf16.gmra.mxu0 %v1827
        %v4297 = vpop.f32.mrf.mxu0
        %v4298 = vadd.f32 0.0, %v4297
        %v4299 = vpop.f32.mrf.mxu0
        %v4300 = vpop.f32.mrf.mxu0
        %v4301 = vadd.f32 0.0, %v4300
        %v4302 = vpop.f32.mrf.mxu0
        %4303 = vmatprep.mubr.bf16.mxu0 %v1944
        %4304 = vmatmul.mubr.bf16.gmra.mxu0 %v1828
        %v4305 = vpop.f32.mrf.mxu0
        %v4306 = vadd.f32 0.0, %v4305
        %v4307 = vpop.f32.mrf.mxu0
        %v4308 = vpop.f32.mrf.mxu0
        %v4309 = vadd.f32 0.0, %v4308
        %v4310 = vpop.f32.mrf.mxu0
        %4311 = vmatprep.mubr.bf16.mxu0 %v1956
        %4312 = vmatmul.mubr.bf16.gmra.mxu0 %v1829
        %v4313 = vpop.f32.mrf.mxu0
        %v4314 = vadd.f32 0.0, %v4313
        %v4315 = vpop.f32.mrf.mxu0
        %v4316 = vpop.f32.mrf.mxu0
        %v4317 = vadd.f32 0.0, %v4316
        %v4318 = vpop.f32.mrf.mxu0
        %4319 = vmatprep.mubr.bf16.mxu0 %v1968
        %4320 = vmatmul.mubr.bf16.gmra.mxu0 %v1830
        %v4321 = vpop.f32.mrf.mxu0
        %v4322 = vadd.f32 0.0, %v4321
        %v4323 = vpop.f32.mrf.mxu0
        %v4324 = vpop.f32.mrf.mxu0
        %v4325 = vadd.f32 0.0, %v4324
        %v4326 = vpop.f32.mrf.mxu0
        %4327 = vmatprep.mubr.bf16.mxu0 %v1980
        %4328 = vmatmul.mubr.bf16.gmra.mxu0 %v1831
        %v4329 = vpop.f32.mrf.mxu0
        %v4330 = vadd.f32 0.0, %v4329
        %v4331 = vpop.f32.mrf.mxu0
        %v4332 = vpop.f32.mrf.mxu0
        %v4333 = vadd.f32 0.0, %v4332
        %v4334 = vpop.f32.mrf.mxu0
        %4335 = vmatprep.mubr.bf16.mxu0 %v1992
        %4336 = vmatmul.mubr.bf16.gmra.mxu0 %v1832
        %v4337 = vpop.f32.mrf.mxu0
        %v4338 = vadd.f32 0.0, %v4337
        %v4339 = vpop.f32.mrf.mxu0
        %v4340 = vpop.f32.mrf.mxu0
        %v4341 = vadd.f32 0.0, %v4340
        %v4342 = vpop.f32.mrf.mxu0
        %4343 = vdwg.mxu0
        %4344 = vmatprep.subr.bf16.mxu0 0
        %4345 = vmatpush1.bf16.msra.mxu0 %v4222
        %4346 = vmatprep.subr.bf16.mxu0 0
        %4347 = vmatpush1.bf16.msra.mxu0 %v4221
        %4348 = vmatprep.subr.bf16.mxu0 0
        %4349 = vmatpush1.bf16.msra.mxu0 %v4220
        %4350 = vmatprep.subr.bf16.mxu0 0
        %4351 = vmatpush1.bf16.msra.mxu0 %v4219
        %4352 = vmatprep.subr.bf16.mxu0 0
        %4353 = vmatpush1.bf16.msra.mxu0 %v4218
        %4354 = vmatprep.subr.bf16.mxu0 0
        %4355 = vmatpush1.bf16.msra.mxu0 %v4217
        %4356 = vmatprep.subr.bf16.mxu0 0
        %4357 = vmatpush1.bf16.msra.mxu0 %v4216
        %4358 = vmatprep.subr.bf16.mxu0 0
        %4359 = vmatpush1.bf16.msra.mxu0 %v4215
        %4360 = vmatprep.subr.bf16.mxu0 0
        %4361 = vmatpush2.bf16.msra.mxu0 0
        %4362 = vmatprep.subr.bf16.mxu0 0
        %4363 = vmatpush2.bf16.msra.mxu0 0
        %4364 = vmatprep.subr.bf16.mxu0 0
        %4365 = vmatpush2.bf16.msra.mxu0 0
        %4366 = vmatprep.subr.bf16.mxu0 0
        %4367 = vmatpush2.bf16.msra.mxu0 0
        %4368 = vmatprep.subr.bf16.mxu0 0
        %4369 = vmatpush2.bf16.msra.mxu0 0
        %4370 = vmatprep.subr.bf16.mxu0 0
        %4371 = vmatpush2.bf16.msra.mxu0 0
        %4372 = vmatprep.subr.bf16.mxu0 0
        %4373 = vmatpush2.bf16.msra.mxu0 0
        %4374 = vmatprep.subr.bf16.mxu0 0
        %4375 = vmatpush2.bf16.msra.mxu0 0
        %4376 = vmatprep.mubr.bf16.mxu0 0
        %4377 = vmatmul.mubr.bf16.gmra.mxu0 %v2041
        %v4378 = vpop.f32.mrf.mxu0
        %v4379 = vadd.f32 %v4282, %v4378
        %v4380 = vpop.f32.mrf.mxu0
        %v4381 = vpop.f32.mrf.mxu0
        %v4382 = vadd.f32 %v4285, %v4381
        %v4383 = vpop.f32.mrf.mxu0
        %4384 = vmatprep.mubr.bf16.mxu0 0
        %4385 = vmatmul.mubr.bf16.gmra.mxu0 %v2044
        %v4386 = vpop.f32.mrf.mxu0
        %v4387 = vadd.f32 %v4290, %v4386
        %v4388 = vpop.f32.mrf.mxu0
        %v4389 = vpop.f32.mrf.mxu0
        %v4390 = vadd.f32 %v4293, %v4389
        %v4391 = vpop.f32.mrf.mxu0
        %4392 = vmatprep.mubr.bf16.mxu0 0
        %4393 = vmatmul.mubr.bf16.gmra.mxu0 %v2047
        %v4394 = vpop.f32.mrf.mxu0
        %v4395 = vadd.f32 %v4298, %v4394
        %v4396 = vpop.f32.mrf.mxu0
        %v4397 = vpop.f32.mrf.mxu0
        %v4398 = vadd.f32 %v4301, %v4397
        %v4399 = vpop.f32.mrf.mxu0
        %4400 = vmatprep.mubr.bf16.mxu0 0
        %4401 = vmatmul.mubr.bf16.gmra.mxu0 %v2050
        %v4402 = vpop.f32.mrf.mxu0
        %v4403 = vadd.f32 %v4306, %v4402
        %v4404 = vpop.f32.mrf.mxu0
        %v4405 = vpop.f32.mrf.mxu0
        %v4406 = vadd.f32 %v4309, %v4405
        %v4407 = vpop.f32.mrf.mxu0
        %4408 = vmatprep.mubr.bf16.mxu0 0
        %4409 = vmatmul.mubr.bf16.gmra.mxu0 %v2053
        %v4410 = vpop.f32.mrf.mxu0
        %v4411 = vadd.f32 %v4314, %v4410
        %v4412 = vpop.f32.mrf.mxu0
        %v4413 = vpop.f32.mrf.mxu0
        %v4414 = vadd.f32 %v4317, %v4413
        %v4415 = vpop.f32.mrf.mxu0
        %4416 = vmatprep.mubr.bf16.mxu0 0
        %4417 = vmatmul.mubr.bf16.gmra.mxu0 %v2056
        %v4418 = vpop.f32.mrf.mxu0
        %v4419 = vadd.f32 %v4322, %v4418
        %v4420 = vpop.f32.mrf.mxu0
        %v4421 = vpop.f32.mrf.mxu0
        %v4422 = vadd.f32 %v4325, %v4421
        %v4423 = vpop.f32.mrf.mxu0
        %4424 = vmatprep.mubr.bf16.mxu0 0
        %4425 = vmatmul.mubr.bf16.gmra.mxu0 %v2059
        %v4426 = vpop.f32.mrf.mxu0
        %v4427 = vadd.f32 %v4330, %v4426
        %v4428 = vpop.f32.mrf.mxu0
        %v4429 = vpop.f32.mrf.mxu0
        %v4430 = vadd.f32 %v4333, %v4429
        %v4431 = vpop.f32.mrf.mxu0
        %4432 = vmatprep.mubr.bf16.mxu0 0
        %4433 = vmatmul.mubr.bf16.gmra.mxu0 %v2062
        %v4434 = vpop.f32.mrf.mxu0
        %v4435 = vadd.f32 %v4338, %v4434
        %v4436 = vpop.f32.mrf.mxu0
        %v4437 = vpop.f32.mrf.mxu0
        %v4438 = vadd.f32 %v4341, %v4437
        %v4439 = vpop.f32.mrf.mxu0
        %4440 = vdwg.mxu0
        %v4441 = vadd.f32 %v4038, %v4379
        %v4442 = vadd.f32 %v4039, %v4382
        %v4443 = vadd.f32 %v4040, %v4387
        %v4444 = vadd.f32 %v4041, %v4390
        %v4445 = vadd.f32 %v4042, %v4395
        %v4446 = vadd.f32 %v4043, %v4398
        %v4447 = vadd.f32 %v4044, %v4403
        %v4448 = vadd.f32 %v4045, %v4406
        %v4449 = vadd.f32 %v4046, %v4411
        %v4450 = vadd.f32 %v4047, %v4414
        %v4451 = vadd.f32 %v4048, %v4419
        %v4452 = vadd.f32 %v4049, %v4422
        %v4453 = vadd.f32 %v4050, %v4427
        %v4454 = vadd.f32 %v4051, %v4430
        %v4455 = vadd.f32 %v4052, %v4435
        %v4456 = vadd.f32 %v4053, %v4438
        %v4457 = vld [vmem:[%s8] sm:$0x1]
        %v4459 = vlaneseq
        %v4460 = vshrl.u32 %v4459, 7
        %v4461 = vsub.s32 0, %v4460
        %v4462 = vrot.slane %v4457, %v4461
        %v4464 = vadd.f32 %v4441, %v4462
        %v4465 = vadd.f32 %v4442, %v4462
        %v4466 = vadd.f32 %v4443, %v4462
        %v4467 = vadd.f32 %v4444, %v4462
        %v4468 = vadd.f32 %v4445, %v4462
        %v4469 = vadd.f32 %v4446, %v4462
        %v4470 = vadd.f32 %v4447, %v4462
        %v4471 = vadd.f32 %v4448, %v4462
        %v4472 = vadd.f32 %v4449, %v4462
        %v4473 = vadd.f32 %v4450, %v4462
        %v4474 = vadd.f32 %v4451, %v4462
        %v4475 = vadd.f32 %v4452, %v4462
        %v4476 = vadd.f32 %v4453, %v4462
        %v4477 = vadd.f32 %v4454, %v4462
        %v4478 = vadd.f32 %v4455, %v4462
        %v4479 = vadd.f32 %v4456, %v4462
        %v4480 = vmax.f32 %v4464, 0.0
        %v4481 = vmax.f32 %v4465, 0.0
        %v4482 = vmax.f32 %v4466, 0.0
        %v4483 = vmax.f32 %v4467, 0.0
        %v4484 = vmax.f32 %v4468, 0.0
        %v4485 = vmax.f32 %v4469, 0.0
        %v4486 = vmax.f32 %v4470, 0.0
        %v4487 = vmax.f32 %v4471, 0.0
        %v4488 = vmax.f32 %v4472, 0.0
        %v4489 = vmax.f32 %v4473, 0.0
        %v4490 = vmax.f32 %v4474, 0.0
        %v4491 = vmax.f32 %v4475, 0.0
        %v4492 = vmax.f32 %v4476, 0.0
        %v4493 = vmax.f32 %v4477, 0.0
        %v4494 = vmax.f32 %v4478, 0.0
        %v4495 = vmax.f32 %v4479, 0.0
        %4496 = vst [vmem:[%s661] sm:$0xff] %v4480
        %4497 = vst [vmem:[%s661 + $0x8] sm:$0xff] %v4481
        %4498 = vst [vmem:[%s661 + $0x10] sm:$0xff] %v4482
        %4499 = vst [vmem:[%s661 + $0x18] sm:$0xff] %v4483
        %4500 = vst [vmem:[%s661 + $0x20] sm:$0xff] %v4484
        %4501 = vst [vmem:[%s661 + $0x28] sm:$0xff] %v4485
        %4502 = vst [vmem:[%s661 + $0x30] sm:$0xff] %v4486
        %4503 = vst [vmem:[%s661 + $0x38] sm:$0xff] %v4487
        %4504 = vst [vmem:[%s661 + $0x40] sm:$0xff] %v4488
        %4505 = vst [vmem:[%s661 + $0x48] sm:$0xff] %v4489
        %4506 = vst [vmem:[%s661 + $0x50] sm:$0xff] %v4490
        %4507 = vst [vmem:[%s661 + $0x58] sm:$0xff] %v4491
        %4508 = vst [vmem:[%s661 + $0x60] sm:$0xff] %v4492
        %4509 = vst [vmem:[%s661 + $0x68] sm:$0xff] %v4493
        %4510 = vst [vmem:[%s661 + $0x70] sm:$0xff] %v4494
        %4511 = vst [vmem:[%s661 + $0x78] sm:$0xff] %v4495
        %s4512 = sand.u32 %s321, 1
        %s4513 = scalar_lea.sflag [#allocation6], %s4512
        %s4514 = sand.u32 %s321, 1
        %s4515 = smul.addr %s4514, 128
        %s4516 = scalar_lea.vmem [#allocation18], %s4515
        // Predicated region
        $region89: #{tpu_custom_call.1} parent=55 // pred_check
          %p4517 = pneg %p331
        $region90: #{tpu_custom_call.1} parent=55 // pred_check_branch
          %4519 = sbr.rel (%p4517) target = $region92
        $region91: #{tpu_custom_call.1} parent=55 // pred_region
          %s4520 = smul.u32 8, %s41
          %s4522 = ssub.s32 2048, 2048
          %4523 = vsyncadd %s4513, %s4522
          %s4524 = smul.addr %s4520, 2
          %s4525 = smul.addr %s40, 32
          %s4526 = sadd.s32 %s4524, %s4525
          %s4527 = smul.addr %s4526, 128
          %s4528 = scalar_lea.hbm %s9, %s4527
          %s4529 = sshll.u32 %s4516, 4
          %s4530 = int_to_ptr.vmem [resolvable:$true] %s4529
          %4535 = dma.vmem_to_hbm [thread:$0]  %s4530, 2048, %s4528, %s4513, 128, 128, 8
        $region92: #{tpu_custom_call.1} parent=55 // pred_fallthru
          _
      $region56: #{tpu_custom_call.1} parent=5 // pred_fallthru
        _
      %p4536 = scmp.le.s32.totalorder 2, %s31
      // Predicated region
      $region93: #{tpu_custom_call.1} parent=5 // pred_check
        %p4537 = pneg %p4536
      $region94: #{tpu_custom_call.1} parent=5 // pred_check_branch
        %4539 = sbr.rel (%p4537) target = $region96
      $region95: #{tpu_custom_call.1} parent=5 // pred_region
        %s4540 = ssub.s32 %s31, 2
        // Predicated region
        $region97: #{tpu_custom_call.1} parent=95 // pred_check
          %p4541 = pneg %p337
        $region98: #{tpu_custom_call.1} parent=95 // pred_check_branch
          %4543 = sbr.rel (%p4541) target = $region100
        $region99: #{tpu_custom_call.1} parent=95 // pred_region
          %s4544 = sand.u32 %s322, 1
          %s4545 = scalar_lea.sflag [#allocation6], %s4544
          %s4546 = sand.u32 %s322, 1
          %s4547 = smul.addr %s4546, 128
          %s4548 = scalar_lea.vmem [#allocation18], %s4547
          %4549 = dma.done %s4545, 2048
        $region100: #{tpu_custom_call.1} parent=95 // pred_fallthru
          _
      $region96: #{tpu_custom_call.1} parent=5 // pred_fallthru
        _
    $region6: #{tpu_custom_call.1} parent=1 // loop_footer
      %s35 = sadd.s32 1, %s31
    $region7: #{tpu_custom_call.1} parent=1 // loop_footer_branch
      %30 = sbr.rel target = $region3
    $region8: #{tpu_custom_call.1} parent=1 // loop_exit
      _
    %4550 = vsyncpa [#allocation5], 1
    %s4551 = scalar_lea.sflag [#allocation5], 1
    %4552 = vsyncpa %s4551, 1
    %4553 = vsyncpa [#allocation8], 1
    %s4554 = scalar_lea.sflag [#allocation8], 1
    %4555 = vsyncpa %s4554, 1
    %4556 = vsyncpa [#allocation11], 1
    %s4557 = scalar_lea.sflag [#allocation11], 1
    %4558 = vsyncpa %s4557, 1
    %4559 = vsyncpa [#allocation14], 1
    %s4560 = scalar_lea.sflag [#allocation14], 1
    %4561 = vsyncpa %s4560, 1
    %4562 = vsyncpa [#allocation17], 1
    %4563 = vsyncpa [#allocation6], 1
    %s4564 = scalar_lea.sflag [#allocation6], 1
    %4565 = vsyncpa %s4564, 1

</llo_original>
